<compile_context>
chip_gen: v7x
topology: tpu7x:2x2x1
jax: 0.10.0
libtpu: 0.0.40
codegen_flags: <defaults>
</compile_context>

<pallas_src>
import functools

import jax
import jax.numpy as jnp
from jax.experimental import pallas as pl
from jax.experimental.pallas import tpu as pltpu

_LANE = 128
_NEG_SLOPE = 0.2


def _round_up(n, m):
    return ((n + m - 1) // m) * m


def _pad_axis(a, axis, target):
    pad = target - a.shape[axis]
    if pad == 0:
        return a
    widths = [(0, 0)] * a.ndim
    widths[axis] = (0, pad)
    return jnp.pad(a, widths)


def _default_block_b(batch):
    """Batch-tile heuristic per TPU generation.

    v5e: 4x128^2 MXU -> 128 rows already fill the array rows.
    v6e/v7x: 2x256^2 MXU -> 256 rows roughly doubles MXU row occupancy and
    halves the ~0.35us/step pipeline overhead; keep >=2 grid steps when the
    batch allows so both v7x TensorCores get work under "parallel" semantics.
    """
    try:
        kind = jax.devices()[0].device_kind.lower()
    except Exception:  # pragma: no cover - conservative fallback
        kind = ""
    is_v5e = ("v5e" in kind) or ("v5 lite" in kind) or ("v5litepod" in kind)
    cap = 128 if is_v5e else 256
    if batch <= 128:
        return batch          # single (full-extent) tile
    if batch <= 256:
        return 128            # 2 tiles -> megacore gets work even at B=256
    return cap


def _generator_kernel(x_ref,
                      w1_ref, b1_ref,
                      w2_ref, b2_ref,
                      w3_ref, b3_ref,
                      w4_ref, b4_ref,
                      o_ref):
    """Fused 4-layer MLP with leaky_relu(0.2) after every layer.

    Matmuls take bf16 operands on the MXU with explicit f32 accumulation; the
    bias add + leaky-relu epilogue runs in f32 on the VPU and the downcast to
    the next layer's bf16 operand (or the output dtype) is fused into it.
    """

    def layer(h_bf16, w_ref, b_ref, act_dtype):
        y = jnp.dot(h_bf16, w_ref[...], preferred_element_type=jnp.float32)
        y = y + b_ref[...]                       # [1, out] broadcasts over rows
        y = jnp.where(y > 0, y, _NEG_SLOPE * y)
        return y.astype(act_dtype)               # fused downcast

    h = x_ref[...].astype(jnp.bfloat16)          # in-kernel cast (no wrapper pass)
    h = layer(h, w1_ref, b1_ref, jnp.bfloat16)
    h = layer(h, w2_ref, b2_ref, jnp.bfloat16)
    h = layer(h, w3_ref, b3_ref, jnp.bfloat16)
    o_ref[...] = layer(h, w4_ref, b4_ref, o_ref.dtype)


def prepare_generator_params(params):
    """One-time conversion to kernel-ready layout (run OUTSIDE the per-call path).

    Pads the streamed feature dims (fc1 input rows, fc4 output cols + bias) to
    128-lane multiples and casts weights to bf16 (MXU operands) / biases to
    f32 (f32 epilogue). Zero padding preserves semantics exactly: padded x
    columns hit zero rows of W1, and padded fc4 output columns are sliced off
    (or left as zeros) in the result.
    """
    w1, b1 = params["fc1"]
    w2, b2 = params["fc2"]
    w3, b3 = params["fc3"]
    w4, b4 = params["fc4"]
    d_in = w1.shape[0]
    out_dim = w4.shape[1]
    d_in_p = _round_up(d_in, _LANE)
    out_p = _round_up(out_dim, _LANE)

    prepared = {
        "w1": _pad_axis(w1, 0, d_in_p).astype(jnp.bfloat16),
        "b1": b1.astype(jnp.float32),
        "w2": w2.astype(jnp.bfloat16),
        "b2": b2.astype(jnp.float32),
        "w3": w3.astype(jnp.bfloat16),
        "b3": b3.astype(jnp.float32),
        "w4": _pad_axis(w4, 1, out_p).astype(jnp.bfloat16),
        "b4": _pad_axis(b4, 1, out_p).astype(jnp.float32),
    }
    meta = {"d_in": d_in, "d_in_p": d_in_p, "out_dim": out_dim, "out_p": out_p}
    return prepared, meta


@functools.partial(jax.jit, static_argnames=("out_dim", "block_b", "out_dtype"))
def generator_forward(x, prepared, *, out_dim, block_b=None,
                      out_dtype=jnp.float32):
    """x: [B, input_dim] float32. prepared: dict from prepare_generator_params.

    Returns [B, out_dim] in `out_dtype` (bf16 MXU operands, f32 accumulation).
    """
    B, d_in = x.shape
    w1, b1 = prepared["w1"], prepared["b1"]
    w2, b2 = prepared["w2"], prepared["b2"]
    w3, b3 = prepared["w3"], prepared["b3"]
    w4, b4 = prepared["w4"], prepared["b4"]
    d_in_p = w1.shape[0]
    out_p = w4.shape[1]
    assert d_in <= d_in_p and out_dim <= out_p

    # Only x may still need lane padding per call (no-op when d_in % 128 == 0).
    # No dtype cast here: the kernel casts x to bf16 on the resident VMEM tile.
    x_p = _pad_axis(x, 1, d_in_p)

    bb = block_b if block_b is not None else _default_block_b(B)
    bb = min(bb, B)
    grid = (pl.cdiv(B, bb),)

    def resident(shape):
        # Constant block index across the grid -> keep a single VMEM copy
        # (no double-buffering of the ~1.9 MB of bf16 weights).
        return pl.BlockSpec(shape, lambda i: (0, 0),
                            pipeline_mode=pl.Buffered(1))

    out_padded = pl.pallas_call(
        _generator_kernel,
        out_shape=jax.ShapeDtypeStruct((B, out_p), out_dtype),
        grid_spec=pltpu.PrefetchScalarGridSpec(
            num_scalar_prefetch=0,
            grid=grid,
            in_specs=[
                pl.BlockSpec((bb, d_in_p), lambda i: (i, 0)),
                resident(w1.shape), resident(b1.shape),
                resident(w2.shape), resident(b2.shape),
                resident(w3.shape), resident(b3.shape),
                resident(w4.shape), resident(b4.shape),
            ],
            out_specs=pl.BlockSpec((bb, out_p), lambda i: (i, 0)),
        ),
        compiler_params=pltpu.CompilerParams(
            dimension_semantics=("parallel",),
            vmem_limit_bytes=32 * 1024 * 1024),
    )(x_p, w1, b1, w2, b2, w3, b3, w4, b4)

    if out_p == out_dim:
        return out_padded          # skip the full-output copy when already lane-dense
    return out_padded[:, :out_dim]


def init_generator_params(key, input_dim, output_dim, dtype=jnp.float32):
    """Matches nn.Linear's U(-1/sqrt(fan_in), 1/sqrt(fan_in)) init.

    Weights returned as [in, out] (transposed vs. PyTorch); biases as [1, out].
    """
    dims = [(input_dim, 256), (256, 512), (512, 1024), (1024, output_dim)]
    names = ["fc1", "fc2", "fc3", "fc4"]
    params = {}
    for name, (fan_in, fan_out) in zip(names, dims):
        key, kw, kb = jax.random.split(key, 3)
        bound = 1.0 / jnp.sqrt(jnp.float32(fan_in))
        w = jax.random.uniform(kw, (fan_in, fan_out), dtype, -bound, bound)
        b = jax.random.uniform(kb, (1, fan_out), dtype, -bound, bound)
        params[name] = (w, b)
    return params


def _reference_forward(x, params):
    """Pure-JAX reference mirroring the kernel's bf16-operand / f32-accumulate path."""
    h = x.astype(jnp.bfloat16)
    y = None
    for name in ("fc1", "fc2", "fc3", "fc4"):
        w, b = params[name]
        y = jnp.dot(h, w.astype(jnp.bfloat16),
                    preferred_element_type=jnp.float32)
        y = y + b.astype(jnp.float32)
        y = jnp.where(y > 0, y, _NEG_SLOPE * y)
        h = y.astype(jnp.bfloat16)
    return y


if __name__ == "__main__":
    input_dim = 128    # latent z dim (lane-dense)
    output_dim = 256   # flattened output dim (lane-dense)
    batch = 256        # 2 batch tiles of 128 -> both v7x TensorCores get work

    key = jax.random.PRNGKey(0)
    key, kx = jax.random.split(key)
    x = jax.random.normal(kx, (batch, input_dim), jnp.float32)

    params = init_generator_params(key, input_dim, output_dim)
    prepared, meta = prepare_generator_params(params)       # one-time, off the hot path
    prepared = jax.tree_util.tree_map(jax.block_until_ready, prepared)

    out = generator_forward(x, prepared, out_dim=meta["out_dim"])
    out = jax.block_until_ready(out)

    ref = _reference_forward(x, params)
    assert out.shape == (batch, output_dim), out.shape
    max_err = float(jnp.max(jnp.abs(out.astype(jnp.float32) -
                                    ref.astype(jnp.float32))))
    assert max_err < 1e-2, max_err

    print("KERNEL_OK")
</pallas_src>

<mosaic_0001>
module attributes {stable_mosaic.version = 11 : i64} {
  func.func @_generator_kernel(%arg0: i32, %arg1: memref<128x128xf32, #tpu.memory_space<vmem>>, %arg2: memref<128x256xbf16, #tpu.memory_space<vmem>>, %arg3: memref<1x256xf32, #tpu.memory_space<vmem>>, %arg4: memref<256x512xbf16, #tpu.memory_space<vmem>>, %arg5: memref<1x512xf32, #tpu.memory_space<vmem>>, %arg6: memref<512x1024xbf16, #tpu.memory_space<vmem>>, %arg7: memref<1x1024xf32, #tpu.memory_space<vmem>>, %arg8: memref<1024x256xbf16, #tpu.memory_space<vmem>>, %arg9: memref<1x256xf32, #tpu.memory_space<vmem>>, %arg10: memref<128x256xf32, #tpu.memory_space<vmem>>) attributes {dimension_semantics = [#tpu.dimension_semantics<parallel>], iteration_bounds = array<i64: 2>, scalar_prefetch = 0 : i64, scratch_operands = 0 : i64, tpu.core_type = #tpu.core_type<tc>, window_params = [{transform_indices = @transform_0, window_bounds = array<i64: 128, 128>}, {pipeline_mode = #tpu.pipeline_mode<synchronous>, transform_indices = @transform_1, window_bounds = array<i64: 128, 256>}, {pipeline_mode = #tpu.pipeline_mode<synchronous>, transform_indices = @transform_2, window_bounds = array<i64: 1, 256>}, {pipeline_mode = #tpu.pipeline_mode<synchronous>, transform_indices = @transform_3, window_bounds = array<i64: 256, 512>}, {pipeline_mode = #tpu.pipeline_mode<synchronous>, transform_indices = @transform_4, window_bounds = array<i64: 1, 512>}, {pipeline_mode = #tpu.pipeline_mode<synchronous>, transform_indices = @transform_5, window_bounds = array<i64: 512, 1024>}, {pipeline_mode = #tpu.pipeline_mode<synchronous>, transform_indices = @transform_6, window_bounds = array<i64: 1, 1024>}, {pipeline_mode = #tpu.pipeline_mode<synchronous>, transform_indices = @transform_7, window_bounds = array<i64: 1024, 256>}, {pipeline_mode = #tpu.pipeline_mode<synchronous>, transform_indices = @transform_8, window_bounds = array<i64: 1, 256>}, {transform_indices = @transform_9, window_bounds = array<i64: 128, 256>}]} {
    %c0 = arith.constant 0 : index
    %c0_0 = arith.constant 0 : index
    %0 = vector.load %arg1[%c0, %c0_0] : memref<128x128xf32, #tpu.memory_space<vmem>>, vector<128x128xf32>
    %1 = arith.truncf %0 : vector<128x128xf32> to vector<128x128xbf16>
    %c0_1 = arith.constant 0 : index
    %c0_2 = arith.constant 0 : index
    %2 = vector.load %arg2[%c0_1, %c0_2] : memref<128x256xbf16, #tpu.memory_space<vmem>>, vector<128x256xbf16>
    %cst = arith.constant dense<0.000000e+00> : vector<128x256xf32>
    %3 = tpu.matmul %1, %2, %cst {dimension_numbers = #tpu.dot_dimension_numbers<[1], [0], [0], [1], [0, 0, 1, 1], [], []>} : vector<128x128xbf16>, vector<128x256xbf16>, vector<128x256xf32> -> vector<128x256xf32>
    %c0_3 = arith.constant 0 : index
    %c0_4 = arith.constant 0 : index
    %4 = vector.load %arg3[%c0_3, %c0_4] : memref<1x256xf32, #tpu.memory_space<vmem>>, vector<1x256xf32>
    %5 = vector.broadcast %4 : vector<1x256xf32> to vector<128x256xf32>
    %6 = arith.addf %3, %5 : vector<128x256xf32>
    %cst_5 = arith.constant 0.000000e+00 : f32
    %7 = vector.broadcast %cst_5 : f32 to vector<128x256xf32>
    %8 = arith.cmpf ogt, %6, %7 : vector<128x256xf32>
    %cst_6 = arith.constant 2.000000e-01 : f32
    %9 = vector.broadcast %cst_6 : f32 to vector<128x256xf32>
    %10 = arith.mulf %9, %6 : vector<128x256xf32>
    %11 = arith.select %8, %6, %10 : vector<128x256xi1>, vector<128x256xf32>
    %12 = arith.truncf %11 : vector<128x256xf32> to vector<128x256xbf16>
    %c0_7 = arith.constant 0 : index
    %c0_8 = arith.constant 0 : index
    %13 = vector.load %arg4[%c0_7, %c0_8] : memref<256x512xbf16, #tpu.memory_space<vmem>>, vector<256x512xbf16>
    %cst_9 = arith.constant dense<0.000000e+00> : vector<128x512xf32>
    %14 = tpu.matmul %12, %13, %cst_9 {dimension_numbers = #tpu.dot_dimension_numbers<[1], [0], [0], [1], [0, 0, 1, 1], [], []>} : vector<128x256xbf16>, vector<256x512xbf16>, vector<128x512xf32> -> vector<128x512xf32>
    %c0_10 = arith.constant 0 : index
    %c0_11 = arith.constant 0 : index
    %15 = vector.load %arg5[%c0_10, %c0_11] : memref<1x512xf32, #tpu.memory_space<vmem>>, vector<1x512xf32>
    %16 = vector.broadcast %15 : vector<1x512xf32> to vector<128x512xf32>
    %17 = arith.addf %14, %16 : vector<128x512xf32>
    %cst_12 = arith.constant 0.000000e+00 : f32
    %18 = vector.broadcast %cst_12 : f32 to vector<128x512xf32>
    %19 = arith.cmpf ogt, %17, %18 : vector<128x512xf32>
    %cst_13 = arith.constant 2.000000e-01 : f32
    %20 = vector.broadcast %cst_13 : f32 to vector<128x512xf32>
    %21 = arith.mulf %20, %17 : vector<128x512xf32>
    %22 = arith.select %19, %17, %21 : vector<128x512xi1>, vector<128x512xf32>
    %23 = arith.truncf %22 : vector<128x512xf32> to vector<128x512xbf16>
    %c0_14 = arith.constant 0 : index
    %c0_15 = arith.constant 0 : index
    %24 = vector.load %arg6[%c0_14, %c0_15] : memref<512x1024xbf16, #tpu.memory_space<vmem>>, vector<512x1024xbf16>
    %cst_16 = arith.constant dense<0.000000e+00> : vector<128x1024xf32>
    %25 = tpu.matmul %23, %24, %cst_16 {dimension_numbers = #tpu.dot_dimension_numbers<[1], [0], [0], [1], [0, 0, 1, 1], [], []>} : vector<128x512xbf16>, vector<512x1024xbf16>, vector<128x1024xf32> -> vector<128x1024xf32>
    %c0_17 = arith.constant 0 : index
    %c0_18 = arith.constant 0 : index
    %26 = vector.load %arg7[%c0_17, %c0_18] : memref<1x1024xf32, #tpu.memory_space<vmem>>, vector<1x1024xf32>
    %27 = vector.broadcast %26 : vector<1x1024xf32> to vector<128x1024xf32>
    %28 = arith.addf %25, %27 : vector<128x1024xf32>
    %cst_19 = arith.constant 0.000000e+00 : f32
    %29 = vector.broadcast %cst_19 : f32 to vector<128x1024xf32>
    %30 = arith.cmpf ogt, %28, %29 : vector<128x1024xf32>
    %cst_20 = arith.constant 2.000000e-01 : f32
    %31 = vector.broadcast %cst_20 : f32 to vector<128x1024xf32>
    %32 = arith.mulf %31, %28 : vector<128x1024xf32>
    %33 = arith.select %30, %28, %32 : vector<128x1024xi1>, vector<128x1024xf32>
    %34 = arith.truncf %33 : vector<128x1024xf32> to vector<128x1024xbf16>
    %c0_21 = arith.constant 0 : index
    %c0_22 = arith.constant 0 : index
    %35 = vector.load %arg8[%c0_21, %c0_22] : memref<1024x256xbf16, #tpu.memory_space<vmem>>, vector<1024x256xbf16>
    %cst_23 = arith.constant dense<0.000000e+00> : vector<128x256xf32>
    %36 = tpu.matmul %34, %35, %cst_23 {dimension_numbers = #tpu.dot_dimension_numbers<[1], [0], [0], [1], [0, 0, 1, 1], [], []>} : vector<128x1024xbf16>, vector<1024x256xbf16>, vector<128x256xf32> -> vector<128x256xf32>
    %c0_24 = arith.constant 0 : index
    %c0_25 = arith.constant 0 : index
    %37 = vector.load %arg9[%c0_24, %c0_25] : memref<1x256xf32, #tpu.memory_space<vmem>>, vector<1x256xf32>
    %38 = vector.broadcast %37 : vector<1x256xf32> to vector<128x256xf32>
    %39 = arith.addf %36, %38 : vector<128x256xf32>
    %cst_26 = arith.constant 0.000000e+00 : f32
    %40 = vector.broadcast %cst_26 : f32 to vector<128x256xf32>
    %41 = arith.cmpf ogt, %39, %40 : vector<128x256xf32>
    %cst_27 = arith.constant 2.000000e-01 : f32
    %42 = vector.broadcast %cst_27 : f32 to vector<128x256xf32>
    %43 = arith.mulf %42, %39 : vector<128x256xf32>
    %44 = arith.select %41, %39, %43 : vector<128x256xi1>, vector<128x256xf32>
    %c0_28 = arith.constant 0 : index
    %c0_29 = arith.constant 0 : index
    %45 = vector.load %arg10[%c0_28, %c0_29] : memref<128x256xf32, #tpu.memory_space<vmem>>, vector<128x256xf32>
    tpu.vector_store %arg10[%c0_28, %c0_29], %44 {strides = array<i32>} : memref<128x256xf32, #tpu.memory_space<vmem>>, vector<128x256xf32>,
    return
  }
  func.func @transform_0(%arg0: i32) -> (i32, i32) {
    %c0_i32 = arith.constant 0 : i32
    %c0_i32_0 = arith.constant 0 : i32
    return %arg0, %c0_i32 : i32, i32
  }
  func.func @transform_1(%arg0: i32) -> (i32, i32) {
    %c0_i32 = arith.constant 0 : i32
    %c0_i32_0 = arith.constant 0 : i32
    %c0_i32_1 = arith.constant 0 : i32
    return %c0_i32, %c0_i32_0 : i32, i32
  }
  func.func @transform_2(%arg0: i32) -> (i32, i32) {
    %c0_i32 = arith.constant 0 : i32
    %c0_i32_0 = arith.constant 0 : i32
    %c0_i32_1 = arith.constant 0 : i32
    return %c0_i32, %c0_i32_0 : i32, i32
  }
  func.func @transform_3(%arg0: i32) -> (i32, i32) {
    %c0_i32 = arith.constant 0 : i32
    %c0_i32_0 = arith.constant 0 : i32
    %c0_i32_1 = arith.constant 0 : i32
    return %c0_i32, %c0_i32_0 : i32, i32
  }
  func.func @transform_4(%arg0: i32) -> (i32, i32) {
    %c0_i32 = arith.constant 0 : i32
    %c0_i32_0 = arith.constant 0 : i32
    %c0_i32_1 = arith.constant 0 : i32
    return %c0_i32, %c0_i32_0 : i32, i32
  }
  func.func @transform_5(%arg0: i32) -> (i32, i32) {
    %c0_i32 = arith.constant 0 : i32
    %c0_i32_0 = arith.constant 0 : i32
    %c0_i32_1 = arith.constant 0 : i32
    return %c0_i32, %c0_i32_0 : i32, i32
  }
  func.func @transform_6(%arg0: i32) -> (i32, i32) {
    %c0_i32 = arith.constant 0 : i32
    %c0_i32_0 = arith.constant 0 : i32
    %c0_i32_1 = arith.constant 0 : i32
    return %c0_i32, %c0_i32_0 : i32, i32
  }
  func.func @transform_7(%arg0: i32) -> (i32, i32) {
    %c0_i32 = arith.constant 0 : i32
    %c0_i32_0 = arith.constant 0 : i32
    %c0_i32_1 = arith.constant 0 : i32
    return %c0_i32, %c0_i32_0 : i32, i32
  }
  func.func @transform_8(%arg0: i32) -> (i32, i32) {
    %c0_i32 = arith.constant 0 : i32
    %c0_i32_0 = arith.constant 0 : i32
    %c0_i32_1 = arith.constant 0 : i32
    return %c0_i32, %c0_i32_0 : i32, i32
  }
  func.func @transform_9(%arg0: i32) -> (i32, i32) {
    %c0_i32 = arith.constant 0 : i32
    %c0_i32_0 = arith.constant 0 : i32
    return %arg0, %c0_i32 : i32, i32
  }
}

</mosaic_0001>

<llo_original>
// kernel: generator_forward.1
$region0: #{generator_forward.1}
  #allocation0 [shape = 'u32[]', space=smem, size = 0x4, offset = 0x4, fixed_abs, tag = 'smem constant byte address 0x4 - core index']
  #allocation1 [shape = 'u32[144,128]{1,0:T(1,128)}', space=vmem, size = 0x12000, scoped, tag = 'internal scratch']
  %s0 = inlined_call_operand.hbm [shape: f32[256,128], index: 0, kind: input, shape index: {}]
  %s1 = inlined_call_operand.hbm [shape: bf16[128,256], index: 1, kind: input, shape index: {}]
  %s2 = inlined_call_operand.vmem [shape: f32[1,256], index: 2, kind: input, shape index: {}]
  %s3 = inlined_call_operand.hbm [shape: bf16[256,512], index: 3, kind: input, shape index: {}]
  %s4 = inlined_call_operand.hbm [shape: f32[1,512], index: 4, kind: input, shape index: {}]
  %s5 = inlined_call_operand.hbm [shape: bf16[512,1024], index: 5, kind: input, shape index: {}]
  %s6 = inlined_call_operand.vmem [shape: f32[1,1024], index: 6, kind: input, shape index: {}]
  %s7 = inlined_call_operand.hbm [shape: bf16[1024,256], index: 7, kind: input, shape index: {}]
  %s8 = inlined_call_operand.vmem [shape: f32[1,256], index: 8, kind: input, shape index: {}]
  %s9 = inlined_call_operand.hbm [shape: f32[256,256], index: 9, kind: output, shape index: {}]
  %s10 = sld [smem:[#allocation0]]
  $region93: #{generator_forward.1} parent=0
    _
  %s12 = ssub.s32 1, %s10
  %s13 = scalar_select 0, %s12, %s10
  $region1: #{generator_forward.1} parent=0
    #allocation2 [shape = 'u8[131072]{0}', space=vmem, size = 0x20000, scoped, tag = 'input window, operand 0']
    #allocation3 [shape = 's32[2]{0}', space=sflag, size = 0x8, scoped, tag = 'scoped memory for generator_forward.1']
    #allocation4 [shape = 's32[2]{0}', space=sflag, size = 0x8, scoped, tag = 'scoped memory for generator_forward.1']
    #allocation5 [shape = 'u8[65536]{0}', space=vmem, size = 0x10000, scoped, tag = 'input window, operand 1, single buffered']
    #allocation6 [shape = 's32[1]{0}', space=sflag, size = 0x4, scoped, tag = 'scoped memory for generator_forward.1']
    #allocation7 [shape = 'u8[262144]{0}', space=vmem, size = 0x40000, scoped, tag = 'input window, operand 3, single buffered']
    #allocation8 [shape = 'u8[2048]{0}', space=vmem, size = 0x800, scoped, tag = 'input window, operand 4, single buffered']
    #allocation9 [shape = 's32[1]{0}', space=sflag, size = 0x4, scoped, tag = 'scoped memory for generator_forward.1']
    #allocation10 [shape = 'u8[1048576]{0}', space=vmem, size = 0x100000, scoped, tag = 'input window, operand 5, single buffered']
    #allocation11 [shape = 'u8[524288]{0}', space=vmem, size = 0x80000, scoped, tag = 'input window, operand 7, single buffered']
    #allocation12 [shape = 's32[1]{0}', space=sflag, size = 0x4, scoped, tag = 'scoped memory for generator_forward.1']
    #allocation13 [shape = 'u8[262144]{0}', space=vmem, size = 0x40000, scoped, tag = 'output window, operand 0']
    %14 = vsyncpa [#allocation3], 0
    %s15 = scalar_lea.sflag [#allocation3], 1
    %16 = vsyncpa %s15, 0
    %17 = vsyncpa [#allocation6], 0
    %18 = vsyncpa [#allocation9], 0
    %19 = vsyncpa [#allocation12], 0
    %20 = vsyncpa [#allocation4], 0
    %s21 = scalar_lea.sflag [#allocation4], 1
    %22 = vsyncpa %s21, 0
    loop: start=0, step=1, limit=4
    $region2: #{generator_forward.1} parent=1 // loop_pre_header
      _
    $region3: #{generator_forward.1} parent=1 // loop_header
      %s24 = sphi 0, %s28
      %p25 = scmp.ge.s32.totalorder %s24, 4
      %s34 = sphi 0, %s36
      %s37 = sphi 0, %s34
      %s38 = sphi 0, %s37
      %s54 = sphi 0, %s38
      %s58 = sphi 0, %s58
      %s60 = sphi 0, %s58
      %s61 = sphi 0, %s60
      %s75 = sphi 0, %s61
      %s79 = sphi 0, %s79
      %s81 = sphi 0, %s79
      %s82 = sphi 0, %s81
      %s96 = sphi 0, %s82
      %s100 = sphi 0, %s100
      %s102 = sphi 0, %s100
      %s103 = sphi 0, %s102
      %s117 = sphi 0, %s103
      %s121 = sphi 0, %s121
      %s123 = sphi 0, %s121
      %s124 = sphi 0, %s123
      %s138 = sphi 0, %s124
      %s142 = sphi 0, %s142
      %s144 = sphi 0, %s142
      %s145 = sphi 0, %s144
      %s159 = sphi 0, %s145
      %s163 = sphi 0, %s163
      %s165 = sphi 0, %s163
      %s166 = sphi 0, %s165
      %s180 = sphi 0, %s166
      %s184 = sphi 0, %s184
      %s186 = sphi 0, %s184
      %s187 = sphi 0, %s186
      %s201 = sphi 0, %s187
      %s205 = sphi 0, %s205
      %s207 = sphi 0, %s205
      %s208 = sphi 0, %s207
      %s222 = sphi 0, %s208
      %s228 = sphi 0, %s230
      %s231 = sphi 0, %s228
      %s232 = sphi 0, %s231
      %s248 = sphi 0, %s232
    $region4: #{generator_forward.1} parent=1 // loop_header_branch
      %27 = sbr.rel (%p25) target = $region8
    $region5: #{generator_forward.1} parent=1 // loop_body
      %s29 = ssub.s32 %s24, 1
      %s30 = ssub.s32 %s24, 2
      %s31 = sadd.s32 %s24, 1
      %s32 = ssub.s32 %s24, %s31
      %p33 = scmp.eq.s32.totalorder %s32, 0
      %s35 = sadd.s32 %s34, 1
      %s36 = scalar_select %p33, %s34, %s35
      %p39 = pneg %p33
      %p40 = scmp.eq.s32.totalorder %s24, 1
      %p41 = por %p39, %p40
      %p42 = scmp.ne.s32.totalorder %s34, %s37
      %p43 = scmp.eq.s32.totalorder %s24, 0
      %p44 = por %p42, %p43
      %p45 = scmp.ne.s32.totalorder %s34, %s37
      %p46 = scmp.eq.s32.totalorder %s29, 1
      %p47 = por %p45, %p46
      %p48 = scmp.ne.s32.totalorder %s37, %s38
      %p49 = scmp.eq.s32.totalorder %s29, 0
      %p50 = por %p48, %p49
      %p51 = scmp.ne.s32.totalorder %s37, %s38
      %p52 = scmp.eq.s32.totalorder %s30, 1
      %p53 = por %p51, %p52
      %p55 = scmp.ne.s32.totalorder %s38, %s54
      %p56 = scmp.eq.s32.totalorder %s30, 0
      %p57 = por %p55, %p56
      %s59 = sadd.s32 %s58, 1
      %p62 = scmp.eq.s32.totalorder %s24, 1
      %p63 = scmp.ne.s32.totalorder %s58, %s60
      %p64 = scmp.eq.s32.totalorder %s24, 0
      %p65 = por %p63, %p64
      %p66 = scmp.ne.s32.totalorder %s58, %s60
      %p67 = scmp.eq.s32.totalorder %s29, 1
      %p68 = por %p66, %p67
      %p69 = scmp.ne.s32.totalorder %s60, %s61
      %p70 = scmp.eq.s32.totalorder %s29, 0
      %p71 = por %p69, %p70
      %p72 = scmp.ne.s32.totalorder %s60, %s61
      %p73 = scmp.eq.s32.totalorder %s30, 1
      %p74 = por %p72, %p73
      %p76 = scmp.ne.s32.totalorder %s61, %s75
      %p77 = scmp.eq.s32.totalorder %s30, 0
      %p78 = por %p76, %p77
      %s80 = sadd.s32 %s79, 1
      %p83 = scmp.eq.s32.totalorder %s24, 1
      %p84 = scmp.ne.s32.totalorder %s79, %s81
      %p85 = scmp.eq.s32.totalorder %s24, 0
      %p86 = por %p84, %p85
      %p87 = scmp.ne.s32.totalorder %s79, %s81
      %p88 = scmp.eq.s32.totalorder %s29, 1
      %p89 = por %p87, %p88
      %p90 = scmp.ne.s32.totalorder %s81, %s82
      %p91 = scmp.eq.s32.totalorder %s29, 0
      %p92 = por %p90, %p91
      %p93 = scmp.ne.s32.totalorder %s81, %s82
      %p94 = scmp.eq.s32.totalorder %s30, 1
      %p95 = por %p93, %p94
      %p97 = scmp.ne.s32.totalorder %s82, %s96
      %p98 = scmp.eq.s32.totalorder %s30, 0
      %p99 = por %p97, %p98
      %s101 = sadd.s32 %s100, 1
      %p104 = scmp.eq.s32.totalorder %s24, 1
      %p105 = scmp.ne.s32.totalorder %s100, %s102
      %p106 = scmp.eq.s32.totalorder %s24, 0
      %p107 = por %p105, %p106
      %p108 = scmp.ne.s32.totalorder %s100, %s102
      %p109 = scmp.eq.s32.totalorder %s29, 1
      %p110 = por %p108, %p109
      %p111 = scmp.ne.s32.totalorder %s102, %s103
      %p112 = scmp.eq.s32.totalorder %s29, 0
      %p113 = por %p111, %p112
      %p114 = scmp.ne.s32.totalorder %s102, %s103
      %p115 = scmp.eq.s32.totalorder %s30, 1
      %p116 = por %p114, %p115
      %p118 = scmp.ne.s32.totalorder %s103, %s117
      %p119 = scmp.eq.s32.totalorder %s30, 0
      %p120 = por %p118, %p119
      %s122 = sadd.s32 %s121, 1
      %p125 = scmp.eq.s32.totalorder %s24, 1
      %p126 = scmp.ne.s32.totalorder %s121, %s123
      %p127 = scmp.eq.s32.totalorder %s24, 0
      %p128 = por %p126, %p127
      %p129 = scmp.ne.s32.totalorder %s121, %s123
      %p130 = scmp.eq.s32.totalorder %s29, 1
      %p131 = por %p129, %p130
      %p132 = scmp.ne.s32.totalorder %s123, %s124
      %p133 = scmp.eq.s32.totalorder %s29, 0
      %p134 = por %p132, %p133
      %p135 = scmp.ne.s32.totalorder %s123, %s124
      %p136 = scmp.eq.s32.totalorder %s30, 1
      %p137 = por %p135, %p136
      %p139 = scmp.ne.s32.totalorder %s124, %s138
      %p140 = scmp.eq.s32.totalorder %s30, 0
      %p141 = por %p139, %p140
      %s143 = sadd.s32 %s142, 1
      %p146 = scmp.eq.s32.totalorder %s24, 1
      %p147 = scmp.ne.s32.totalorder %s142, %s144
      %p148 = scmp.eq.s32.totalorder %s24, 0
      %p149 = por %p147, %p148
      %p150 = scmp.ne.s32.totalorder %s142, %s144
      %p151 = scmp.eq.s32.totalorder %s29, 1
      %p152 = por %p150, %p151
      %p153 = scmp.ne.s32.totalorder %s144, %s145
      %p154 = scmp.eq.s32.totalorder %s29, 0
      %p155 = por %p153, %p154
      %p156 = scmp.ne.s32.totalorder %s144, %s145
      %p157 = scmp.eq.s32.totalorder %s30, 1
      %p158 = por %p156, %p157
      %p160 = scmp.ne.s32.totalorder %s145, %s159
      %p161 = scmp.eq.s32.totalorder %s30, 0
      %p162 = por %p160, %p161
      %s164 = sadd.s32 %s163, 1
      %p167 = scmp.eq.s32.totalorder %s24, 1
      %p168 = scmp.ne.s32.totalorder %s163, %s165
      %p169 = scmp.eq.s32.totalorder %s24, 0
      %p170 = por %p168, %p169
      %p171 = scmp.ne.s32.totalorder %s163, %s165
      %p172 = scmp.eq.s32.totalorder %s29, 1
      %p173 = por %p171, %p172
      %p174 = scmp.ne.s32.totalorder %s165, %s166
      %p175 = scmp.eq.s32.totalorder %s29, 0
      %p176 = por %p174, %p175
      %p177 = scmp.ne.s32.totalorder %s165, %s166
      %p178 = scmp.eq.s32.totalorder %s30, 1
      %p179 = por %p177, %p178
      %p181 = scmp.ne.s32.totalorder %s166, %s180
      %p182 = scmp.eq.s32.totalorder %s30, 0
      %p183 = por %p181, %p182
      %s185 = sadd.s32 %s184, 1
      %p188 = scmp.eq.s32.totalorder %s24, 1
      %p189 = scmp.ne.s32.totalorder %s184, %s186
      %p190 = scmp.eq.s32.totalorder %s24, 0
      %p191 = por %p189, %p190
      %p192 = scmp.ne.s32.totalorder %s184, %s186
      %p193 = scmp.eq.s32.totalorder %s29, 1
      %p194 = por %p192, %p193
      %p195 = scmp.ne.s32.totalorder %s186, %s187
      %p196 = scmp.eq.s32.totalorder %s29, 0
      %p197 = por %p195, %p196
      %p198 = scmp.ne.s32.totalorder %s186, %s187
      %p199 = scmp.eq.s32.totalorder %s30, 1
      %p200 = por %p198, %p199
      %p202 = scmp.ne.s32.totalorder %s187, %s201
      %p203 = scmp.eq.s32.totalorder %s30, 0
      %p204 = por %p202, %p203
      %s206 = sadd.s32 %s205, 1
      %p209 = scmp.eq.s32.totalorder %s24, 1
      %p210 = scmp.ne.s32.totalorder %s205, %s207
      %p211 = scmp.eq.s32.totalorder %s24, 0
      %p212 = por %p210, %p211
      %p213 = scmp.ne.s32.totalorder %s205, %s207
      %p214 = scmp.eq.s32.totalorder %s29, 1
      %p215 = por %p213, %p214
      %p216 = scmp.ne.s32.totalorder %s207, %s208
      %p217 = scmp.eq.s32.totalorder %s29, 0
      %p218 = por %p216, %p217
      %p219 = scmp.ne.s32.totalorder %s207, %s208
      %p220 = scmp.eq.s32.totalorder %s30, 1
      %p221 = por %p219, %p220
      %p223 = scmp.ne.s32.totalorder %s208, %s222
      %p224 = scmp.eq.s32.totalorder %s30, 0
      %p225 = por %p223, %p224
      %s226 = ssub.s32 %s24, %s31
      %p227 = scmp.eq.s32.totalorder %s226, 0
      %s229 = sadd.s32 %s228, 1
      %s230 = scalar_select %p227, %s228, %s229
      %p233 = pneg %p227
      %p234 = scmp.eq.s32.totalorder %s24, 1
      %p235 = por %p233, %p234
      %p236 = scmp.ne.s32.totalorder %s228, %s231
      %p237 = scmp.eq.s32.totalorder %s24, 0
      %p238 = por %p236, %p237
      %p239 = scmp.ne.s32.totalorder %s228, %s231
      %p240 = scmp.eq.s32.totalorder %s29, 1
      %p241 = por %p239, %p240
      %p242 = scmp.ne.s32.totalorder %s231, %s232
      %p243 = scmp.eq.s32.totalorder %s29, 0
      %p244 = por %p242, %p243
      %p245 = scmp.ne.s32.totalorder %s231, %s232
      %p246 = scmp.eq.s32.totalorder %s30, 1
      %p247 = por %p245, %p246
      %p249 = scmp.ne.s32.totalorder %s232, %s248
      %p250 = scmp.eq.s32.totalorder %s30, 0
      %p251 = por %p249, %p250
      %p252 = scmp.le.s32.totalorder 1, %s24
      %p253 = scmp.lt.s32.totalorder %s24, 3
      %p254 = pnand %p252, %p253
      %p255 = pneg %p254
      // Predicated region
      $region9: #{generator_forward.1} parent=5 // pred_check
        _
      $region10: #{generator_forward.1} parent=5 // pred_check_branch
        %257 = sbr.rel (%p254) target = $region12
      $region11: #{generator_forward.1} parent=5 // pred_region
        %s258 = ssub.s32 %s24, 1
        // Predicated region
        $region13: #{generator_forward.1} parent=11 // pred_check
          %p259 = pneg %p71
        $region14: #{generator_forward.1} parent=11 // pred_check_branch
          %261 = sbr.rel (%p259) target = $region16
        $region15: #{generator_forward.1} parent=11 // pred_region
          %s263 = ssub.s32 2048, 2048
          %264 = vsyncadd [#allocation6], %s263
          %s265 = sshll.u32 [#allocation5], 4
          %s266 = int_to_ptr.vmem [resolvable:$true] %s265
          %271 = dma.hbm_to_vmem [thread:$0]  %s1, 2048, %s266, [#allocation6], 128, 128, 8
        $region16: #{generator_forward.1} parent=11 // pred_fallthru
          _
        // Predicated region
        $region17: #{generator_forward.1} parent=11 // pred_check
          %p272 = pneg %p92
        $region18: #{generator_forward.1} parent=11 // pred_check_branch
          %274 = sbr.rel (%p272) target = $region20
        $region19: #{generator_forward.1} parent=11 // pred_region
          _
        $region20: #{generator_forward.1} parent=11 // pred_fallthru
          _
        // Predicated region
        $region21: #{generator_forward.1} parent=11 // pred_check
          %p275 = pneg %p113
        $region22: #{generator_forward.1} parent=11 // pred_check_branch
          %277 = sbr.rel (%p275) target = $region24
        $region23: #{generator_forward.1} parent=11 // pred_region
          %s279 = ssub.s32 8192, 8192
          %280 = vsyncadd [#allocation6], %s279
          %s281 = sshll.u32 [#allocation7], 4
          %s282 = int_to_ptr.vmem [resolvable:$true] %s281
          %287 = dma.hbm_to_vmem [thread:$0]  %s3, 8192, %s282, [#allocation6], 256, 256, 16
        $region24: #{generator_forward.1} parent=11 // pred_fallthru
          _
        // Predicated region
        $region25: #{generator_forward.1} parent=11 // pred_check
          %p288 = pneg %p134
        $region26: #{generator_forward.1} parent=11 // pred_check_branch
          %290 = sbr.rel (%p288) target = $region28
        $region27: #{generator_forward.1} parent=11 // pred_region
          %s292 = ssub.s32 64, 64
          %293 = vsyncadd [#allocation9], %s292
          %s295 = sshll.u32 [#allocation8], 4
          %s296 = int_to_ptr.vmem [resolvable:$true] %s295
          %298 = dma.hbm_to_vmem [thread:$0]  %s4, 64, %s296, [#allocation9]
        $region28: #{generator_forward.1} parent=11 // pred_fallthru
          _
        // Predicated region
        $region29: #{generator_forward.1} parent=11 // pred_check
          %p299 = pneg %p155
        $region30: #{generator_forward.1} parent=11 // pred_check_branch
          %301 = sbr.rel (%p299) target = $region32
        $region31: #{generator_forward.1} parent=11 // pred_region
          %s303 = ssub.s32 32768, 32768
          %304 = vsyncadd [#allocation9], %s303
          %s305 = sshll.u32 [#allocation10], 4
          %s306 = int_to_ptr.vmem [resolvable:$true] %s305
          %311 = dma.hbm_to_vmem [thread:$0]  %s5, 32768, %s306, [#allocation9], 512, 512, 32
        $region32: #{generator_forward.1} parent=11 // pred_fallthru
          _
        // Predicated region
        $region33: #{generator_forward.1} parent=11 // pred_check
          %p312 = pneg %p176
        $region34: #{generator_forward.1} parent=11 // pred_check_branch
          %314 = sbr.rel (%p312) target = $region36
        $region35: #{generator_forward.1} parent=11 // pred_region
          _
        $region36: #{generator_forward.1} parent=11 // pred_fallthru
          _
        // Predicated region
        $region37: #{generator_forward.1} parent=11 // pred_check
          %p315 = pneg %p197
        $region38: #{generator_forward.1} parent=11 // pred_check_branch
          %317 = sbr.rel (%p315) target = $region40
        $region39: #{generator_forward.1} parent=11 // pred_region
          %s319 = ssub.s32 16384, 16384
          %320 = vsyncadd [#allocation12], %s319
          %s321 = sshll.u32 [#allocation11], 4
          %s322 = int_to_ptr.vmem [resolvable:$true] %s321
          %327 = dma.hbm_to_vmem [thread:$0]  %s7, 16384, %s322, [#allocation12], 128, 128, 8
        $region40: #{generator_forward.1} parent=11 // pred_fallthru
          _
        // Predicated region
        $region41: #{generator_forward.1} parent=11 // pred_check
          %p328 = pneg %p218
        $region42: #{generator_forward.1} parent=11 // pred_check_branch
          %330 = sbr.rel (%p328) target = $region44
        $region43: #{generator_forward.1} parent=11 // pred_region
          _
        $region44: #{generator_forward.1} parent=11 // pred_fallthru
          _
      $region12: #{generator_forward.1} parent=5 // pred_fallthru
        _
      %p331 = scmp.lt.s32.totalorder %s24, 2
      // Predicated region
      $region45: #{generator_forward.1} parent=5 // pred_check
        %p332 = pneg %p331
      $region46: #{generator_forward.1} parent=5 // pred_check_branch
        %334 = sbr.rel (%p332) target = $region48
      $region47: #{generator_forward.1} parent=5 // pred_region
        // Predicated region
        $region49: #{generator_forward.1} parent=47 // pred_check
          %p335 = pneg %p44
        $region50: #{generator_forward.1} parent=47 // pred_check_branch
          %337 = sbr.rel (%p335) target = $region52
        $region51: #{generator_forward.1} parent=47 // pred_region
          %s338 = sand.u32 %s34, 1
          %s339 = scalar_lea.sflag [#allocation3], %s338
          %s340 = sand.u32 %s34, 1
          %s341 = smul.addr %s340, 128
          %s342 = scalar_lea.vmem [#allocation2], %s341
          %s343 = smul.u32 16, %s24
          %s345 = ssub.s32 2048, 2048
          %346 = vsyncadd %s339, %s345
          %s347 = smul.addr %s343, 128
          %s348 = scalar_lea.hbm %s0, %s347
          %s349 = sshll.u32 %s342, 4
          %s350 = int_to_ptr.vmem [resolvable:$true] %s349
          %355 = dma.hbm_to_vmem [thread:$0]  %s348, 2048, %s350, %s339, 128, 128, 8
        $region52: #{generator_forward.1} parent=47 // pred_fallthru
          _
      $region48: #{generator_forward.1} parent=5 // pred_fallthru
        _
      %p356 = scmp.le.s32.totalorder 1, %s24
      %p357 = scmp.lt.s32.totalorder %s24, 3
      %p358 = pnand %p356, %p357
      %p359 = pneg %p358
      // Predicated region
      $region53: #{generator_forward.1} parent=5 // pred_check
        _
      $region54: #{generator_forward.1} parent=5 // pred_check_branch
        %361 = sbr.rel (%p358) target = $region56
      $region55: #{generator_forward.1} parent=5 // pred_region
        %s362 = ssub.s32 %s24, 1
        %s363 = sand.u32 %s37, 1
        %s364 = scalar_lea.sflag [#allocation3], %s363
        %s365 = sand.u32 %s37, 1
        %s366 = smul.addr %s365, 128
        %s367 = scalar_lea.vmem [#allocation2], %s366
        // Predicated region
        $region57: #{generator_forward.1} parent=55 // pred_check
          %p368 = pneg %p50
        $region58: #{generator_forward.1} parent=55 // pred_check_branch
          %370 = sbr.rel (%p368) target = $region60
        $region59: #{generator_forward.1} parent=55 // pred_region
          %371 = dma.done %s364, 2048
        $region60: #{generator_forward.1} parent=55 // pred_fallthru
          _
        // Predicated region
        $region61: #{generator_forward.1} parent=55 // pred_check
          %p372 = pneg %p71
        $region62: #{generator_forward.1} parent=55 // pred_check_branch
          %374 = sbr.rel (%p372) target = $region64
        $region63: #{generator_forward.1} parent=55 // pred_region
          %375 = dma.done [#allocation6], 2048
        $region64: #{generator_forward.1} parent=55 // pred_fallthru
          _
        // Predicated region
        $region65: #{generator_forward.1} parent=55 // pred_check
          %p376 = pneg %p113
        $region66: #{generator_forward.1} parent=55 // pred_check_branch
          %378 = sbr.rel (%p376) target = $region68
        $region67: #{generator_forward.1} parent=55 // pred_region
          %379 = dma.done [#allocation6], 8192
        $region68: #{generator_forward.1} parent=55 // pred_fallthru
          _
        // Predicated region
        $region69: #{generator_forward.1} parent=55 // pred_check
          %p380 = pneg %p134
        $region70: #{generator_forward.1} parent=55 // pred_check_branch
          %382 = sbr.rel (%p380) target = $region72
        $region71: #{generator_forward.1} parent=55 // pred_region
          %383 = dma.done [#allocation9], 64
        $region72: #{generator_forward.1} parent=55 // pred_fallthru
          _
        // Predicated region
        $region73: #{generator_forward.1} parent=55 // pred_check
          %p384 = pneg %p155
        $region74: #{generator_forward.1} parent=55 // pred_check_branch
          %386 = sbr.rel (%p384) target = $region76
        $region75: #{generator_forward.1} parent=55 // pred_region
          %387 = dma.done [#allocation9], 32768
        $region76: #{generator_forward.1} parent=55 // pred_fallthru
          _
        // Predicated region
        $region77: #{generator_forward.1} parent=55 // pred_check
          %p388 = pneg %p197
        $region78: #{generator_forward.1} parent=55 // pred_check_branch
          %390 = sbr.rel (%p388) target = $region80
        $region79: #{generator_forward.1} parent=55 // pred_region
          %391 = dma.done [#allocation12], 16384
        $region80: #{generator_forward.1} parent=55 // pred_fallthru
          _
        %s392 = sand.u32 %s37, 1
        %s393 = scalar_lea.sflag [#allocation3], %s392
        %s394 = sand.u32 %s37, 1
        %s395 = smul.addr %s394, 128
        %s396 = scalar_lea.vmem [#allocation2], %s395
        %p397 = pneg %p50
        %p398 = pneg %p47
        %p399 = pneg %p71
        %p400 = pneg %p68
        %p401 = pneg %p92
        %p402 = pneg %p89
        %p403 = pneg %p113
        %p404 = pneg %p110
        %p405 = pneg %p134
        %p406 = pneg %p131
        %p407 = pneg %p155
        %p408 = pneg %p152
        %p409 = pneg %p176
        %p410 = pneg %p173
        %p411 = pneg %p197
        %p412 = pneg %p194
        %p413 = pneg %p218
        %p414 = pneg %p215
        %p415 = pneg %p244
        %p416 = pneg %p241
        %s417 = sand.u32 %s231, 1
        %s418 = scalar_lea.sflag [#allocation4], %s417
        %s419 = sand.u32 %s231, 1
        %s420 = smul.addr %s419, 256
        %s421 = scalar_lea.vmem [#allocation13], %s420
        %s422 = smul.u32 16, %s29
        %s423 = smul.u32 16, %s29
        %v425 = vld [vmem:[%s367] sm:$0xff]
        %v426 = vld [vmem:[%s367 + $0x8] sm:$0xff]
        %v427 = vld [vmem:[%s367 + $0x10] sm:$0xff]
        %v428 = vld [vmem:[%s367 + $0x18] sm:$0xff]
        %v429 = vld [vmem:[%s367 + $0x20] sm:$0xff]
        %v430 = vld [vmem:[%s367 + $0x28] sm:$0xff]
        %v431 = vld [vmem:[%s367 + $0x30] sm:$0xff]
        %v432 = vld [vmem:[%s367 + $0x38] sm:$0xff]
        %v433 = vld [vmem:[%s367 + $0x40] sm:$0xff]
        %v434 = vld [vmem:[%s367 + $0x48] sm:$0xff]
        %v435 = vld [vmem:[%s367 + $0x50] sm:$0xff]
        %v436 = vld [vmem:[%s367 + $0x58] sm:$0xff]
        %v437 = vld [vmem:[%s367 + $0x60] sm:$0xff]
        %v438 = vld [vmem:[%s367 + $0x68] sm:$0xff]
        %v439 = vld [vmem:[%s367 + $0x70] sm:$0xff]
        %v440 = vld [vmem:[%s367 + $0x78] sm:$0xff]
        %v441 = vpack.c.bf16 %v426, %v425
        %v442 = vpack.c.bf16 %v428, %v427
        %v443 = vpack.c.bf16 %v430, %v429
        %v444 = vpack.c.bf16 %v432, %v431
        %v445 = vpack.c.bf16 %v434, %v433
        %v446 = vpack.c.bf16 %v436, %v435
        %v447 = vpack.c.bf16 %v438, %v437
        %v448 = vpack.c.bf16 %v440, %v439
        %v449 = vld [vmem:[#allocation5] sm:$0xff]
        %v450 = vld [vmem:[#allocation5 + $0x8] sm:$0xff]
        %v451 = vld [vmem:[#allocation5 + $0x10] sm:$0xff]
        %v452 = vld [vmem:[#allocation5 + $0x18] sm:$0xff]
        %v453 = vld [vmem:[#allocation5 + $0x20] sm:$0xff]
        %v454 = vld [vmem:[#allocation5 + $0x28] sm:$0xff]
        %v455 = vld [vmem:[#allocation5 + $0x30] sm:$0xff]
        %v456 = vld [vmem:[#allocation5 + $0x38] sm:$0xff]
        %v457 = vld [vmem:[#allocation5 + $0x40] sm:$0xff]
        %v458 = vld [vmem:[#allocation5 + $0x48] sm:$0xff]
        %v459 = vld [vmem:[#allocation5 + $0x50] sm:$0xff]
        %v460 = vld [vmem:[#allocation5 + $0x58] sm:$0xff]
        %v461 = vld [vmem:[#allocation5 + $0x60] sm:$0xff]
        %v462 = vld [vmem:[#allocation5 + $0x68] sm:$0xff]
        %v463 = vld [vmem:[#allocation5 + $0x70] sm:$0xff]
        %v464 = vld [vmem:[#allocation5 + $0x78] sm:$0xff]
        %v465 = vld [vmem:[%s2] sm:$0x3]
        %v467 = vlaneseq
        %v468 = vshrl.u32 %v467, 7
        %v469 = vsub.s32 0, %v468
        %v470 = vrot.slane %v465, %v469
        %v471 = vlaneseq
        %v472 = vshrl.u32 %v471, 7
        %v473 = vsub.s32 1, %v472
        %v474 = vrot.slane %v465, %v473
        %v493 = vunpack.c.l.b16 %v449
        %v494 = vunpack.c.h.b16 %v449
        %v495 = vunpack.c.l.b16 %v450
        %v496 = vunpack.c.h.b16 %v450
        %v497 = vunpack.c.l.b16 %v451
        %v498 = vunpack.c.h.b16 %v451
        %v499 = vunpack.c.l.b16 %v452
        %v500 = vunpack.c.h.b16 %v452
        %v501 = vunpack.c.l.b16 %v453
        %v502 = vunpack.c.h.b16 %v453
        %v503 = vunpack.c.l.b16 %v454
        %v504 = vunpack.c.h.b16 %v454
        %v505 = vunpack.c.l.b16 %v455
        %v506 = vunpack.c.h.b16 %v455
        %v507 = vunpack.c.l.b16 %v456
        %v508 = vunpack.c.h.b16 %v456
        %v509 = vunpack.c.l.b16 %v457
        %v510 = vunpack.c.h.b16 %v457
        %v511 = vunpack.c.l.b16 %v458
        %v512 = vunpack.c.h.b16 %v458
        %v513 = vunpack.c.l.b16 %v459
        %v514 = vunpack.c.h.b16 %v459
        %v515 = vunpack.c.l.b16 %v460
        %v516 = vunpack.c.h.b16 %v460
        %v517 = vunpack.c.l.b16 %v461
        %v518 = vunpack.c.h.b16 %v461
        %v519 = vunpack.c.l.b16 %v462
        %v520 = vunpack.c.h.b16 %v462
        %v521 = vunpack.c.l.b16 %v463
        %v522 = vunpack.c.h.b16 %v463
        %v523 = vunpack.c.l.b16 %v464
        %v524 = vunpack.c.h.b16 %v464
        %v525 = vpack.c.b16 %v495, %v493
        %v526 = vpack.c.b16 %v496, %v494
        %v527 = vpack.c.b16 %v499, %v497
        %v528 = vpack.c.b16 %v500, %v498
        %v529 = vpack.c.b16 %v503, %v501
        %v530 = vpack.c.b16 %v504, %v502
        %v531 = vpack.c.b16 %v507, %v505
        %v532 = vpack.c.b16 %v508, %v506
        %v533 = vpack.c.b16 %v511, %v509
        %v534 = vpack.c.b16 %v512, %v510
        %v535 = vpack.c.b16 %v515, %v513
        %v536 = vpack.c.b16 %v516, %v514
        %v537 = vpack.c.b16 %v519, %v517
        %v538 = vpack.c.b16 %v520, %v518
        %v539 = vpack.c.b16 %v523, %v521
        %v540 = vpack.c.b16 %v524, %v522
        %557 = vmatprep.subr.bf16.mxu0 %v526
        %558 = vmatpush1.bf16.msra.mxu0 %v525
        %559 = vmatprep.subr.bf16.mxu0 %v528
        %560 = vmatpush1.bf16.msra.mxu0 %v527
        %561 = vmatprep.subr.bf16.mxu0 %v530
        %562 = vmatpush1.bf16.msra.mxu0 %v529
        %563 = vmatprep.subr.bf16.mxu0 %v532
        %564 = vmatpush1.bf16.msra.mxu0 %v531
        %565 = vmatprep.subr.bf16.mxu0 %v534
        %566 = vmatpush1.bf16.msra.mxu0 %v533
        %567 = vmatprep.subr.bf16.mxu0 %v536
        %568 = vmatpush1.bf16.msra.mxu0 %v535
        %569 = vmatprep.subr.bf16.mxu0 %v538
        %570 = vmatpush1.bf16.msra.mxu0 %v537
        %571 = vmatprep.subr.bf16.mxu0 %v540
        %572 = vmatpush1.bf16.msra.mxu0 %v539
        %573 = vmatprep.subr.bf16.mxu0 0
        %574 = vmatpush1.bf16.msra.mxu0 0
        %575 = vmatprep.subr.bf16.mxu0 0
        %576 = vmatpush1.bf16.msra.mxu0 0
        %577 = vmatprep.subr.bf16.mxu0 0
        %578 = vmatpush1.bf16.msra.mxu0 0
        %579 = vmatprep.subr.bf16.mxu0 0
        %580 = vmatpush1.bf16.msra.mxu0 0
        %581 = vmatprep.subr.bf16.mxu0 0
        %582 = vmatpush1.bf16.msra.mxu0 0
        %583 = vmatprep.subr.bf16.mxu0 0
        %584 = vmatpush1.bf16.msra.mxu0 0
        %585 = vmatprep.subr.bf16.mxu0 0
        %586 = vmatpush1.bf16.msra.mxu0 0
        %587 = vmatprep.subr.bf16.mxu0 0
        %588 = vmatpush1.bf16.msra.mxu0 0
        %589 = vmatprep.mubr.bf16.mxu0 0
        %590 = vmatmul.mubr.bf16.gmra.mrb[0].mxu0 %v441
        %v591 = vpop.f32.mrb[0].mxu0
        %v592 = vadd.f32 %v470, %v591
        %v593 = vpop.f32.mrb[0].mxu0
        %v594 = vadd.f32 %v474, %v593
        %v595 = vpop.f32.mrb[0].mxu0
        %v596 = vadd.f32 %v470, %v595
        %v597 = vpop.f32.mrb[0].mxu0
        %v598 = vadd.f32 %v474, %v597
        %599 = vmatprep.mubr.bf16.mxu0 0
        %600 = vmatmul.mubr.bf16.gmra.mrb[0].mxu0 %v442
        %v601 = vpop.f32.mrb[0].mxu0
        %v602 = vadd.f32 %v470, %v601
        %v603 = vpop.f32.mrb[0].mxu0
        %v604 = vadd.f32 %v474, %v603
        %v605 = vpop.f32.mrb[0].mxu0
        %v606 = vadd.f32 %v470, %v605
        %v607 = vpop.f32.mrb[0].mxu0
        %v608 = vadd.f32 %v474, %v607
        %609 = vmatprep.mubr.bf16.mxu0 0
        %610 = vmatmul.mubr.bf16.gmra.mrb[0].mxu0 %v443
        %v611 = vpop.f32.mrb[0].mxu0
        %v612 = vadd.f32 %v470, %v611
        %v613 = vpop.f32.mrb[0].mxu0
        %v614 = vadd.f32 %v474, %v613
        %v615 = vpop.f32.mrb[0].mxu0
        %v616 = vadd.f32 %v470, %v615
        %v617 = vpop.f32.mrb[0].mxu0
        %v618 = vadd.f32 %v474, %v617
        %619 = vmatprep.mubr.bf16.mxu0 0
        %620 = vmatmul.mubr.bf16.gmra.mrb[0].mxu0 %v444
        %v621 = vpop.f32.mrb[0].mxu0
        %v622 = vadd.f32 %v470, %v621
        %v623 = vpop.f32.mrb[0].mxu0
        %v624 = vadd.f32 %v474, %v623
        %v625 = vpop.f32.mrb[0].mxu0
        %v626 = vadd.f32 %v470, %v625
        %v627 = vpop.f32.mrb[0].mxu0
        %v628 = vadd.f32 %v474, %v627
        %629 = vmatprep.mubr.bf16.mxu0 0
        %630 = vmatmul.mubr.bf16.gmra.mrb[0].mxu0 %v445
        %v631 = vpop.f32.mrb[0].mxu0
        %v632 = vadd.f32 %v470, %v631
        %v633 = vpop.f32.mrb[0].mxu0
        %v634 = vadd.f32 %v474, %v633
        %v635 = vpop.f32.mrb[0].mxu0
        %v636 = vadd.f32 %v470, %v635
        %v637 = vpop.f32.mrb[0].mxu0
        %v638 = vadd.f32 %v474, %v637
        %639 = vmatprep.mubr.bf16.mxu0 0
        %640 = vmatmul.mubr.bf16.gmra.mrb[0].mxu0 %v446
        %v641 = vpop.f32.mrb[0].mxu0
        %v642 = vadd.f32 %v470, %v641
        %v643 = vpop.f32.mrb[0].mxu0
        %v644 = vadd.f32 %v474, %v643
        %v645 = vpop.f32.mrb[0].mxu0
        %v646 = vadd.f32 %v470, %v645
        %v647 = vpop.f32.mrb[0].mxu0
        %v648 = vadd.f32 %v474, %v647
        %649 = vmatprep.mubr.bf16.mxu0 0
        %650 = vmatmul.mubr.bf16.gmra.mrb[0].mxu0 %v447
        %v651 = vpop.f32.mrb[0].mxu0
        %v652 = vadd.f32 %v470, %v651
        %v653 = vpop.f32.mrb[0].mxu0
        %v654 = vadd.f32 %v474, %v653
        %v655 = vpop.f32.mrb[0].mxu0
        %v656 = vadd.f32 %v470, %v655
        %v657 = vpop.f32.mrb[0].mxu0
        %v658 = vadd.f32 %v474, %v657
        %659 = vmatprep.mubr.bf16.mxu0 0
        %660 = vmatmul.mubr.bf16.gmra.mrb[0].mxu0 %v448
        %v661 = vpop.f32.mrb[0].mxu0
        %v662 = vadd.f32 %v470, %v661
        %v663 = vpop.f32.mrb[0].mxu0
        %v664 = vadd.f32 %v474, %v663
        %v665 = vpop.f32.mrb[0].mxu0
        %v666 = vadd.f32 %v470, %v665
        %v667 = vpop.f32.mrb[0].mxu0
        %v668 = vadd.f32 %v474, %v667
        %669 = vdwg.mxu0
        %vm670 = vcmp.gt.f32.partialorder %v592, 0.0
        %vm671 = vcmp.gt.f32.partialorder %v594, 0.0
        %vm672 = vcmp.gt.f32.partialorder %v596, 0.0
        %vm673 = vcmp.gt.f32.partialorder %v598, 0.0
        %vm674 = vcmp.gt.f32.partialorder %v602, 0.0
        %vm675 = vcmp.gt.f32.partialorder %v604, 0.0
        %vm676 = vcmp.gt.f32.partialorder %v606, 0.0
        %vm677 = vcmp.gt.f32.partialorder %v608, 0.0
        %vm678 = vcmp.gt.f32.partialorder %v612, 0.0
        %vm679 = vcmp.gt.f32.partialorder %v614, 0.0
        %vm680 = vcmp.gt.f32.partialorder %v616, 0.0
        %vm681 = vcmp.gt.f32.partialorder %v618, 0.0
        %vm682 = vcmp.gt.f32.partialorder %v622, 0.0
        %vm683 = vcmp.gt.f32.partialorder %v624, 0.0
        %vm684 = vcmp.gt.f32.partialorder %v626, 0.0
        %vm685 = vcmp.gt.f32.partialorder %v628, 0.0
        %vm686 = vcmp.gt.f32.partialorder %v632, 0.0
        %vm687 = vcmp.gt.f32.partialorder %v634, 0.0
        %vm688 = vcmp.gt.f32.partialorder %v636, 0.0
        %vm689 = vcmp.gt.f32.partialorder %v638, 0.0
        %vm690 = vcmp.gt.f32.partialorder %v642, 0.0
        %vm691 = vcmp.gt.f32.partialorder %v644, 0.0
        %vm692 = vcmp.gt.f32.partialorder %v646, 0.0
        %vm693 = vcmp.gt.f32.partialorder %v648, 0.0
        %vm694 = vcmp.gt.f32.partialorder %v652, 0.0
        %vm695 = vcmp.gt.f32.partialorder %v654, 0.0
        %vm696 = vcmp.gt.f32.partialorder %v656, 0.0
        %vm697 = vcmp.gt.f32.partialorder %v658, 0.0
        %vm698 = vcmp.gt.f32.partialorder %v662, 0.0
        %vm699 = vcmp.gt.f32.partialorder %v664, 0.0
        %vm700 = vcmp.gt.f32.partialorder %v666, 0.0
        %vm701 = vcmp.gt.f32.partialorder %v668, 0.0
        %v702 = vmul.f32 %v592, 0.2
        %v703 = vmul.f32 %v594, 0.2
        %v704 = vmul.f32 %v596, 0.2
        %v705 = vmul.f32 %v598, 0.2
        %v706 = vmul.f32 %v602, 0.2
        %v707 = vmul.f32 %v604, 0.2
        %v708 = vmul.f32 %v606, 0.2
        %v709 = vmul.f32 %v608, 0.2
        %v710 = vmul.f32 %v612, 0.2
        %v711 = vmul.f32 %v614, 0.2
        %v712 = vmul.f32 %v616, 0.2
        %v713 = vmul.f32 %v618, 0.2
        %v714 = vmul.f32 %v622, 0.2
        %v715 = vmul.f32 %v624, 0.2
        %v716 = vmul.f32 %v626, 0.2
        %v717 = vmul.f32 %v628, 0.2
        %v718 = vmul.f32 %v632, 0.2
        %v719 = vmul.f32 %v634, 0.2
        %v720 = vmul.f32 %v636, 0.2
        %v721 = vmul.f32 %v638, 0.2
        %v722 = vmul.f32 %v642, 0.2
        %v723 = vmul.f32 %v644, 0.2
        %v724 = vmul.f32 %v646, 0.2
        %v725 = vmul.f32 %v648, 0.2
        %v726 = vmul.f32 %v652, 0.2
        %v727 = vmul.f32 %v654, 0.2
        %v728 = vmul.f32 %v656, 0.2
        %v729 = vmul.f32 %v658, 0.2
        %v730 = vmul.f32 %v662, 0.2
        %v731 = vmul.f32 %v664, 0.2
        %v732 = vmul.f32 %v666, 0.2
        %v733 = vmul.f32 %v668, 0.2
        %v734 = vsel %vm670, %v592, %v702
        %v735 = vsel %vm671, %v594, %v703
        %v736 = vsel %vm672, %v596, %v704
        %v737 = vsel %vm673, %v598, %v705
        %v738 = vsel %vm674, %v602, %v706
        %v739 = vsel %vm675, %v604, %v707
        %v740 = vsel %vm676, %v606, %v708
        %v741 = vsel %vm677, %v608, %v709
        %v742 = vsel %vm678, %v612, %v710
        %v743 = vsel %vm679, %v614, %v711
        %v744 = vsel %vm680, %v616, %v712
        %v745 = vsel %vm681, %v618, %v713
        %v746 = vsel %vm682, %v622, %v714
        %v747 = vsel %vm683, %v624, %v715
        %v748 = vsel %vm684, %v626, %v716
        %v749 = vsel %vm685, %v628, %v717
        %v750 = vsel %vm686, %v632, %v718
        %v751 = vsel %vm687, %v634, %v719
        %v752 = vsel %vm688, %v636, %v720
        %v753 = vsel %vm689, %v638, %v721
        %v754 = vsel %vm690, %v642, %v722
        %v755 = vsel %vm691, %v644, %v723
        %v756 = vsel %vm692, %v646, %v724
        %v757 = vsel %vm693, %v648, %v725
        %v758 = vsel %vm694, %v652, %v726
        %v759 = vsel %vm695, %v654, %v727
        %v760 = vsel %vm696, %v656, %v728
        %v761 = vsel %vm697, %v658, %v729
        %v762 = vsel %vm698, %v662, %v730
        %v763 = vsel %vm699, %v664, %v731
        %v764 = vsel %vm700, %v666, %v732
        %v765 = vsel %vm701, %v668, %v733
        %v766 = vpack.c.bf16 %v736, %v734
        %v767 = vpack.c.bf16 %v737, %v735
        %v768 = vpack.c.bf16 %v740, %v738
        %v769 = vpack.c.bf16 %v741, %v739
        %v770 = vpack.c.bf16 %v744, %v742
        %v771 = vpack.c.bf16 %v745, %v743
        %v772 = vpack.c.bf16 %v748, %v746
        %v773 = vpack.c.bf16 %v749, %v747
        %v774 = vpack.c.bf16 %v752, %v750
        %v775 = vpack.c.bf16 %v753, %v751
        %v776 = vpack.c.bf16 %v756, %v754
        %v777 = vpack.c.bf16 %v757, %v755
        %v778 = vpack.c.bf16 %v760, %v758
        %v779 = vpack.c.bf16 %v761, %v759
        %v780 = vpack.c.bf16 %v764, %v762
        %v781 = vpack.c.bf16 %v765, %v763
        %v782 = vld [vmem:[#allocation7] sm:$0xff]
        %v783 = vld [vmem:[#allocation7 + $0x8] sm:$0xff]
        %v784 = vld [vmem:[#allocation7 + $0x10] sm:$0xff]
        %v785 = vld [vmem:[#allocation7 + $0x18] sm:$0xff]
        %v786 = vld [vmem:[#allocation7 + $0x20] sm:$0xff]
        %v787 = vld [vmem:[#allocation7 + $0x28] sm:$0xff]
        %v788 = vld [vmem:[#allocation7 + $0x30] sm:$0xff]
        %v789 = vld [vmem:[#allocation7 + $0x38] sm:$0xff]
        %v790 = vld [vmem:[#allocation7 + $0x40] sm:$0xff]
        %v791 = vld [vmem:[#allocation7 + $0x48] sm:$0xff]
        %v792 = vld [vmem:[#allocation7 + $0x50] sm:$0xff]
        %v793 = vld [vmem:[#allocation7 + $0x58] sm:$0xff]
        %v794 = vld [vmem:[#allocation7 + $0x60] sm:$0xff]
        %v795 = vld [vmem:[#allocation7 + $0x68] sm:$0xff]
        %v796 = vld [vmem:[#allocation7 + $0x70] sm:$0xff]
        %v797 = vld [vmem:[#allocation7 + $0x78] sm:$0xff]
        %v798 = vld [vmem:[#allocation7 + $0x80] sm:$0xff]
        %v799 = vld [vmem:[#allocation7 + $0x88] sm:$0xff]
        %v800 = vld [vmem:[#allocation7 + $0x90] sm:$0xff]
        %v801 = vld [vmem:[#allocation7 + $0x98] sm:$0xff]
        %v802 = vld [vmem:[#allocation7 + $0xa0] sm:$0xff]
        %v803 = vld [vmem:[#allocation7 + $0xa8] sm:$0xff]
        %v804 = vld [vmem:[#allocation7 + $0xb0] sm:$0xff]
        %v805 = vld [vmem:[#allocation7 + $0xb8] sm:$0xff]
        %v806 = vld [vmem:[#allocation7 + $0xc0] sm:$0xff]
        %v807 = vld [vmem:[#allocation7 + $0xc8] sm:$0xff]
        %v808 = vld [vmem:[#allocation7 + $0xd0] sm:$0xff]
        %v809 = vld [vmem:[#allocation7 + $0xd8] sm:$0xff]
        %v810 = vld [vmem:[#allocation7 + $0xe0] sm:$0xff]
        %v811 = vld [vmem:[#allocation7 + $0xe8] sm:$0xff]
        %v812 = vld [vmem:[#allocation7 + $0xf0] sm:$0xff]
        %v813 = vld [vmem:[#allocation7 + $0xf8] sm:$0xff]
        %v814 = vld [vmem:[#allocation7 + $0x100] sm:$0xff]
        %v815 = vld [vmem:[#allocation7 + $0x108] sm:$0xff]
        %v816 = vld [vmem:[#allocation7 + $0x110] sm:$0xff]
        %v817 = vld [vmem:[#allocation7 + $0x118] sm:$0xff]
        %v818 = vld [vmem:[#allocation7 + $0x120] sm:$0xff]
        %v819 = vld [vmem:[#allocation7 + $0x128] sm:$0xff]
        %v820 = vld [vmem:[#allocation7 + $0x130] sm:$0xff]
        %v821 = vld [vmem:[#allocation7 + $0x138] sm:$0xff]
        %v822 = vld [vmem:[#allocation7 + $0x140] sm:$0xff]
        %v823 = vld [vmem:[#allocation7 + $0x148] sm:$0xff]
        %v824 = vld [vmem:[#allocation7 + $0x150] sm:$0xff]
        %v825 = vld [vmem:[#allocation7 + $0x158] sm:$0xff]
        %v826 = vld [vmem:[#allocation7 + $0x160] sm:$0xff]
        %v827 = vld [vmem:[#allocation7 + $0x168] sm:$0xff]
        %v828 = vld [vmem:[#allocation7 + $0x170] sm:$0xff]
        %v829 = vld [vmem:[#allocation7 + $0x178] sm:$0xff]
        %v830 = vld [vmem:[#allocation7 + $0x180] sm:$0xff]
        %v831 = vld [vmem:[#allocation7 + $0x188] sm:$0xff]
        %v832 = vld [vmem:[#allocation7 + $0x190] sm:$0xff]
        %v833 = vld [vmem:[#allocation7 + $0x198] sm:$0xff]
        %v834 = vld [vmem:[#allocation7 + $0x1a0] sm:$0xff]
        %v835 = vld [vmem:[#allocation7 + $0x1a8] sm:$0xff]
        %v836 = vld [vmem:[#allocation7 + $0x1b0] sm:$0xff]
        %v837 = vld [vmem:[#allocation7 + $0x1b8] sm:$0xff]
        %v838 = vld [vmem:[#allocation7 + $0x1c0] sm:$0xff]
        %v839 = vld [vmem:[#allocation7 + $0x1c8] sm:$0xff]
        %v840 = vld [vmem:[#allocation7 + $0x1d0] sm:$0xff]
        %v841 = vld [vmem:[#allocation7 + $0x1d8] sm:$0xff]
        %v842 = vld [vmem:[#allocation7 + $0x1e0] sm:$0xff]
        %v843 = vld [vmem:[#allocation7 + $0x1e8] sm:$0xff]
        %v844 = vld [vmem:[#allocation7 + $0x1f0] sm:$0xff]
        %v845 = vld [vmem:[#allocation7 + $0x1f8] sm:$0xff]
        %v846 = vld [vmem:[#allocation8] sm:$0xf]
        %v848 = vlaneseq
        %v849 = vshrl.u32 %v848, 7
        %v850 = vsub.s32 0, %v849
        %v851 = vrot.slane %v846, %v850
        %v852 = vlaneseq
        %v853 = vshrl.u32 %v852, 7
        %v854 = vsub.s32 1, %v853
        %v855 = vrot.slane %v846, %v854
        %v856 = vlaneseq
        %v857 = vshrl.u32 %v856, 7
        %v858 = vsub.s32 2, %v857
        %v859 = vrot.slane %v846, %v858
        %v860 = vlaneseq
        %v861 = vshrl.u32 %v860, 7
        %v862 = vsub.s32 3, %v861
        %v863 = vrot.slane %v846, %v862
        %v932 = vunpack.c.l.b16 %v782
        %v933 = vunpack.c.h.b16 %v782
        %v934 = vunpack.c.l.b16 %v783
        %v935 = vunpack.c.h.b16 %v783
        %v936 = vunpack.c.l.b16 %v784
        %v937 = vunpack.c.h.b16 %v784
        %v938 = vunpack.c.l.b16 %v785
        %v939 = vunpack.c.h.b16 %v785
        %v940 = vunpack.c.l.b16 %v786
        %v941 = vunpack.c.h.b16 %v786
        %v942 = vunpack.c.l.b16 %v787
        %v943 = vunpack.c.h.b16 %v787
        %v944 = vunpack.c.l.b16 %v788
        %v945 = vunpack.c.h.b16 %v788
        %v946 = vunpack.c.l.b16 %v789
        %v947 = vunpack.c.h.b16 %v789
        %v948 = vunpack.c.l.b16 %v790
        %v949 = vunpack.c.h.b16 %v790
        %v950 = vunpack.c.l.b16 %v791
        %v951 = vunpack.c.h.b16 %v791
        %v952 = vunpack.c.l.b16 %v792
        %v953 = vunpack.c.h.b16 %v792
        %v954 = vunpack.c.l.b16 %v793
        %v955 = vunpack.c.h.b16 %v793
        %v956 = vunpack.c.l.b16 %v794
        %v957 = vunpack.c.h.b16 %v794
        %v958 = vunpack.c.l.b16 %v795
        %v959 = vunpack.c.h.b16 %v795
        %v960 = vunpack.c.l.b16 %v796
        %v961 = vunpack.c.h.b16 %v796
        %v962 = vunpack.c.l.b16 %v797
        %v963 = vunpack.c.h.b16 %v797
        %v964 = vunpack.c.l.b16 %v798
        %v965 = vunpack.c.h.b16 %v798
        %v966 = vunpack.c.l.b16 %v799
        %v967 = vunpack.c.h.b16 %v799
        %v968 = vunpack.c.l.b16 %v800
        %v969 = vunpack.c.h.b16 %v800
        %v970 = vunpack.c.l.b16 %v801
        %v971 = vunpack.c.h.b16 %v801
        %v972 = vunpack.c.l.b16 %v802
        %v973 = vunpack.c.h.b16 %v802
        %v974 = vunpack.c.l.b16 %v803
        %v975 = vunpack.c.h.b16 %v803
        %v976 = vunpack.c.l.b16 %v804
        %v977 = vunpack.c.h.b16 %v804
        %v978 = vunpack.c.l.b16 %v805
        %v979 = vunpack.c.h.b16 %v805
        %v980 = vunpack.c.l.b16 %v806
        %v981 = vunpack.c.h.b16 %v806
        %v982 = vunpack.c.l.b16 %v807
        %v983 = vunpack.c.h.b16 %v807
        %v984 = vunpack.c.l.b16 %v808
        %v985 = vunpack.c.h.b16 %v808
        %v986 = vunpack.c.l.b16 %v809
        %v987 = vunpack.c.h.b16 %v809
        %v988 = vunpack.c.l.b16 %v810
        %v989 = vunpack.c.h.b16 %v810
        %v990 = vunpack.c.l.b16 %v811
        %v991 = vunpack.c.h.b16 %v811
        %v992 = vunpack.c.l.b16 %v812
        %v993 = vunpack.c.h.b16 %v812
        %v994 = vunpack.c.l.b16 %v813
        %v995 = vunpack.c.h.b16 %v813
        %v996 = vunpack.c.l.b16 %v814
        %v997 = vunpack.c.h.b16 %v814
        %v998 = vunpack.c.l.b16 %v815
        %v999 = vunpack.c.h.b16 %v815
        %v1000 = vunpack.c.l.b16 %v816
        %v1001 = vunpack.c.h.b16 %v816
        %v1002 = vunpack.c.l.b16 %v817
        %v1003 = vunpack.c.h.b16 %v817
        %v1004 = vunpack.c.l.b16 %v818
        %v1005 = vunpack.c.h.b16 %v818
        %v1006 = vunpack.c.l.b16 %v819
        %v1007 = vunpack.c.h.b16 %v819
        %v1008 = vunpack.c.l.b16 %v820
        %v1009 = vunpack.c.h.b16 %v820
        %v1010 = vunpack.c.l.b16 %v821
        %v1011 = vunpack.c.h.b16 %v821
        %v1012 = vunpack.c.l.b16 %v822
        %v1013 = vunpack.c.h.b16 %v822
        %v1014 = vunpack.c.l.b16 %v823
        %v1015 = vunpack.c.h.b16 %v823
        %v1016 = vunpack.c.l.b16 %v824
        %v1017 = vunpack.c.h.b16 %v824
        %v1018 = vunpack.c.l.b16 %v825
        %v1019 = vunpack.c.h.b16 %v825
        %v1020 = vunpack.c.l.b16 %v826
        %v1021 = vunpack.c.h.b16 %v826
        %v1022 = vunpack.c.l.b16 %v827
        %v1023 = vunpack.c.h.b16 %v827
        %v1024 = vunpack.c.l.b16 %v828
        %v1025 = vunpack.c.h.b16 %v828
        %v1026 = vunpack.c.l.b16 %v829
        %v1027 = vunpack.c.h.b16 %v829
        %v1028 = vunpack.c.l.b16 %v830
        %v1029 = vunpack.c.h.b16 %v830
        %v1030 = vunpack.c.l.b16 %v831
        %v1031 = vunpack.c.h.b16 %v831
        %v1032 = vunpack.c.l.b16 %v832
        %v1033 = vunpack.c.h.b16 %v832
        %v1034 = vunpack.c.l.b16 %v833
        %v1035 = vunpack.c.h.b16 %v833
        %v1036 = vunpack.c.l.b16 %v834
        %v1037 = vunpack.c.h.b16 %v834
        %v1038 = vunpack.c.l.b16 %v835
        %v1039 = vunpack.c.h.b16 %v835
        %v1040 = vunpack.c.l.b16 %v836
        %v1041 = vunpack.c.h.b16 %v836
        %v1042 = vunpack.c.l.b16 %v837
        %v1043 = vunpack.c.h.b16 %v837
        %v1044 = vunpack.c.l.b16 %v838
        %v1045 = vunpack.c.h.b16 %v838
        %v1046 = vunpack.c.l.b16 %v839
        %v1047 = vunpack.c.h.b16 %v839
        %v1048 = vunpack.c.l.b16 %v840
        %v1049 = vunpack.c.h.b16 %v840
        %v1050 = vunpack.c.l.b16 %v841
        %v1051 = vunpack.c.h.b16 %v841
        %v1052 = vunpack.c.l.b16 %v842
        %v1053 = vunpack.c.h.b16 %v842
        %v1054 = vunpack.c.l.b16 %v843
        %v1055 = vunpack.c.h.b16 %v843
        %v1056 = vunpack.c.l.b16 %v844
        %v1057 = vunpack.c.h.b16 %v844
        %v1058 = vunpack.c.l.b16 %v845
        %v1059 = vunpack.c.h.b16 %v845
        %v1060 = vpack.c.b16 %v936, %v932
        %v1061 = vpack.c.b16 %v937, %v933
        %v1062 = vpack.c.b16 %v938, %v934
        %v1063 = vpack.c.b16 %v939, %v935
        %v1064 = vpack.c.b16 %v944, %v940
        %v1065 = vpack.c.b16 %v945, %v941
        %v1066 = vpack.c.b16 %v946, %v942
        %v1067 = vpack.c.b16 %v947, %v943
        %v1068 = vpack.c.b16 %v952, %v948
        %v1069 = vpack.c.b16 %v953, %v949
        %v1070 = vpack.c.b16 %v954, %v950
        %v1071 = vpack.c.b16 %v955, %v951
        %v1072 = vpack.c.b16 %v960, %v956
        %v1073 = vpack.c.b16 %v961, %v957
        %v1074 = vpack.c.b16 %v962, %v958
        %v1075 = vpack.c.b16 %v963, %v959
        %v1076 = vpack.c.b16 %v968, %v964
        %v1077 = vpack.c.b16 %v969, %v965
        %v1078 = vpack.c.b16 %v970, %v966
        %v1079 = vpack.c.b16 %v971, %v967
        %v1080 = vpack.c.b16 %v976, %v972
        %v1081 = vpack.c.b16 %v977, %v973
        %v1082 = vpack.c.b16 %v978, %v974
        %v1083 = vpack.c.b16 %v979, %v975
        %v1084 = vpack.c.b16 %v984, %v980
        %v1085 = vpack.c.b16 %v985, %v981
        %v1086 = vpack.c.b16 %v986, %v982
        %v1087 = vpack.c.b16 %v987, %v983
        %v1088 = vpack.c.b16 %v992, %v988
        %v1089 = vpack.c.b16 %v993, %v989
        %v1090 = vpack.c.b16 %v994, %v990
        %v1091 = vpack.c.b16 %v995, %v991
        %v1092 = vpack.c.b16 %v1000, %v996
        %v1093 = vpack.c.b16 %v1001, %v997
        %v1094 = vpack.c.b16 %v1002, %v998
        %v1095 = vpack.c.b16 %v1003, %v999
        %v1096 = vpack.c.b16 %v1008, %v1004
        %v1097 = vpack.c.b16 %v1009, %v1005
        %v1098 = vpack.c.b16 %v1010, %v1006
        %v1099 = vpack.c.b16 %v1011, %v1007
        %v1100 = vpack.c.b16 %v1016, %v1012
        %v1101 = vpack.c.b16 %v1017, %v1013
        %v1102 = vpack.c.b16 %v1018, %v1014
        %v1103 = vpack.c.b16 %v1019, %v1015
        %v1104 = vpack.c.b16 %v1024, %v1020
        %v1105 = vpack.c.b16 %v1025, %v1021
        %v1106 = vpack.c.b16 %v1026, %v1022
        %v1107 = vpack.c.b16 %v1027, %v1023
        %v1108 = vpack.c.b16 %v1032, %v1028
        %v1109 = vpack.c.b16 %v1033, %v1029
        %v1110 = vpack.c.b16 %v1034, %v1030
        %v1111 = vpack.c.b16 %v1035, %v1031
        %v1112 = vpack.c.b16 %v1040, %v1036
        %v1113 = vpack.c.b16 %v1041, %v1037
        %v1114 = vpack.c.b16 %v1042, %v1038
        %v1115 = vpack.c.b16 %v1043, %v1039
        %v1116 = vpack.c.b16 %v1048, %v1044
        %v1117 = vpack.c.b16 %v1049, %v1045
        %v1118 = vpack.c.b16 %v1050, %v1046
        %v1119 = vpack.c.b16 %v1051, %v1047
        %v1120 = vpack.c.b16 %v1056, %v1052
        %v1121 = vpack.c.b16 %v1057, %v1053
        %v1122 = vpack.c.b16 %v1058, %v1054
        %v1123 = vpack.c.b16 %v1059, %v1055
        %1188 = vmatprep.subr.bf16.mxu0 %v1061
        %1189 = vmatpush1.bf16.msra.mxu0 %v1060
        %1190 = vmatprep.subr.bf16.mxu0 %v1065
        %1191 = vmatpush1.bf16.msra.mxu0 %v1064
        %1192 = vmatprep.subr.bf16.mxu0 %v1069
        %1193 = vmatpush1.bf16.msra.mxu0 %v1068
        %1194 = vmatprep.subr.bf16.mxu0 %v1073
        %1195 = vmatpush1.bf16.msra.mxu0 %v1072
        %1196 = vmatprep.subr.bf16.mxu0 %v1077
        %1197 = vmatpush1.bf16.msra.mxu0 %v1076
        %1198 = vmatprep.subr.bf16.mxu0 %v1081
        %1199 = vmatpush1.bf16.msra.mxu0 %v1080
        %1200 = vmatprep.subr.bf16.mxu0 %v1085
        %1201 = vmatpush1.bf16.msra.mxu0 %v1084
        %1202 = vmatprep.subr.bf16.mxu0 %v1089
        %1203 = vmatpush1.bf16.msra.mxu0 %v1088
        %1204 = vmatprep.subr.bf16.mxu0 %v1093
        %1205 = vmatpush1.bf16.msra.mxu0 %v1092
        %1206 = vmatprep.subr.bf16.mxu0 %v1097
        %1207 = vmatpush1.bf16.msra.mxu0 %v1096
        %1208 = vmatprep.subr.bf16.mxu0 %v1101
        %1209 = vmatpush1.bf16.msra.mxu0 %v1100
        %1210 = vmatprep.subr.bf16.mxu0 %v1105
        %1211 = vmatpush1.bf16.msra.mxu0 %v1104
        %1212 = vmatprep.subr.bf16.mxu0 %v1109
        %1213 = vmatpush1.bf16.msra.mxu0 %v1108
        %1214 = vmatprep.subr.bf16.mxu0 %v1113
        %1215 = vmatpush1.bf16.msra.mxu0 %v1112
        %1216 = vmatprep.subr.bf16.mxu0 %v1117
        %1217 = vmatpush1.bf16.msra.mxu0 %v1116
        %1218 = vmatprep.subr.bf16.mxu0 %v1121
        %1219 = vmatpush1.bf16.msra.mxu0 %v1120
        %1220 = vmatprep.mubr.bf16.mxu0 %v767
        %1221 = vmatmul.mubr.bf16.gmra.mrb[0].mxu0 %v766
        %v1222 = vpop.f32.mrb[0].mxu0
        %v1223 = vadd.f32 %v851, %v1222
        %v1224 = vpop.f32.mrb[0].mxu0
        %v1225 = vadd.f32 %v855, %v1224
        %v1226 = vpop.f32.mrb[0].mxu0
        %v1227 = vadd.f32 %v851, %v1226
        %v1228 = vpop.f32.mrb[0].mxu0
        %v1229 = vadd.f32 %v855, %v1228
        %1230 = vmatprep.mubr.bf16.mxu0 %v769
        %1231 = vmatmul.mubr.bf16.gmra.mrb[0].mxu0 %v768
        %v1232 = vpop.f32.mrb[0].mxu0
        %v1233 = vadd.f32 %v851, %v1232
        %v1234 = vpop.f32.mrb[0].mxu0
        %v1235 = vadd.f32 %v855, %v1234
        %v1236 = vpop.f32.mrb[0].mxu0
        %v1237 = vadd.f32 %v851, %v1236
        %v1238 = vpop.f32.mrb[0].mxu0
        %v1239 = vadd.f32 %v855, %v1238
        %1240 = vmatprep.mubr.bf16.mxu0 %v771
        %1241 = vmatmul.mubr.bf16.gmra.mrb[0].mxu0 %v770
        %v1242 = vpop.f32.mrb[0].mxu0
        %v1243 = vadd.f32 %v851, %v1242
        %v1244 = vpop.f32.mrb[0].mxu0
        %v1245 = vadd.f32 %v855, %v1244
        %v1246 = vpop.f32.mrb[0].mxu0
        %v1247 = vadd.f32 %v851, %v1246
        %v1248 = vpop.f32.mrb[0].mxu0
        %v1249 = vadd.f32 %v855, %v1248
        %1250 = vmatprep.mubr.bf16.mxu0 %v773
        %1251 = vmatmul.mubr.bf16.gmra.mrb[0].mxu0 %v772
        %v1252 = vpop.f32.mrb[0].mxu0
        %v1253 = vadd.f32 %v851, %v1252
        %v1254 = vpop.f32.mrb[0].mxu0
        %v1255 = vadd.f32 %v855, %v1254
        %v1256 = vpop.f32.mrb[0].mxu0
        %v1257 = vadd.f32 %v851, %v1256
        %v1258 = vpop.f32.mrb[0].mxu0
        %v1259 = vadd.f32 %v855, %v1258
        %1260 = vmatprep.mubr.bf16.mxu0 %v775
        %1261 = vmatmul.mubr.bf16.gmra.mrb[0].mxu0 %v774
        %v1262 = vpop.f32.mrb[0].mxu0
        %v1263 = vadd.f32 %v851, %v1262
        %v1264 = vpop.f32.mrb[0].mxu0
        %v1265 = vadd.f32 %v855, %v1264
        %v1266 = vpop.f32.mrb[0].mxu0
        %v1267 = vadd.f32 %v851, %v1266
        %v1268 = vpop.f32.mrb[0].mxu0
        %v1269 = vadd.f32 %v855, %v1268
        %1270 = vmatprep.mubr.bf16.mxu0 %v777
        %1271 = vmatmul.mubr.bf16.gmra.mrb[0].mxu0 %v776
        %v1272 = vpop.f32.mrb[0].mxu0
        %v1273 = vadd.f32 %v851, %v1272
        %v1274 = vpop.f32.mrb[0].mxu0
        %v1275 = vadd.f32 %v855, %v1274
        %v1276 = vpop.f32.mrb[0].mxu0
        %v1277 = vadd.f32 %v851, %v1276
        %v1278 = vpop.f32.mrb[0].mxu0
        %v1279 = vadd.f32 %v855, %v1278
        %1280 = vmatprep.mubr.bf16.mxu0 %v779
        %1281 = vmatmul.mubr.bf16.gmra.mrb[0].mxu0 %v778
        %v1282 = vpop.f32.mrb[0].mxu0
        %v1283 = vadd.f32 %v851, %v1282
        %v1284 = vpop.f32.mrb[0].mxu0
        %v1285 = vadd.f32 %v855, %v1284
        %v1286 = vpop.f32.mrb[0].mxu0
        %v1287 = vadd.f32 %v851, %v1286
        %v1288 = vpop.f32.mrb[0].mxu0
        %v1289 = vadd.f32 %v855, %v1288
        %1290 = vmatprep.mubr.bf16.mxu0 %v781
        %1291 = vmatmul.mubr.bf16.gmra.mrb[0].mxu0 %v780
        %v1292 = vpop.f32.mrb[0].mxu0
        %v1293 = vadd.f32 %v851, %v1292
        %v1294 = vpop.f32.mrb[0].mxu0
        %v1295 = vadd.f32 %v855, %v1294
        %v1296 = vpop.f32.mrb[0].mxu0
        %v1297 = vadd.f32 %v851, %v1296
        %v1298 = vpop.f32.mrb[0].mxu0
        %v1299 = vadd.f32 %v855, %v1298
        %1300 = vdwg.mxu0
        %1301 = vmatprep.subr.bf16.mxu0 %v1063
        %1302 = vmatpush1.bf16.msra.mxu0 %v1062
        %1303 = vmatprep.subr.bf16.mxu0 %v1067
        %1304 = vmatpush1.bf16.msra.mxu0 %v1066
        %1305 = vmatprep.subr.bf16.mxu0 %v1071
        %1306 = vmatpush1.bf16.msra.mxu0 %v1070
        %1307 = vmatprep.subr.bf16.mxu0 %v1075
        %1308 = vmatpush1.bf16.msra.mxu0 %v1074
        %1309 = vmatprep.subr.bf16.mxu0 %v1079
        %1310 = vmatpush1.bf16.msra.mxu0 %v1078
        %1311 = vmatprep.subr.bf16.mxu0 %v1083
        %1312 = vmatpush1.bf16.msra.mxu0 %v1082
        %1313 = vmatprep.subr.bf16.mxu0 %v1087
        %1314 = vmatpush1.bf16.msra.mxu0 %v1086
        %1315 = vmatprep.subr.bf16.mxu0 %v1091
        %1316 = vmatpush1.bf16.msra.mxu0 %v1090
        %1317 = vmatprep.subr.bf16.mxu0 %v1095
        %1318 = vmatpush1.bf16.msra.mxu0 %v1094
        %1319 = vmatprep.subr.bf16.mxu0 %v1099
        %1320 = vmatpush1.bf16.msra.mxu0 %v1098
        %1321 = vmatprep.subr.bf16.mxu0 %v1103
        %1322 = vmatpush1.bf16.msra.mxu0 %v1102
        %1323 = vmatprep.subr.bf16.mxu0 %v1107
        %1324 = vmatpush1.bf16.msra.mxu0 %v1106
        %1325 = vmatprep.subr.bf16.mxu0 %v1111
        %1326 = vmatpush1.bf16.msra.mxu0 %v1110
        %1327 = vmatprep.subr.bf16.mxu0 %v1115
        %1328 = vmatpush1.bf16.msra.mxu0 %v1114
        %1329 = vmatprep.subr.bf16.mxu0 %v1119
        %1330 = vmatpush1.bf16.msra.mxu0 %v1118
        %1331 = vmatprep.subr.bf16.mxu0 %v1123
        %1332 = vmatpush1.bf16.msra.mxu0 %v1122
        %1333 = vmatprep.mubr.bf16.mxu0 %v767
        %1334 = vmatmul.mubr.bf16.gmra.mrb[0].mxu0 %v766
        %v1335 = vpop.f32.mrb[0].mxu0
        %v1336 = vadd.f32 %v859, %v1335
        %v1337 = vpop.f32.mrb[0].mxu0
        %v1338 = vadd.f32 %v863, %v1337
        %v1339 = vpop.f32.mrb[0].mxu0
        %v1340 = vadd.f32 %v859, %v1339
        %v1341 = vpop.f32.mrb[0].mxu0
        %v1342 = vadd.f32 %v863, %v1341
        %1343 = vmatprep.mubr.bf16.mxu0 %v769
        %1344 = vmatmul.mubr.bf16.gmra.mrb[0].mxu0 %v768
        %v1345 = vpop.f32.mrb[0].mxu0
        %v1346 = vadd.f32 %v859, %v1345
        %v1347 = vpop.f32.mrb[0].mxu0
        %v1348 = vadd.f32 %v863, %v1347
        %v1349 = vpop.f32.mrb[0].mxu0
        %v1350 = vadd.f32 %v859, %v1349
        %v1351 = vpop.f32.mrb[0].mxu0
        %v1352 = vadd.f32 %v863, %v1351
        %1353 = vmatprep.mubr.bf16.mxu0 %v771
        %1354 = vmatmul.mubr.bf16.gmra.mrb[0].mxu0 %v770
        %v1355 = vpop.f32.mrb[0].mxu0
        %v1356 = vadd.f32 %v859, %v1355
        %v1357 = vpop.f32.mrb[0].mxu0
        %v1358 = vadd.f32 %v863, %v1357
        %v1359 = vpop.f32.mrb[0].mxu0
        %v1360 = vadd.f32 %v859, %v1359
        %v1361 = vpop.f32.mrb[0].mxu0
        %v1362 = vadd.f32 %v863, %v1361
        %1363 = vmatprep.mubr.bf16.mxu0 %v773
        %1364 = vmatmul.mubr.bf16.gmra.mrb[0].mxu0 %v772
        %v1365 = vpop.f32.mrb[0].mxu0
        %v1366 = vadd.f32 %v859, %v1365
        %v1367 = vpop.f32.mrb[0].mxu0
        %v1368 = vadd.f32 %v863, %v1367
        %v1369 = vpop.f32.mrb[0].mxu0
        %v1370 = vadd.f32 %v859, %v1369
        %v1371 = vpop.f32.mrb[0].mxu0
        %v1372 = vadd.f32 %v863, %v1371
        %1373 = vmatprep.mubr.bf16.mxu0 %v775
        %1374 = vmatmul.mubr.bf16.gmra.mrb[0].mxu0 %v774
        %v1375 = vpop.f32.mrb[0].mxu0
        %v1376 = vadd.f32 %v859, %v1375
        %v1377 = vpop.f32.mrb[0].mxu0
        %v1378 = vadd.f32 %v863, %v1377
        %v1379 = vpop.f32.mrb[0].mxu0
        %v1380 = vadd.f32 %v859, %v1379
        %v1381 = vpop.f32.mrb[0].mxu0
        %v1382 = vadd.f32 %v863, %v1381
        %1383 = vmatprep.mubr.bf16.mxu0 %v777
        %1384 = vmatmul.mubr.bf16.gmra.mrb[0].mxu0 %v776
        %v1385 = vpop.f32.mrb[0].mxu0
        %v1386 = vadd.f32 %v859, %v1385
        %v1387 = vpop.f32.mrb[0].mxu0
        %v1388 = vadd.f32 %v863, %v1387
        %v1389 = vpop.f32.mrb[0].mxu0
        %v1390 = vadd.f32 %v859, %v1389
        %v1391 = vpop.f32.mrb[0].mxu0
        %v1392 = vadd.f32 %v863, %v1391
        %1393 = vmatprep.mubr.bf16.mxu0 %v779
        %1394 = vmatmul.mubr.bf16.gmra.mrb[0].mxu0 %v778
        %v1395 = vpop.f32.mrb[0].mxu0
        %v1396 = vadd.f32 %v859, %v1395
        %v1397 = vpop.f32.mrb[0].mxu0
        %v1398 = vadd.f32 %v863, %v1397
        %v1399 = vpop.f32.mrb[0].mxu0
        %v1400 = vadd.f32 %v859, %v1399
        %v1401 = vpop.f32.mrb[0].mxu0
        %v1402 = vadd.f32 %v863, %v1401
        %1403 = vmatprep.mubr.bf16.mxu0 %v781
        %1404 = vmatmul.mubr.bf16.gmra.mrb[0].mxu0 %v780
        %v1405 = vpop.f32.mrb[0].mxu0
        %v1406 = vadd.f32 %v859, %v1405
        %v1407 = vpop.f32.mrb[0].mxu0
        %v1408 = vadd.f32 %v863, %v1407
        %v1409 = vpop.f32.mrb[0].mxu0
        %v1410 = vadd.f32 %v859, %v1409
        %v1411 = vpop.f32.mrb[0].mxu0
        %v1412 = vadd.f32 %v863, %v1411
        %1413 = vdwg.mxu0
        %vm1414 = vcmp.gt.f32.partialorder %v1223, 0.0
        %vm1415 = vcmp.gt.f32.partialorder %v1225, 0.0
        %vm1416 = vcmp.gt.f32.partialorder %v1336, 0.0
        %vm1417 = vcmp.gt.f32.partialorder %v1338, 0.0
        %vm1418 = vcmp.gt.f32.partialorder %v1227, 0.0
        %vm1419 = vcmp.gt.f32.partialorder %v1229, 0.0
        %vm1420 = vcmp.gt.f32.partialorder %v1340, 0.0
        %vm1421 = vcmp.gt.f32.partialorder %v1342, 0.0
        %vm1422 = vcmp.gt.f32.partialorder %v1233, 0.0
        %vm1423 = vcmp.gt.f32.partialorder %v1235, 0.0
        %vm1424 = vcmp.gt.f32.partialorder %v1346, 0.0
        %vm1425 = vcmp.gt.f32.partialorder %v1348, 0.0
        %vm1426 = vcmp.gt.f32.partialorder %v1237, 0.0
        %vm1427 = vcmp.gt.f32.partialorder %v1239, 0.0
        %vm1428 = vcmp.gt.f32.partialorder %v1350, 0.0
        %vm1429 = vcmp.gt.f32.partialorder %v1352, 0.0
        %vm1430 = vcmp.gt.f32.partialorder %v1243, 0.0
        %vm1431 = vcmp.gt.f32.partialorder %v1245, 0.0
        %vm1432 = vcmp.gt.f32.partialorder %v1356, 0.0
        %vm1433 = vcmp.gt.f32.partialorder %v1358, 0.0
        %vm1434 = vcmp.gt.f32.partialorder %v1247, 0.0
        %vm1435 = vcmp.gt.f32.partialorder %v1249, 0.0
        %vm1436 = vcmp.gt.f32.partialorder %v1360, 0.0
        %vm1437 = vcmp.gt.f32.partialorder %v1362, 0.0
        %vm1438 = vcmp.gt.f32.partialorder %v1253, 0.0
        %vm1439 = vcmp.gt.f32.partialorder %v1255, 0.0
        %vm1440 = vcmp.gt.f32.partialorder %v1366, 0.0
        %vm1441 = vcmp.gt.f32.partialorder %v1368, 0.0
        %vm1442 = vcmp.gt.f32.partialorder %v1257, 0.0
        %vm1443 = vcmp.gt.f32.partialorder %v1259, 0.0
        %vm1444 = vcmp.gt.f32.partialorder %v1370, 0.0
        %vm1445 = vcmp.gt.f32.partialorder %v1372, 0.0
        %vm1446 = vcmp.gt.f32.partialorder %v1263, 0.0
        %vm1447 = vcmp.gt.f32.partialorder %v1265, 0.0
        %vm1448 = vcmp.gt.f32.partialorder %v1376, 0.0
        %vm1449 = vcmp.gt.f32.partialorder %v1378, 0.0
        %vm1450 = vcmp.gt.f32.partialorder %v1267, 0.0
        %vm1451 = vcmp.gt.f32.partialorder %v1269, 0.0
        %vm1452 = vcmp.gt.f32.partialorder %v1380, 0.0
        %vm1453 = vcmp.gt.f32.partialorder %v1382, 0.0
        %vm1454 = vcmp.gt.f32.partialorder %v1273, 0.0
        %vm1455 = vcmp.gt.f32.partialorder %v1275, 0.0
        %vm1456 = vcmp.gt.f32.partialorder %v1386, 0.0
        %vm1457 = vcmp.gt.f32.partialorder %v1388, 0.0
        %vm1458 = vcmp.gt.f32.partialorder %v1277, 0.0
        %vm1459 = vcmp.gt.f32.partialorder %v1279, 0.0
        %vm1460 = vcmp.gt.f32.partialorder %v1390, 0.0
        %vm1461 = vcmp.gt.f32.partialorder %v1392, 0.0
        %vm1462 = vcmp.gt.f32.partialorder %v1283, 0.0
        %vm1463 = vcmp.gt.f32.partialorder %v1285, 0.0
        %vm1464 = vcmp.gt.f32.partialorder %v1396, 0.0
        %vm1465 = vcmp.gt.f32.partialorder %v1398, 0.0
        %vm1466 = vcmp.gt.f32.partialorder %v1287, 0.0
        %vm1467 = vcmp.gt.f32.partialorder %v1289, 0.0
        %vm1468 = vcmp.gt.f32.partialorder %v1400, 0.0
        %vm1469 = vcmp.gt.f32.partialorder %v1402, 0.0
        %vm1470 = vcmp.gt.f32.partialorder %v1293, 0.0
        %vm1471 = vcmp.gt.f32.partialorder %v1295, 0.0
        %vm1472 = vcmp.gt.f32.partialorder %v1406, 0.0
        %vm1473 = vcmp.gt.f32.partialorder %v1408, 0.0
        %vm1474 = vcmp.gt.f32.partialorder %v1297, 0.0
        %vm1475 = vcmp.gt.f32.partialorder %v1299, 0.0
        %vm1476 = vcmp.gt.f32.partialorder %v1410, 0.0
        %vm1477 = vcmp.gt.f32.partialorder %v1412, 0.0
        %v1478 = vmul.f32 %v1223, 0.2
        %v1479 = vmul.f32 %v1225, 0.2
        %v1480 = vmul.f32 %v1336, 0.2
        %v1481 = vmul.f32 %v1338, 0.2
        %v1482 = vmul.f32 %v1227, 0.2
        %v1483 = vmul.f32 %v1229, 0.2
        %v1484 = vmul.f32 %v1340, 0.2
        %v1485 = vmul.f32 %v1342, 0.2
        %v1486 = vmul.f32 %v1233, 0.2
        %v1487 = vmul.f32 %v1235, 0.2
        %v1488 = vmul.f32 %v1346, 0.2
        %v1489 = vmul.f32 %v1348, 0.2
        %v1490 = vmul.f32 %v1237, 0.2
        %v1491 = vmul.f32 %v1239, 0.2
        %v1492 = vmul.f32 %v1350, 0.2
        %v1493 = vmul.f32 %v1352, 0.2
        %v1494 = vmul.f32 %v1243, 0.2
        %v1495 = vmul.f32 %v1245, 0.2
        %v1496 = vmul.f32 %v1356, 0.2
        %v1497 = vmul.f32 %v1358, 0.2
        %v1498 = vmul.f32 %v1247, 0.2
        %v1499 = vmul.f32 %v1249, 0.2
        %v1500 = vmul.f32 %v1360, 0.2
        %v1501 = vmul.f32 %v1362, 0.2
        %v1502 = vmul.f32 %v1253, 0.2
        %v1503 = vmul.f32 %v1255, 0.2
        %v1504 = vmul.f32 %v1366, 0.2
        %v1505 = vmul.f32 %v1368, 0.2
        %v1506 = vmul.f32 %v1257, 0.2
        %v1507 = vmul.f32 %v1259, 0.2
        %v1508 = vmul.f32 %v1370, 0.2
        %v1509 = vmul.f32 %v1372, 0.2
        %v1510 = vmul.f32 %v1263, 0.2
        %v1511 = vmul.f32 %v1265, 0.2
        %v1512 = vmul.f32 %v1376, 0.2
        %v1513 = vmul.f32 %v1378, 0.2
        %v1514 = vmul.f32 %v1267, 0.2
        %v1515 = vmul.f32 %v1269, 0.2
        %v1516 = vmul.f32 %v1380, 0.2
        %v1517 = vmul.f32 %v1382, 0.2
        %v1518 = vmul.f32 %v1273, 0.2
        %v1519 = vmul.f32 %v1275, 0.2
        %v1520 = vmul.f32 %v1386, 0.2
        %v1521 = vmul.f32 %v1388, 0.2
        %v1522 = vmul.f32 %v1277, 0.2
        %v1523 = vmul.f32 %v1279, 0.2
        %v1524 = vmul.f32 %v1390, 0.2
        %v1525 = vmul.f32 %v1392, 0.2
        %v1526 = vmul.f32 %v1283, 0.2
        %v1527 = vmul.f32 %v1285, 0.2
        %v1528 = vmul.f32 %v1396, 0.2
        %v1529 = vmul.f32 %v1398, 0.2
        %v1530 = vmul.f32 %v1287, 0.2
        %v1531 = vmul.f32 %v1289, 0.2
        %v1532 = vmul.f32 %v1400, 0.2
        %v1533 = vmul.f32 %v1402, 0.2
        %v1534 = vmul.f32 %v1293, 0.2
        %v1535 = vmul.f32 %v1295, 0.2
        %v1536 = vmul.f32 %v1406, 0.2
        %v1537 = vmul.f32 %v1408, 0.2
        %v1538 = vmul.f32 %v1297, 0.2
        %v1539 = vmul.f32 %v1299, 0.2
        %v1540 = vmul.f32 %v1410, 0.2
        %v1541 = vmul.f32 %v1412, 0.2
        %v1542 = vsel %vm1414, %v1223, %v1478
        %v1543 = vsel %vm1415, %v1225, %v1479
        %v1544 = vsel %vm1416, %v1336, %v1480
        %v1545 = vsel %vm1417, %v1338, %v1481
        %v1546 = vsel %vm1418, %v1227, %v1482
        %v1547 = vsel %vm1419, %v1229, %v1483
        %v1548 = vsel %vm1420, %v1340, %v1484
        %v1549 = vsel %vm1421, %v1342, %v1485
        %v1550 = vsel %vm1422, %v1233, %v1486
        %v1551 = vsel %vm1423, %v1235, %v1487
        %v1552 = vsel %vm1424, %v1346, %v1488
        %v1553 = vsel %vm1425, %v1348, %v1489
        %v1554 = vsel %vm1426, %v1237, %v1490
        %v1555 = vsel %vm1427, %v1239, %v1491
        %v1556 = vsel %vm1428, %v1350, %v1492
        %v1557 = vsel %vm1429, %v1352, %v1493
        %v1558 = vsel %vm1430, %v1243, %v1494
        %v1559 = vsel %vm1431, %v1245, %v1495
        %v1560 = vsel %vm1432, %v1356, %v1496
        %v1561 = vsel %vm1433, %v1358, %v1497
        %v1562 = vsel %vm1434, %v1247, %v1498
        %v1563 = vsel %vm1435, %v1249, %v1499
        %v1564 = vsel %vm1436, %v1360, %v1500
        %v1565 = vsel %vm1437, %v1362, %v1501
        %v1566 = vsel %vm1438, %v1253, %v1502
        %v1567 = vsel %vm1439, %v1255, %v1503
        %v1568 = vsel %vm1440, %v1366, %v1504
        %v1569 = vsel %vm1441, %v1368, %v1505
        %v1570 = vsel %vm1442, %v1257, %v1506
        %v1571 = vsel %vm1443, %v1259, %v1507
        %v1572 = vsel %vm1444, %v1370, %v1508
        %v1573 = vsel %vm1445, %v1372, %v1509
        %v1574 = vsel %vm1446, %v1263, %v1510
        %v1575 = vsel %vm1447, %v1265, %v1511
        %v1576 = vsel %vm1448, %v1376, %v1512
        %v1577 = vsel %vm1449, %v1378, %v1513
        %v1578 = vsel %vm1450, %v1267, %v1514
        %v1579 = vsel %vm1451, %v1269, %v1515
        %v1580 = vsel %vm1452, %v1380, %v1516
        %v1581 = vsel %vm1453, %v1382, %v1517
        %v1582 = vsel %vm1454, %v1273, %v1518
        %v1583 = vsel %vm1455, %v1275, %v1519
        %v1584 = vsel %vm1456, %v1386, %v1520
        %v1585 = vsel %vm1457, %v1388, %v1521
        %v1586 = vsel %vm1458, %v1277, %v1522
        %v1587 = vsel %vm1459, %v1279, %v1523
        %v1588 = vsel %vm1460, %v1390, %v1524
        %v1589 = vsel %vm1461, %v1392, %v1525
        %v1590 = vsel %vm1462, %v1283, %v1526
        %v1591 = vsel %vm1463, %v1285, %v1527
        %v1592 = vsel %vm1464, %v1396, %v1528
        %v1593 = vsel %vm1465, %v1398, %v1529
        %v1594 = vsel %vm1466, %v1287, %v1530
        %v1595 = vsel %vm1467, %v1289, %v1531
        %v1596 = vsel %vm1468, %v1400, %v1532
        %v1597 = vsel %vm1469, %v1402, %v1533
        %v1598 = vsel %vm1470, %v1293, %v1534
        %v1599 = vsel %vm1471, %v1295, %v1535
        %v1600 = vsel %vm1472, %v1406, %v1536
        %v1601 = vsel %vm1473, %v1408, %v1537
        %v1602 = vsel %vm1474, %v1297, %v1538
        %v1603 = vsel %vm1475, %v1299, %v1539
        %v1604 = vsel %vm1476, %v1410, %v1540
        %v1605 = vsel %vm1477, %v1412, %v1541
        %v1606 = vpack.c.bf16 %v1546, %v1542
        %v1607 = vpack.c.bf16 %v1547, %v1543
        %v1608 = vpack.c.bf16 %v1548, %v1544
        %v1609 = vpack.c.bf16 %v1549, %v1545
        %v1610 = vpack.c.bf16 %v1554, %v1550
        %v1611 = vpack.c.bf16 %v1555, %v1551
        %v1612 = vpack.c.bf16 %v1556, %v1552
        %v1613 = vpack.c.bf16 %v1557, %v1553
        %v1614 = vpack.c.bf16 %v1562, %v1558
        %v1615 = vpack.c.bf16 %v1563, %v1559
        %v1616 = vpack.c.bf16 %v1564, %v1560
        %v1617 = vpack.c.bf16 %v1565, %v1561
        %v1618 = vpack.c.bf16 %v1570, %v1566
        %v1619 = vpack.c.bf16 %v1571, %v1567
        %v1620 = vpack.c.bf16 %v1572, %v1568
        %v1621 = vpack.c.bf16 %v1573, %v1569
        %v1622 = vpack.c.bf16 %v1578, %v1574
        %v1623 = vpack.c.bf16 %v1579, %v1575
        %v1624 = vpack.c.bf16 %v1580, %v1576
        %v1625 = vpack.c.bf16 %v1581, %v1577
        %v1626 = vpack.c.bf16 %v1586, %v1582
        %v1627 = vpack.c.bf16 %v1587, %v1583
        %v1628 = vpack.c.bf16 %v1588, %v1584
        %v1629 = vpack.c.bf16 %v1589, %v1585
        %v1630 = vpack.c.bf16 %v1594, %v1590
        %v1631 = vpack.c.bf16 %v1595, %v1591
        %v1632 = vpack.c.bf16 %v1596, %v1592
        %v1633 = vpack.c.bf16 %v1597, %v1593
        %v1634 = vpack.c.bf16 %v1602, %v1598
        %v1635 = vpack.c.bf16 %v1603, %v1599
        %v1636 = vpack.c.bf16 %v1604, %v1600
        %v1637 = vpack.c.bf16 %v1605, %v1601
        %v1638 = vld [vmem:[#allocation10] sm:$0xff]
        %v1639 = vld [vmem:[#allocation10 + $0x8] sm:$0xff]
        %v1640 = vld [vmem:[#allocation10 + $0x10] sm:$0xff]
        %v1641 = vld [vmem:[#allocation10 + $0x18] sm:$0xff]
        %v1642 = vld [vmem:[#allocation10 + $0x20] sm:$0xff]
        %v1643 = vld [vmem:[#allocation10 + $0x28] sm:$0xff]
        %v1644 = vld [vmem:[#allocation10 + $0x30] sm:$0xff]
        %v1645 = vld [vmem:[#allocation10 + $0x38] sm:$0xff]
        %v1646 = vld [vmem:[#allocation10 + $0x40] sm:$0xff]
        %v1647 = vld [vmem:[#allocation10 + $0x48] sm:$0xff]
        %v1648 = vld [vmem:[#allocation10 + $0x50] sm:$0xff]
        %v1649 = vld [vmem:[#allocation10 + $0x58] sm:$0xff]
        %v1650 = vld [vmem:[#allocation10 + $0x60] sm:$0xff]
        %v1651 = vld [vmem:[#allocation10 + $0x68] sm:$0xff]
        %v1652 = vld [vmem:[#allocation10 + $0x70] sm:$0xff]
        %v1653 = vld [vmem:[#allocation10 + $0x78] sm:$0xff]
        %v1654 = vld [vmem:[#allocation10 + $0x80] sm:$0xff]
        %v1655 = vld [vmem:[#allocation10 + $0x88] sm:$0xff]
        %v1656 = vld [vmem:[#allocation10 + $0x90] sm:$0xff]
        %v1657 = vld [vmem:[#allocation10 + $0x98] sm:$0xff]
        %v1658 = vld [vmem:[#allocation10 + $0xa0] sm:$0xff]
        %v1659 = vld [vmem:[#allocation10 + $0xa8] sm:$0xff]
        %v1660 = vld [vmem:[#allocation10 + $0xb0] sm:$0xff]
        %v1661 = vld [vmem:[#allocation10 + $0xb8] sm:$0xff]
        %v1662 = vld [vmem:[#allocation10 + $0xc0] sm:$0xff]
        %v1663 = vld [vmem:[#allocation10 + $0xc8] sm:$0xff]
        %v1664 = vld [vmem:[#allocation10 + $0xd0] sm:$0xff]
        %v1665 = vld [vmem:[#allocation10 + $0xd8] sm:$0xff]
        %v1666 = vld [vmem:[#allocation10 + $0xe0] sm:$0xff]
        %v1667 = vld [vmem:[#allocation10 + $0xe8] sm:$0xff]
        %v1668 = vld [vmem:[#allocation10 + $0xf0] sm:$0xff]
        %v1669 = vld [vmem:[#allocation10 + $0xf8] sm:$0xff]
        %v1670 = vld [vmem:[#allocation10 + $0x100] sm:$0xff]
        %v1671 = vld [vmem:[#allocation10 + $0x108] sm:$0xff]
        %v1672 = vld [vmem:[#allocation10 + $0x110] sm:$0xff]
        %v1673 = vld [vmem:[#allocation10 + $0x118] sm:$0xff]
        %v1674 = vld [vmem:[#allocation10 + $0x120] sm:$0xff]
        %v1675 = vld [vmem:[#allocation10 + $0x128] sm:$0xff]
        %v1676 = vld [vmem:[#allocation10 + $0x130] sm:$0xff]
        %v1677 = vld [vmem:[#allocation10 + $0x138] sm:$0xff]
        %v1678 = vld [vmem:[#allocation10 + $0x140] sm:$0xff]
        %v1679 = vld [vmem:[#allocation10 + $0x148] sm:$0xff]
        %v1680 = vld [vmem:[#allocation10 + $0x150] sm:$0xff]
        %v1681 = vld [vmem:[#allocation10 + $0x158] sm:$0xff]
        %v1682 = vld [vmem:[#allocation10 + $0x160] sm:$0xff]
        %v1683 = vld [vmem:[#allocation10 + $0x168] sm:$0xff]
        %v1684 = vld [vmem:[#allocation10 + $0x170] sm:$0xff]
        %v1685 = vld [vmem:[#allocation10 + $0x178] sm:$0xff]
        %v1686 = vld [vmem:[#allocation10 + $0x180] sm:$0xff]
        %v1687 = vld [vmem:[#allocation10 + $0x188] sm:$0xff]
        %v1688 = vld [vmem:[#allocation10 + $0x190] sm:$0xff]
        %v1689 = vld [vmem:[#allocation10 + $0x198] sm:$0xff]
        %v1690 = vld [vmem:[#allocation10 + $0x1a0] sm:$0xff]
        %v1691 = vld [vmem:[#allocation10 + $0x1a8] sm:$0xff]
        %v1692 = vld [vmem:[#allocation10 + $0x1b0] sm:$0xff]
        %v1693 = vld [vmem:[#allocation10 + $0x1b8] sm:$0xff]
        %v1694 = vld [vmem:[#allocation10 + $0x1c0] sm:$0xff]
        %v1695 = vld [vmem:[#allocation10 + $0x1c8] sm:$0xff]
        %v1696 = vld [vmem:[#allocation10 + $0x1d0] sm:$0xff]
        %v1697 = vld [vmem:[#allocation10 + $0x1d8] sm:$0xff]
        %v1698 = vld [vmem:[#allocation10 + $0x1e0] sm:$0xff]
        %v1699 = vld [vmem:[#allocation10 + $0x1e8] sm:$0xff]
        %v1700 = vld [vmem:[#allocation10 + $0x1f0] sm:$0xff]
        %v1701 = vld [vmem:[#allocation10 + $0x1f8] sm:$0xff]
        %v1702 = vld [vmem:[#allocation10 + $0x200] sm:$0xff]
        %v1703 = vld [vmem:[#allocation10 + $0x208] sm:$0xff]
        %v1704 = vld [vmem:[#allocation10 + $0x210] sm:$0xff]
        %v1705 = vld [vmem:[#allocation10 + $0x218] sm:$0xff]
        %v1706 = vld [vmem:[#allocation10 + $0x220] sm:$0xff]
        %v1707 = vld [vmem:[#allocation10 + $0x228] sm:$0xff]
        %v1708 = vld [vmem:[#allocation10 + $0x230] sm:$0xff]
        %v1709 = vld [vmem:[#allocation10 + $0x238] sm:$0xff]
        %v1710 = vld [vmem:[#allocation10 + $0x240] sm:$0xff]
        %v1711 = vld [vmem:[#allocation10 + $0x248] sm:$0xff]
        %v1712 = vld [vmem:[#allocation10 + $0x250] sm:$0xff]
        %v1713 = vld [vmem:[#allocation10 + $0x258] sm:$0xff]
        %v1714 = vld [vmem:[#allocation10 + $0x260] sm:$0xff]
        %v1715 = vld [vmem:[#allocation10 + $0x268] sm:$0xff]
        %v1716 = vld [vmem:[#allocation10 + $0x270] sm:$0xff]
        %v1717 = vld [vmem:[#allocation10 + $0x278] sm:$0xff]
        %v1718 = vld [vmem:[#allocation10 + $0x280] sm:$0xff]
        %v1719 = vld [vmem:[#allocation10 + $0x288] sm:$0xff]
        %v1720 = vld [vmem:[#allocation10 + $0x290] sm:$0xff]
        %v1721 = vld [vmem:[#allocation10 + $0x298] sm:$0xff]
        %v1722 = vld [vmem:[#allocation10 + $0x2a0] sm:$0xff]
        %v1723 = vld [vmem:[#allocation10 + $0x2a8] sm:$0xff]
        %v1724 = vld [vmem:[#allocation10 + $0x2b0] sm:$0xff]
        %v1725 = vld [vmem:[#allocation10 + $0x2b8] sm:$0xff]
        %v1726 = vld [vmem:[#allocation10 + $0x2c0] sm:$0xff]
        %v1727 = vld [vmem:[#allocation10 + $0x2c8] sm:$0xff]
        %v1728 = vld [vmem:[#allocation10 + $0x2d0] sm:$0xff]
        %v1729 = vld [vmem:[#allocation10 + $0x2d8] sm:$0xff]
        %v1730 = vld [vmem:[#allocation10 + $0x2e0] sm:$0xff]
        %v1731 = vld [vmem:[#allocation10 + $0x2e8] sm:$0xff]
        %v1732 = vld [vmem:[#allocation10 + $0x2f0] sm:$0xff]
        %v1733 = vld [vmem:[#allocation10 + $0x2f8] sm:$0xff]
        %v1734 = vld [vmem:[#allocation10 + $0x300] sm:$0xff]
        %v1735 = vld [vmem:[#allocation10 + $0x308] sm:$0xff]
        %v1736 = vld [vmem:[#allocation10 + $0x310] sm:$0xff]
        %v1737 = vld [vmem:[#allocation10 + $0x318] sm:$0xff]
        %v1738 = vld [vmem:[#allocation10 + $0x320] sm:$0xff]
        %v1739 = vld [vmem:[#allocation10 + $0x328] sm:$0xff]
        %v1740 = vld [vmem:[#allocation10 + $0x330] sm:$0xff]
        %v1741 = vld [vmem:[#allocation10 + $0x338] sm:$0xff]
        %v1742 = vld [vmem:[#allocation10 + $0x340] sm:$0xff]
        %v1743 = vld [vmem:[#allocation10 + $0x348] sm:$0xff]
        %v1744 = vld [vmem:[#allocation10 + $0x350] sm:$0xff]
        %v1745 = vld [vmem:[#allocation10 + $0x358] sm:$0xff]
        %v1746 = vld [vmem:[#allocation10 + $0x360] sm:$0xff]
        %v1747 = vld [vmem:[#allocation10 + $0x368] sm:$0xff]
        %v1748 = vld [vmem:[#allocation10 + $0x370] sm:$0xff]
        %v1749 = vld [vmem:[#allocation10 + $0x378] sm:$0xff]
        %v1750 = vld [vmem:[#allocation10 + $0x380] sm:$0xff]
        %v1751 = vld [vmem:[#allocation10 + $0x388] sm:$0xff]
        %v1752 = vld [vmem:[#allocation10 + $0x390] sm:$0xff]
        %v1753 = vld [vmem:[#allocation10 + $0x398] sm:$0xff]
        %v1754 = vld [vmem:[#allocation10 + $0x3a0] sm:$0xff]
        %v1755 = vld [vmem:[#allocation10 + $0x3a8] sm:$0xff]
        %v1756 = vld [vmem:[#allocation10 + $0x3b0] sm:$0xff]
        %v1757 = vld [vmem:[#allocation10 + $0x3b8] sm:$0xff]
        %v1758 = vld [vmem:[#allocation10 + $0x3c0] sm:$0xff]
        %v1759 = vld [vmem:[#allocation10 + $0x3c8] sm:$0xff]
        %v1760 = vld [vmem:[#allocation10 + $0x3d0] sm:$0xff]
        %v1761 = vld [vmem:[#allocation10 + $0x3d8] sm:$0xff]
        %v1762 = vld [vmem:[#allocation10 + $0x3e0] sm:$0xff]
        %v1763 = vld [vmem:[#allocation10 + $0x3e8] sm:$0xff]
        %v1764 = vld [vmem:[#allocation10 + $0x3f0] sm:$0xff]
        %v1765 = vld [vmem:[#allocation10 + $0x3f8] sm:$0xff]
        %v1766 = vld [vmem:[#allocation10 + $0x400] sm:$0xff]
        %v1767 = vld [vmem:[#allocation10 + $0x408] sm:$0xff]
        %v1768 = vld [vmem:[#allocation10 + $0x410] sm:$0xff]
        %v1769 = vld [vmem:[#allocation10 + $0x418] sm:$0xff]
        %v1770 = vld [vmem:[#allocation10 + $0x420] sm:$0xff]
        %v1771 = vld [vmem:[#allocation10 + $0x428] sm:$0xff]
        %v1772 = vld [vmem:[#allocation10 + $0x430] sm:$0xff]
        %v1773 = vld [vmem:[#allocation10 + $0x438] sm:$0xff]
        %v1774 = vld [vmem:[#allocation10 + $0x440] sm:$0xff]
        %v1775 = vld [vmem:[#allocation10 + $0x448] sm:$0xff]
        %v1776 = vld [vmem:[#allocation10 + $0x450] sm:$0xff]
        %v1777 = vld [vmem:[#allocation10 + $0x458] sm:$0xff]
        %v1778 = vld [vmem:[#allocation10 + $0x460] sm:$0xff]
        %v1779 = vld [vmem:[#allocation10 + $0x468] sm:$0xff]
        %v1780 = vld [vmem:[#allocation10 + $0x470] sm:$0xff]
        %v1781 = vld [vmem:[#allocation10 + $0x478] sm:$0xff]
        %v1782 = vld [vmem:[#allocation10 + $0x480] sm:$0xff]
        %v1783 = vld [vmem:[#allocation10 + $0x488] sm:$0xff]
        %v1784 = vld [vmem:[#allocation10 + $0x490] sm:$0xff]
        %v1785 = vld [vmem:[#allocation10 + $0x498] sm:$0xff]
        %v1786 = vld [vmem:[#allocation10 + $0x4a0] sm:$0xff]
        %v1787 = vld [vmem:[#allocation10 + $0x4a8] sm:$0xff]
        %v1788 = vld [vmem:[#allocation10 + $0x4b0] sm:$0xff]
        %v1789 = vld [vmem:[#allocation10 + $0x4b8] sm:$0xff]
        %v1790 = vld [vmem:[#allocation10 + $0x4c0] sm:$0xff]
        %v1791 = vld [vmem:[#allocation10 + $0x4c8] sm:$0xff]
        %v1792 = vld [vmem:[#allocation10 + $0x4d0] sm:$0xff]
        %v1793 = vld [vmem:[#allocation10 + $0x4d8] sm:$0xff]
        %v1794 = vld [vmem:[#allocation10 + $0x4e0] sm:$0xff]
        %v1795 = vld [vmem:[#allocation10 + $0x4e8] sm:$0xff]
        %v1796 = vld [vmem:[#allocation10 + $0x4f0] sm:$0xff]
        %v1797 = vld [vmem:[#allocation10 + $0x4f8] sm:$0xff]
        %v1798 = vld [vmem:[#allocation10 + $0x500] sm:$0xff]
        %v1799 = vld [vmem:[#allocation10 + $0x508] sm:$0xff]
        %v1800 = vld [vmem:[#allocation10 + $0x510] sm:$0xff]
        %v1801 = vld [vmem:[#allocation10 + $0x518] sm:$0xff]
        %v1802 = vld [vmem:[#allocation10 + $0x520] sm:$0xff]
        %v1803 = vld [vmem:[#allocation10 + $0x528] sm:$0xff]
        %v1804 = vld [vmem:[#allocation10 + $0x530] sm:$0xff]
        %v1805 = vld [vmem:[#allocation10 + $0x538] sm:$0xff]
        %v1806 = vld [vmem:[#allocation10 + $0x540] sm:$0xff]
        %v1807 = vld [vmem:[#allocation10 + $0x548] sm:$0xff]
        %v1808 = vld [vmem:[#allocation10 + $0x550] sm:$0xff]
        %v1809 = vld [vmem:[#allocation10 + $0x558] sm:$0xff]
        %v1810 = vld [vmem:[#allocation10 + $0x560] sm:$0xff]
        %v1811 = vld [vmem:[#allocation10 + $0x568] sm:$0xff]
        %v1812 = vld [vmem:[#allocation10 + $0x570] sm:$0xff]
        %v1813 = vld [vmem:[#allocation10 + $0x578] sm:$0xff]
        %v1814 = vld [vmem:[#allocation10 + $0x580] sm:$0xff]
        %v1815 = vld [vmem:[#allocation10 + $0x588] sm:$0xff]
        %v1816 = vld [vmem:[#allocation10 + $0x590] sm:$0xff]
        %v1817 = vld [vmem:[#allocation10 + $0x598] sm:$0xff]
        %v1818 = vld [vmem:[#allocation10 + $0x5a0] sm:$0xff]
        %v1819 = vld [vmem:[#allocation10 + $0x5a8] sm:$0xff]
        %v1820 = vld [vmem:[#allocation10 + $0x5b0] sm:$0xff]
        %v1821 = vld [vmem:[#allocation10 + $0x5b8] sm:$0xff]
        %v1822 = vld [vmem:[#allocation10 + $0x5c0] sm:$0xff]
        %v1823 = vld [vmem:[#allocation10 + $0x5c8] sm:$0xff]
        %v1824 = vld [vmem:[#allocation10 + $0x5d0] sm:$0xff]
        %v1825 = vld [vmem:[#allocation10 + $0x5d8] sm:$0xff]
        %v1826 = vld [vmem:[#allocation10 + $0x5e0] sm:$0xff]
        %v1827 = vld [vmem:[#allocation10 + $0x5e8] sm:$0xff]
        %v1828 = vld [vmem:[#allocation10 + $0x5f0] sm:$0xff]
        %v1829 = vld [vmem:[#allocation10 + $0x5f8] sm:$0xff]
        %v1830 = vld [vmem:[#allocation10 + $0x600] sm:$0xff]
        %v1831 = vld [vmem:[#allocation10 + $0x608] sm:$0xff]
        %v1832 = vld [vmem:[#allocation10 + $0x610] sm:$0xff]
        %v1833 = vld [vmem:[#allocation10 + $0x618] sm:$0xff]
        %v1834 = vld [vmem:[#allocation10 + $0x620] sm:$0xff]
        %v1835 = vld [vmem:[#allocation10 + $0x628] sm:$0xff]
        %v1836 = vld [vmem:[#allocation10 + $0x630] sm:$0xff]
        %v1837 = vld [vmem:[#allocation10 + $0x638] sm:$0xff]
        %v1838 = vld [vmem:[#allocation10 + $0x640] sm:$0xff]
        %v1839 = vld [vmem:[#allocation10 + $0x648] sm:$0xff]
        %v1840 = vld [vmem:[#allocation10 + $0x650] sm:$0xff]
        %v1841 = vld [vmem:[#allocation10 + $0x658] sm:$0xff]
        %v1842 = vld [vmem:[#allocation10 + $0x660] sm:$0xff]
        %v1843 = vld [vmem:[#allocation10 + $0x668] sm:$0xff]
        %v1844 = vld [vmem:[#allocation10 + $0x670] sm:$0xff]
        %v1845 = vld [vmem:[#allocation10 + $0x678] sm:$0xff]
        %v1846 = vld [vmem:[#allocation10 + $0x680] sm:$0xff]
        %v1847 = vld [vmem:[#allocation10 + $0x688] sm:$0xff]
        %v1848 = vld [vmem:[#allocation10 + $0x690] sm:$0xff]
        %v1849 = vld [vmem:[#allocation10 + $0x698] sm:$0xff]
        %v1850 = vld [vmem:[#allocation10 + $0x6a0] sm:$0xff]
        %v1851 = vld [vmem:[#allocation10 + $0x6a8] sm:$0xff]
        %v1852 = vld [vmem:[#allocation10 + $0x6b0] sm:$0xff]
        %v1853 = vld [vmem:[#allocation10 + $0x6b8] sm:$0xff]
        %v1854 = vld [vmem:[#allocation10 + $0x6c0] sm:$0xff]
        %v1855 = vld [vmem:[#allocation10 + $0x6c8] sm:$0xff]
        %v1856 = vld [vmem:[#allocation10 + $0x6d0] sm:$0xff]
        %v1857 = vld [vmem:[#allocation10 + $0x6d8] sm:$0xff]
        %v1858 = vld [vmem:[#allocation10 + $0x6e0] sm:$0xff]
        %v1859 = vld [vmem:[#allocation10 + $0x6e8] sm:$0xff]
        %v1860 = vld [vmem:[#allocation10 + $0x6f0] sm:$0xff]
        %v1861 = vld [vmem:[#allocation10 + $0x6f8] sm:$0xff]
        %v1862 = vld [vmem:[#allocation10 + $0x700] sm:$0xff]
        %v1863 = vld [vmem:[#allocation10 + $0x708] sm:$0xff]
        %v1864 = vld [vmem:[#allocation10 + $0x710] sm:$0xff]
        %v1865 = vld [vmem:[#allocation10 + $0x718] sm:$0xff]
        %v1866 = vld [vmem:[#allocation10 + $0x720] sm:$0xff]
        %v1867 = vld [vmem:[#allocation10 + $0x728] sm:$0xff]
        %v1868 = vld [vmem:[#allocation10 + $0x730] sm:$0xff]
        %v1869 = vld [vmem:[#allocation10 + $0x738] sm:$0xff]
        %v1870 = vld [vmem:[#allocation10 + $0x740] sm:$0xff]
        %v1871 = vld [vmem:[#allocation10 + $0x748] sm:$0xff]
        %v1872 = vld [vmem:[#allocation10 + $0x750] sm:$0xff]
        %v1873 = vld [vmem:[#allocation10 + $0x758] sm:$0xff]
        %v1874 = vld [vmem:[#allocation10 + $0x760] sm:$0xff]
        %v1875 = vld [vmem:[#allocation10 + $0x768] sm:$0xff]
        %v1876 = vld [vmem:[#allocation10 + $0x770] sm:$0xff]
        %v1877 = vld [vmem:[#allocation10 + $0x778] sm:$0xff]
        %v1878 = vld [vmem:[#allocation10 + $0x780] sm:$0xff]
        %v1879 = vld [vmem:[#allocation10 + $0x788] sm:$0xff]
        %v1880 = vld [vmem:[#allocation10 + $0x790] sm:$0xff]
        %v1881 = vld [vmem:[#allocation10 + $0x798] sm:$0xff]
        %v1882 = vld [vmem:[#allocation10 + $0x7a0] sm:$0xff]
        %v1883 = vld [vmem:[#allocation10 + $0x7a8] sm:$0xff]
        %v1884 = vld [vmem:[#allocation10 + $0x7b0] sm:$0xff]
        %v1885 = vld [vmem:[#allocation10 + $0x7b8] sm:$0xff]
        %v1886 = vld [vmem:[#allocation10 + $0x7c0] sm:$0xff]
        %v1887 = vld [vmem:[#allocation10 + $0x7c8] sm:$0xff]
        %v1888 = vld [vmem:[#allocation10 + $0x7d0] sm:$0xff]
        %v1889 = vld [vmem:[#allocation10 + $0x7d8] sm:$0xff]
        %v1890 = vld [vmem:[#allocation10 + $0x7e0] sm:$0xff]
        %v1891 = vld [vmem:[#allocation10 + $0x7e8] sm:$0xff]
        %v1892 = vld [vmem:[#allocation10 + $0x7f0] sm:$0xff]
        %v1893 = vld [vmem:[#allocation10 + $0x7f8] sm:$0xff]
        %v1894 = vld [vmem:[%s6] sm:$0xff]
        %v1896 = vlaneseq
        %v1897 = vshrl.u32 %v1896, 7
        %v1898 = vsub.s32 0, %v1897
        %v1899 = vrot.slane %v1894, %v1898
        %v1900 = vlaneseq
        %v1901 = vshrl.u32 %v1900, 7
        %v1902 = vsub.s32 1, %v1901
        %v1903 = vrot.slane %v1894, %v1902
        %v1904 = vlaneseq
        %v1905 = vshrl.u32 %v1904, 7
        %v1906 = vsub.s32 2, %v1905
        %v1907 = vrot.slane %v1894, %v1906
        %v1908 = vlaneseq
        %v1909 = vshrl.u32 %v1908, 7
        %v1910 = vsub.s32 3, %v1909
        %v1911 = vrot.slane %v1894, %v1910
        %v1912 = vlaneseq
        %v1913 = vshrl.u32 %v1912, 7
        %v1914 = vsub.s32 4, %v1913
        %v1915 = vrot.slane %v1894, %v1914
        %v1916 = vlaneseq
        %v1917 = vshrl.u32 %v1916, 7
        %v1918 = vsub.s32 5, %v1917
        %v1919 = vrot.slane %v1894, %v1918
        %v1920 = vlaneseq
        %v1921 = vshrl.u32 %v1920, 7
        %v1922 = vsub.s32 6, %v1921
        %v1923 = vrot.slane %v1894, %v1922
        %v1924 = vlaneseq
        %v1925 = vshrl.u32 %v1924, 7
        %v1926 = vsub.s32 7, %v1925
        %v1927 = vrot.slane %v1894, %v1926
        %v2192 = vunpack.c.l.b16 %v1638
        %v2193 = vunpack.c.h.b16 %v1638
        %v2194 = vunpack.c.l.b16 %v1639
        %v2195 = vunpack.c.h.b16 %v1639
        %v2196 = vunpack.c.l.b16 %v1640
        %v2197 = vunpack.c.h.b16 %v1640
        %v2198 = vunpack.c.l.b16 %v1641
        %v2199 = vunpack.c.h.b16 %v1641
        %v2200 = vunpack.c.l.b16 %v1642
        %v2201 = vunpack.c.h.b16 %v1642
        %v2202 = vunpack.c.l.b16 %v1643
        %v2203 = vunpack.c.h.b16 %v1643
        %v2204 = vunpack.c.l.b16 %v1644
        %v2205 = vunpack.c.h.b16 %v1644
        %v2206 = vunpack.c.l.b16 %v1645
        %v2207 = vunpack.c.h.b16 %v1645
        %v2208 = vunpack.c.l.b16 %v1646
        %v2209 = vunpack.c.h.b16 %v1646
        %v2210 = vunpack.c.l.b16 %v1647
        %v2211 = vunpack.c.h.b16 %v1647
        %v2212 = vunpack.c.l.b16 %v1648
        %v2213 = vunpack.c.h.b16 %v1648
        %v2214 = vunpack.c.l.b16 %v1649
        %v2215 = vunpack.c.h.b16 %v1649
        %v2216 = vunpack.c.l.b16 %v1650
        %v2217 = vunpack.c.h.b16 %v1650
        %v2218 = vunpack.c.l.b16 %v1651
        %v2219 = vunpack.c.h.b16 %v1651
        %v2220 = vunpack.c.l.b16 %v1652
        %v2221 = vunpack.c.h.b16 %v1652
        %v2222 = vunpack.c.l.b16 %v1653
        %v2223 = vunpack.c.h.b16 %v1653
        %v2224 = vunpack.c.l.b16 %v1654
        %v2225 = vunpack.c.h.b16 %v1654
        %v2226 = vunpack.c.l.b16 %v1655
        %v2227 = vunpack.c.h.b16 %v1655
        %v2228 = vunpack.c.l.b16 %v1656
        %v2229 = vunpack.c.h.b16 %v1656
        %v2230 = vunpack.c.l.b16 %v1657
        %v2231 = vunpack.c.h.b16 %v1657
        %v2232 = vunpack.c.l.b16 %v1658
        %v2233 = vunpack.c.h.b16 %v1658
        %v2234 = vunpack.c.l.b16 %v1659
        %v2235 = vunpack.c.h.b16 %v1659
        %v2236 = vunpack.c.l.b16 %v1660
        %v2237 = vunpack.c.h.b16 %v1660
        %v2238 = vunpack.c.l.b16 %v1661
        %v2239 = vunpack.c.h.b16 %v1661
        %v2240 = vunpack.c.l.b16 %v1662
        %v2241 = vunpack.c.h.b16 %v1662
        %v2242 = vunpack.c.l.b16 %v1663
        %v2243 = vunpack.c.h.b16 %v1663
        %v2244 = vunpack.c.l.b16 %v1664
        %v2245 = vunpack.c.h.b16 %v1664
        %v2246 = vunpack.c.l.b16 %v1665
        %v2247 = vunpack.c.h.b16 %v1665
        %v2248 = vunpack.c.l.b16 %v1666
        %v2249 = vunpack.c.h.b16 %v1666
        %v2250 = vunpack.c.l.b16 %v1667
        %v2251 = vunpack.c.h.b16 %v1667
        %v2252 = vunpack.c.l.b16 %v1668
        %v2253 = vunpack.c.h.b16 %v1668
        %v2254 = vunpack.c.l.b16 %v1669
        %v2255 = vunpack.c.h.b16 %v1669
        %v2256 = vunpack.c.l.b16 %v1670
        %v2257 = vunpack.c.h.b16 %v1670
        %v2258 = vunpack.c.l.b16 %v1671
        %v2259 = vunpack.c.h.b16 %v1671
        %v2260 = vunpack.c.l.b16 %v1672
        %v2261 = vunpack.c.h.b16 %v1672
        %v2262 = vunpack.c.l.b16 %v1673
        %v2263 = vunpack.c.h.b16 %v1673
        %v2264 = vunpack.c.l.b16 %v1674
        %v2265 = vunpack.c.h.b16 %v1674
        %v2266 = vunpack.c.l.b16 %v1675
        %v2267 = vunpack.c.h.b16 %v1675
        %v2268 = vunpack.c.l.b16 %v1676
        %v2269 = vunpack.c.h.b16 %v1676
        %v2270 = vunpack.c.l.b16 %v1677
        %v2271 = vunpack.c.h.b16 %v1677
        %v2272 = vunpack.c.l.b16 %v1678
        %v2273 = vunpack.c.h.b16 %v1678
        %v2274 = vunpack.c.l.b16 %v1679
        %v2275 = vunpack.c.h.b16 %v1679
        %v2276 = vunpack.c.l.b16 %v1680
        %v2277 = vunpack.c.h.b16 %v1680
        %v2278 = vunpack.c.l.b16 %v1681
        %v2279 = vunpack.c.h.b16 %v1681
        %v2280 = vunpack.c.l.b16 %v1682
        %v2281 = vunpack.c.h.b16 %v1682
        %v2282 = vunpack.c.l.b16 %v1683
        %v2283 = vunpack.c.h.b16 %v1683
        %v2284 = vunpack.c.l.b16 %v1684
        %v2285 = vunpack.c.h.b16 %v1684
        %v2286 = vunpack.c.l.b16 %v1685
        %v2287 = vunpack.c.h.b16 %v1685
        %v2288 = vunpack.c.l.b16 %v1686
        %v2289 = vunpack.c.h.b16 %v1686
        %v2290 = vunpack.c.l.b16 %v1687
        %v2291 = vunpack.c.h.b16 %v1687
        %v2292 = vunpack.c.l.b16 %v1688
        %v2293 = vunpack.c.h.b16 %v1688
        %v2294 = vunpack.c.l.b16 %v1689
        %v2295 = vunpack.c.h.b16 %v1689
        %v2296 = vunpack.c.l.b16 %v1690
        %v2297 = vunpack.c.h.b16 %v1690
        %v2298 = vunpack.c.l.b16 %v1691
        %v2299 = vunpack.c.h.b16 %v1691
        %v2300 = vunpack.c.l.b16 %v1692
        %v2301 = vunpack.c.h.b16 %v1692
        %v2302 = vunpack.c.l.b16 %v1693
        %v2303 = vunpack.c.h.b16 %v1693
        %v2304 = vunpack.c.l.b16 %v1694
        %v2305 = vunpack.c.h.b16 %v1694
        %v2306 = vunpack.c.l.b16 %v1695
        %v2307 = vunpack.c.h.b16 %v1695
        %v2308 = vunpack.c.l.b16 %v1696
        %v2309 = vunpack.c.h.b16 %v1696
        %v2310 = vunpack.c.l.b16 %v1697
        %v2311 = vunpack.c.h.b16 %v1697
        %v2312 = vunpack.c.l.b16 %v1698
        %v2313 = vunpack.c.h.b16 %v1698
        %v2314 = vunpack.c.l.b16 %v1699
        %v2315 = vunpack.c.h.b16 %v1699
        %v2316 = vunpack.c.l.b16 %v1700
        %v2317 = vunpack.c.h.b16 %v1700
        %v2318 = vunpack.c.l.b16 %v1701
        %v2319 = vunpack.c.h.b16 %v1701
        %v2320 = vunpack.c.l.b16 %v1702
        %v2321 = vunpack.c.h.b16 %v1702
        %v2322 = vunpack.c.l.b16 %v1703
        %v2323 = vunpack.c.h.b16 %v1703
        %v2324 = vunpack.c.l.b16 %v1704
        %v2325 = vunpack.c.h.b16 %v1704
        %v2326 = vunpack.c.l.b16 %v1705
        %v2327 = vunpack.c.h.b16 %v1705
        %v2328 = vunpack.c.l.b16 %v1706
        %v2329 = vunpack.c.h.b16 %v1706
        %v2330 = vunpack.c.l.b16 %v1707
        %v2331 = vunpack.c.h.b16 %v1707
        %v2332 = vunpack.c.l.b16 %v1708
        %v2333 = vunpack.c.h.b16 %v1708
        %v2334 = vunpack.c.l.b16 %v1709
        %v2335 = vunpack.c.h.b16 %v1709
        %v2336 = vunpack.c.l.b16 %v1710
        %v2337 = vunpack.c.h.b16 %v1710
        %v2338 = vunpack.c.l.b16 %v1711
        %v2339 = vunpack.c.h.b16 %v1711
        %v2340 = vunpack.c.l.b16 %v1712
        %v2341 = vunpack.c.h.b16 %v1712
        %v2342 = vunpack.c.l.b16 %v1713
        %v2343 = vunpack.c.h.b16 %v1713
        %v2344 = vunpack.c.l.b16 %v1714
        %v2345 = vunpack.c.h.b16 %v1714
        %v2346 = vunpack.c.l.b16 %v1715
        %v2347 = vunpack.c.h.b16 %v1715
        %v2348 = vunpack.c.l.b16 %v1716
        %v2349 = vunpack.c.h.b16 %v1716
        %v2350 = vunpack.c.l.b16 %v1717
        %v2351 = vunpack.c.h.b16 %v1717
        %v2352 = vunpack.c.l.b16 %v1718
        %v2353 = vunpack.c.h.b16 %v1718
        %v2354 = vunpack.c.l.b16 %v1719
        %v2355 = vunpack.c.h.b16 %v1719
        %v2356 = vunpack.c.l.b16 %v1720
        %v2357 = vunpack.c.h.b16 %v1720
        %v2358 = vunpack.c.l.b16 %v1721
        %v2359 = vunpack.c.h.b16 %v1721
        %v2360 = vunpack.c.l.b16 %v1722
        %v2361 = vunpack.c.h.b16 %v1722
        %v2362 = vunpack.c.l.b16 %v1723
        %v2363 = vunpack.c.h.b16 %v1723
        %v2364 = vunpack.c.l.b16 %v1724
        %v2365 = vunpack.c.h.b16 %v1724
        %v2366 = vunpack.c.l.b16 %v1725
        %v2367 = vunpack.c.h.b16 %v1725
        %v2368 = vunpack.c.l.b16 %v1726
        %v2369 = vunpack.c.h.b16 %v1726
        %v2370 = vunpack.c.l.b16 %v1727
        %v2371 = vunpack.c.h.b16 %v1727
        %v2372 = vunpack.c.l.b16 %v1728
        %v2373 = vunpack.c.h.b16 %v1728
        %v2374 = vunpack.c.l.b16 %v1729
        %v2375 = vunpack.c.h.b16 %v1729
        %v2376 = vunpack.c.l.b16 %v1730
        %v2377 = vunpack.c.h.b16 %v1730
        %v2378 = vunpack.c.l.b16 %v1731
        %v2379 = vunpack.c.h.b16 %v1731
        %v2380 = vunpack.c.l.b16 %v1732
        %v2381 = vunpack.c.h.b16 %v1732
        %v2382 = vunpack.c.l.b16 %v1733
        %v2383 = vunpack.c.h.b16 %v1733
        %v2384 = vunpack.c.l.b16 %v1734
        %v2385 = vunpack.c.h.b16 %v1734
        %v2386 = vunpack.c.l.b16 %v1735
        %v2387 = vunpack.c.h.b16 %v1735
        %v2388 = vunpack.c.l.b16 %v1736
        %v2389 = vunpack.c.h.b16 %v1736
        %v2390 = vunpack.c.l.b16 %v1737
        %v2391 = vunpack.c.h.b16 %v1737
        %v2392 = vunpack.c.l.b16 %v1738
        %v2393 = vunpack.c.h.b16 %v1738
        %v2394 = vunpack.c.l.b16 %v1739
        %v2395 = vunpack.c.h.b16 %v1739
        %v2396 = vunpack.c.l.b16 %v1740
        %v2397 = vunpack.c.h.b16 %v1740
        %v2398 = vunpack.c.l.b16 %v1741
        %v2399 = vunpack.c.h.b16 %v1741
        %v2400 = vunpack.c.l.b16 %v1742
        %v2401 = vunpack.c.h.b16 %v1742
        %v2402 = vunpack.c.l.b16 %v1743
        %v2403 = vunpack.c.h.b16 %v1743
        %v2404 = vunpack.c.l.b16 %v1744
        %v2405 = vunpack.c.h.b16 %v1744
        %v2406 = vunpack.c.l.b16 %v1745
        %v2407 = vunpack.c.h.b16 %v1745
        %v2408 = vunpack.c.l.b16 %v1746
        %v2409 = vunpack.c.h.b16 %v1746
        %v2410 = vunpack.c.l.b16 %v1747
        %v2411 = vunpack.c.h.b16 %v1747
        %v2412 = vunpack.c.l.b16 %v1748
        %v2413 = vunpack.c.h.b16 %v1748
        %v2414 = vunpack.c.l.b16 %v1749
        %v2415 = vunpack.c.h.b16 %v1749
        %v2416 = vunpack.c.l.b16 %v1750
        %v2417 = vunpack.c.h.b16 %v1750
        %v2418 = vunpack.c.l.b16 %v1751
        %v2419 = vunpack.c.h.b16 %v1751
        %v2420 = vunpack.c.l.b16 %v1752
        %v2421 = vunpack.c.h.b16 %v1752
        %v2422 = vunpack.c.l.b16 %v1753
        %v2423 = vunpack.c.h.b16 %v1753
        %v2424 = vunpack.c.l.b16 %v1754
        %v2425 = vunpack.c.h.b16 %v1754
        %v2426 = vunpack.c.l.b16 %v1755
        %v2427 = vunpack.c.h.b16 %v1755
        %v2428 = vunpack.c.l.b16 %v1756
        %v2429 = vunpack.c.h.b16 %v1756
        %v2430 = vunpack.c.l.b16 %v1757
        %v2431 = vunpack.c.h.b16 %v1757
        %v2432 = vunpack.c.l.b16 %v1758
        %v2433 = vunpack.c.h.b16 %v1758
        %v2434 = vunpack.c.l.b16 %v1759
        %v2435 = vunpack.c.h.b16 %v1759
        %v2436 = vunpack.c.l.b16 %v1760
        %v2437 = vunpack.c.h.b16 %v1760
        %v2438 = vunpack.c.l.b16 %v1761
        %v2439 = vunpack.c.h.b16 %v1761
        %v2440 = vunpack.c.l.b16 %v1762
        %v2441 = vunpack.c.h.b16 %v1762
        %v2442 = vunpack.c.l.b16 %v1763
        %v2443 = vunpack.c.h.b16 %v1763
        %v2444 = vunpack.c.l.b16 %v1764
        %v2445 = vunpack.c.h.b16 %v1764
        %v2446 = vunpack.c.l.b16 %v1765
        %v2447 = vunpack.c.h.b16 %v1765
        %v2448 = vunpack.c.l.b16 %v1766
        %v2449 = vunpack.c.h.b16 %v1766
        %v2450 = vunpack.c.l.b16 %v1767
        %v2451 = vunpack.c.h.b16 %v1767
        %v2452 = vunpack.c.l.b16 %v1768
        %v2453 = vunpack.c.h.b16 %v1768
        %v2454 = vunpack.c.l.b16 %v1769
        %v2455 = vunpack.c.h.b16 %v1769
        %v2456 = vunpack.c.l.b16 %v1770
        %v2457 = vunpack.c.h.b16 %v1770
        %v2458 = vunpack.c.l.b16 %v1771
        %v2459 = vunpack.c.h.b16 %v1771
        %v2460 = vunpack.c.l.b16 %v1772
        %v2461 = vunpack.c.h.b16 %v1772
        %v2462 = vunpack.c.l.b16 %v1773
        %v2463 = vunpack.c.h.b16 %v1773
        %v2464 = vunpack.c.l.b16 %v1774
        %v2465 = vunpack.c.h.b16 %v1774
        %v2466 = vunpack.c.l.b16 %v1775
        %v2467 = vunpack.c.h.b16 %v1775
        %v2468 = vunpack.c.l.b16 %v1776
        %v2469 = vunpack.c.h.b16 %v1776
        %v2470 = vunpack.c.l.b16 %v1777
        %v2471 = vunpack.c.h.b16 %v1777
        %v2472 = vunpack.c.l.b16 %v1778
        %v2473 = vunpack.c.h.b16 %v1778
        %v2474 = vunpack.c.l.b16 %v1779
        %v2475 = vunpack.c.h.b16 %v1779
        %v2476 = vunpack.c.l.b16 %v1780
        %v2477 = vunpack.c.h.b16 %v1780
        %v2478 = vunpack.c.l.b16 %v1781
        %v2479 = vunpack.c.h.b16 %v1781
        %v2480 = vunpack.c.l.b16 %v1782
        %v2481 = vunpack.c.h.b16 %v1782
        %v2482 = vunpack.c.l.b16 %v1783
        %v2483 = vunpack.c.h.b16 %v1783
        %v2484 = vunpack.c.l.b16 %v1784
        %v2485 = vunpack.c.h.b16 %v1784
        %v2486 = vunpack.c.l.b16 %v1785
        %v2487 = vunpack.c.h.b16 %v1785
        %v2488 = vunpack.c.l.b16 %v1786
        %v2489 = vunpack.c.h.b16 %v1786
        %v2490 = vunpack.c.l.b16 %v1787
        %v2491 = vunpack.c.h.b16 %v1787
        %v2492 = vunpack.c.l.b16 %v1788
        %v2493 = vunpack.c.h.b16 %v1788
        %v2494 = vunpack.c.l.b16 %v1789
        %v2495 = vunpack.c.h.b16 %v1789
        %v2496 = vunpack.c.l.b16 %v1790
        %v2497 = vunpack.c.h.b16 %v1790
        %v2498 = vunpack.c.l.b16 %v1791
        %v2499 = vunpack.c.h.b16 %v1791
        %v2500 = vunpack.c.l.b16 %v1792
        %v2501 = vunpack.c.h.b16 %v1792
        %v2502 = vunpack.c.l.b16 %v1793
        %v2503 = vunpack.c.h.b16 %v1793
        %v2504 = vunpack.c.l.b16 %v1794
        %v2505 = vunpack.c.h.b16 %v1794
        %v2506 = vunpack.c.l.b16 %v1795
        %v2507 = vunpack.c.h.b16 %v1795
        %v2508 = vunpack.c.l.b16 %v1796
        %v2509 = vunpack.c.h.b16 %v1796
        %v2510 = vunpack.c.l.b16 %v1797
        %v2511 = vunpack.c.h.b16 %v1797
        %v2512 = vunpack.c.l.b16 %v1798
        %v2513 = vunpack.c.h.b16 %v1798
        %v2514 = vunpack.c.l.b16 %v1799
        %v2515 = vunpack.c.h.b16 %v1799
        %v2516 = vunpack.c.l.b16 %v1800
        %v2517 = vunpack.c.h.b16 %v1800
        %v2518 = vunpack.c.l.b16 %v1801
        %v2519 = vunpack.c.h.b16 %v1801
        %v2520 = vunpack.c.l.b16 %v1802
        %v2521 = vunpack.c.h.b16 %v1802
        %v2522 = vunpack.c.l.b16 %v1803
        %v2523 = vunpack.c.h.b16 %v1803
        %v2524 = vunpack.c.l.b16 %v1804
        %v2525 = vunpack.c.h.b16 %v1804
        %v2526 = vunpack.c.l.b16 %v1805
        %v2527 = vunpack.c.h.b16 %v1805
        %v2528 = vunpack.c.l.b16 %v1806
        %v2529 = vunpack.c.h.b16 %v1806
        %v2530 = vunpack.c.l.b16 %v1807
        %v2531 = vunpack.c.h.b16 %v1807
        %v2532 = vunpack.c.l.b16 %v1808
        %v2533 = vunpack.c.h.b16 %v1808
        %v2534 = vunpack.c.l.b16 %v1809
        %v2535 = vunpack.c.h.b16 %v1809
        %v2536 = vunpack.c.l.b16 %v1810
        %v2537 = vunpack.c.h.b16 %v1810
        %v2538 = vunpack.c.l.b16 %v1811
        %v2539 = vunpack.c.h.b16 %v1811
        %v2540 = vunpack.c.l.b16 %v1812
        %v2541 = vunpack.c.h.b16 %v1812
        %v2542 = vunpack.c.l.b16 %v1813
        %v2543 = vunpack.c.h.b16 %v1813
        %v2544 = vunpack.c.l.b16 %v1814
        %v2545 = vunpack.c.h.b16 %v1814
        %v2546 = vunpack.c.l.b16 %v1815
        %v2547 = vunpack.c.h.b16 %v1815
        %v2548 = vunpack.c.l.b16 %v1816
        %v2549 = vunpack.c.h.b16 %v1816
        %v2550 = vunpack.c.l.b16 %v1817
        %v2551 = vunpack.c.h.b16 %v1817
        %v2552 = vunpack.c.l.b16 %v1818
        %v2553 = vunpack.c.h.b16 %v1818
        %v2554 = vunpack.c.l.b16 %v1819
        %v2555 = vunpack.c.h.b16 %v1819
        %v2556 = vunpack.c.l.b16 %v1820
        %v2557 = vunpack.c.h.b16 %v1820
        %v2558 = vunpack.c.l.b16 %v1821
        %v2559 = vunpack.c.h.b16 %v1821
        %v2560 = vunpack.c.l.b16 %v1822
        %v2561 = vunpack.c.h.b16 %v1822
        %v2562 = vunpack.c.l.b16 %v1823
        %v2563 = vunpack.c.h.b16 %v1823
        %v2564 = vunpack.c.l.b16 %v1824
        %v2565 = vunpack.c.h.b16 %v1824
        %v2566 = vunpack.c.l.b16 %v1825
        %v2567 = vunpack.c.h.b16 %v1825
        %v2568 = vunpack.c.l.b16 %v1826
        %v2569 = vunpack.c.h.b16 %v1826
        %v2570 = vunpack.c.l.b16 %v1827
        %v2571 = vunpack.c.h.b16 %v1827
        %v2572 = vunpack.c.l.b16 %v1828
        %v2573 = vunpack.c.h.b16 %v1828
        %v2574 = vunpack.c.l.b16 %v1829
        %v2575 = vunpack.c.h.b16 %v1829
        %v2576 = vunpack.c.l.b16 %v1830
        %v2577 = vunpack.c.h.b16 %v1830
        %v2578 = vunpack.c.l.b16 %v1831
        %v2579 = vunpack.c.h.b16 %v1831
        %v2580 = vunpack.c.l.b16 %v1832
        %v2581 = vunpack.c.h.b16 %v1832
        %v2582 = vunpack.c.l.b16 %v1833
        %v2583 = vunpack.c.h.b16 %v1833
        %v2584 = vunpack.c.l.b16 %v1834
        %v2585 = vunpack.c.h.b16 %v1834
        %v2586 = vunpack.c.l.b16 %v1835
        %v2587 = vunpack.c.h.b16 %v1835
        %v2588 = vunpack.c.l.b16 %v1836
        %v2589 = vunpack.c.h.b16 %v1836
        %v2590 = vunpack.c.l.b16 %v1837
        %v2591 = vunpack.c.h.b16 %v1837
        %v2592 = vunpack.c.l.b16 %v1838
        %v2593 = vunpack.c.h.b16 %v1838
        %v2594 = vunpack.c.l.b16 %v1839
        %v2595 = vunpack.c.h.b16 %v1839
        %v2596 = vunpack.c.l.b16 %v1840
        %v2597 = vunpack.c.h.b16 %v1840
        %v2598 = vunpack.c.l.b16 %v1841
        %v2599 = vunpack.c.h.b16 %v1841
        %v2600 = vunpack.c.l.b16 %v1842
        %v2601 = vunpack.c.h.b16 %v1842
        %v2602 = vunpack.c.l.b16 %v1843
        %v2603 = vunpack.c.h.b16 %v1843
        %v2604 = vunpack.c.l.b16 %v1844
        %v2605 = vunpack.c.h.b16 %v1844
        %v2606 = vunpack.c.l.b16 %v1845
        %v2607 = vunpack.c.h.b16 %v1845
        %v2608 = vunpack.c.l.b16 %v1846
        %v2609 = vunpack.c.h.b16 %v1846
        %v2610 = vunpack.c.l.b16 %v1847
        %v2611 = vunpack.c.h.b16 %v1847
        %v2612 = vunpack.c.l.b16 %v1848
        %v2613 = vunpack.c.h.b16 %v1848
        %v2614 = vunpack.c.l.b16 %v1849
        %v2615 = vunpack.c.h.b16 %v1849
        %v2616 = vunpack.c.l.b16 %v1850
        %v2617 = vunpack.c.h.b16 %v1850
        %v2618 = vunpack.c.l.b16 %v1851
        %v2619 = vunpack.c.h.b16 %v1851
        %v2620 = vunpack.c.l.b16 %v1852
        %v2621 = vunpack.c.h.b16 %v1852
        %v2622 = vunpack.c.l.b16 %v1853
        %v2623 = vunpack.c.h.b16 %v1853
        %v2624 = vunpack.c.l.b16 %v1854
        %v2625 = vunpack.c.h.b16 %v1854
        %v2626 = vunpack.c.l.b16 %v1855
        %v2627 = vunpack.c.h.b16 %v1855
        %v2628 = vunpack.c.l.b16 %v1856
        %v2629 = vunpack.c.h.b16 %v1856
        %v2630 = vunpack.c.l.b16 %v1857
        %v2631 = vunpack.c.h.b16 %v1857
        %v2632 = vunpack.c.l.b16 %v1858
        %v2633 = vunpack.c.h.b16 %v1858
        %v2634 = vunpack.c.l.b16 %v1859
        %v2635 = vunpack.c.h.b16 %v1859
        %v2636 = vunpack.c.l.b16 %v1860
        %v2637 = vunpack.c.h.b16 %v1860
        %v2638 = vunpack.c.l.b16 %v1861
        %v2639 = vunpack.c.h.b16 %v1861
        %v2640 = vunpack.c.l.b16 %v1862
        %v2641 = vunpack.c.h.b16 %v1862
        %v2642 = vunpack.c.l.b16 %v1863
        %v2643 = vunpack.c.h.b16 %v1863
        %v2644 = vunpack.c.l.b16 %v1864
        %v2645 = vunpack.c.h.b16 %v1864
        %v2646 = vunpack.c.l.b16 %v1865
        %v2647 = vunpack.c.h.b16 %v1865
        %v2648 = vunpack.c.l.b16 %v1866
        %v2649 = vunpack.c.h.b16 %v1866
        %v2650 = vunpack.c.l.b16 %v1867
        %v2651 = vunpack.c.h.b16 %v1867
        %v2652 = vunpack.c.l.b16 %v1868
        %v2653 = vunpack.c.h.b16 %v1868
        %v2654 = vunpack.c.l.b16 %v1869
        %v2655 = vunpack.c.h.b16 %v1869
        %v2656 = vunpack.c.l.b16 %v1870
        %v2657 = vunpack.c.h.b16 %v1870
        %v2658 = vunpack.c.l.b16 %v1871
        %v2659 = vunpack.c.h.b16 %v1871
        %v2660 = vunpack.c.l.b16 %v1872
        %v2661 = vunpack.c.h.b16 %v1872
        %v2662 = vunpack.c.l.b16 %v1873
        %v2663 = vunpack.c.h.b16 %v1873
        %v2664 = vunpack.c.l.b16 %v1874
        %v2665 = vunpack.c.h.b16 %v1874
        %v2666 = vunpack.c.l.b16 %v1875
        %v2667 = vunpack.c.h.b16 %v1875
        %v2668 = vunpack.c.l.b16 %v1876
        %v2669 = vunpack.c.h.b16 %v1876
        %v2670 = vunpack.c.l.b16 %v1877
        %v2671 = vunpack.c.h.b16 %v1877
        %v2672 = vunpack.c.l.b16 %v1878
        %v2673 = vunpack.c.h.b16 %v1878
        %v2674 = vunpack.c.l.b16 %v1879
        %v2675 = vunpack.c.h.b16 %v1879
        %v2676 = vunpack.c.l.b16 %v1880
        %v2677 = vunpack.c.h.b16 %v1880
        %v2678 = vunpack.c.l.b16 %v1881
        %v2679 = vunpack.c.h.b16 %v1881
        %v2680 = vunpack.c.l.b16 %v1882
        %v2681 = vunpack.c.h.b16 %v1882
        %v2682 = vunpack.c.l.b16 %v1883
        %v2683 = vunpack.c.h.b16 %v1883
        %v2684 = vunpack.c.l.b16 %v1884
        %v2685 = vunpack.c.h.b16 %v1884
        %v2686 = vunpack.c.l.b16 %v1885
        %v2687 = vunpack.c.h.b16 %v1885
        %v2688 = vunpack.c.l.b16 %v1886
        %v2689 = vunpack.c.h.b16 %v1886
        %v2690 = vunpack.c.l.b16 %v1887
        %v2691 = vunpack.c.h.b16 %v1887
        %v2692 = vunpack.c.l.b16 %v1888
        %v2693 = vunpack.c.h.b16 %v1888
        %v2694 = vunpack.c.l.b16 %v1889
        %v2695 = vunpack.c.h.b16 %v1889
        %v2696 = vunpack.c.l.b16 %v1890
        %v2697 = vunpack.c.h.b16 %v1890
        %v2698 = vunpack.c.l.b16 %v1891
        %v2699 = vunpack.c.h.b16 %v1891
        %v2700 = vunpack.c.l.b16 %v1892
        %v2701 = vunpack.c.h.b16 %v1892
        %v2702 = vunpack.c.l.b16 %v1893
        %v2703 = vunpack.c.h.b16 %v1893
        %v2704 = vpack.c.b16 %v2200, %v2192
        %v2705 = vpack.c.b16 %v2201, %v2193
        %v2706 = vpack.c.b16 %v2202, %v2194
        %v2707 = vpack.c.b16 %v2203, %v2195
        %v2708 = vpack.c.b16 %v2204, %v2196
        %v2709 = vpack.c.b16 %v2205, %v2197
        %v2710 = vpack.c.b16 %v2206, %v2198
        %v2711 = vpack.c.b16 %v2207, %v2199
        %v2712 = vpack.c.b16 %v2216, %v2208
        %v2713 = vpack.c.b16 %v2217, %v2209
        %v2714 = vpack.c.b16 %v2218, %v2210
        %v2715 = vpack.c.b16 %v2219, %v2211
        %v2716 = vpack.c.b16 %v2220, %v2212
        %v2717 = vpack.c.b16 %v2221, %v2213
        %v2718 = vpack.c.b16 %v2222, %v2214
        %v2719 = vpack.c.b16 %v2223, %v2215
        %v2720 = vpack.c.b16 %v2232, %v2224
        %v2721 = vpack.c.b16 %v2233, %v2225
        %v2722 = vpack.c.b16 %v2234, %v2226
        %v2723 = vpack.c.b16 %v2235, %v2227
        %v2724 = vpack.c.b16 %v2236, %v2228
        %v2725 = vpack.c.b16 %v2237, %v2229
        %v2726 = vpack.c.b16 %v2238, %v2230
        %v2727 = vpack.c.b16 %v2239, %v2231
        %v2728 = vpack.c.b16 %v2248, %v2240
        %v2729 = vpack.c.b16 %v2249, %v2241
        %v2730 = vpack.c.b16 %v2250, %v2242
        %v2731 = vpack.c.b16 %v2251, %v2243
        %v2732 = vpack.c.b16 %v2252, %v2244
        %v2733 = vpack.c.b16 %v2253, %v2245
        %v2734 = vpack.c.b16 %v2254, %v2246
        %v2735 = vpack.c.b16 %v2255, %v2247
        %v2736 = vpack.c.b16 %v2264, %v2256
        %v2737 = vpack.c.b16 %v2265, %v2257
        %v2738 = vpack.c.b16 %v2266, %v2258
        %v2739 = vpack.c.b16 %v2267, %v2259
        %v2740 = vpack.c.b16 %v2268, %v2260
        %v2741 = vpack.c.b16 %v2269, %v2261
        %v2742 = vpack.c.b16 %v2270, %v2262
        %v2743 = vpack.c.b16 %v2271, %v2263
        %v2744 = vpack.c.b16 %v2280, %v2272
        %v2745 = vpack.c.b16 %v2281, %v2273
        %v2746 = vpack.c.b16 %v2282, %v2274
        %v2747 = vpack.c.b16 %v2283, %v2275
        %v2748 = vpack.c.b16 %v2284, %v2276
        %v2749 = vpack.c.b16 %v2285, %v2277
        %v2750 = vpack.c.b16 %v2286, %v2278
        %v2751 = vpack.c.b16 %v2287, %v2279
        %v2752 = vpack.c.b16 %v2296, %v2288
        %v2753 = vpack.c.b16 %v2297, %v2289
        %v2754 = vpack.c.b16 %v2298, %v2290
        %v2755 = vpack.c.b16 %v2299, %v2291
        %v2756 = vpack.c.b16 %v2300, %v2292
        %v2757 = vpack.c.b16 %v2301, %v2293
        %v2758 = vpack.c.b16 %v2302, %v2294
        %v2759 = vpack.c.b16 %v2303, %v2295
        %v2760 = vpack.c.b16 %v2312, %v2304
        %v2761 = vpack.c.b16 %v2313, %v2305
        %v2762 = vpack.c.b16 %v2314, %v2306
        %v2763 = vpack.c.b16 %v2315, %v2307
        %v2764 = vpack.c.b16 %v2316, %v2308
        %v2765 = vpack.c.b16 %v2317, %v2309
        %v2766 = vpack.c.b16 %v2318, %v2310
        %v2767 = vpack.c.b16 %v2319, %v2311
        %v2768 = vpack.c.b16 %v2328, %v2320
        %v2769 = vpack.c.b16 %v2329, %v2321
        %v2770 = vpack.c.b16 %v2330, %v2322
        %v2771 = vpack.c.b16 %v2331, %v2323
        %v2772 = vpack.c.b16 %v2332, %v2324
        %v2773 = vpack.c.b16 %v2333, %v2325
        %v2774 = vpack.c.b16 %v2334, %v2326
        %v2775 = vpack.c.b16 %v2335, %v2327
        %v2776 = vpack.c.b16 %v2344, %v2336
        %v2777 = vpack.c.b16 %v2345, %v2337
        %v2778 = vpack.c.b16 %v2346, %v2338
        %v2779 = vpack.c.b16 %v2347, %v2339
        %v2780 = vpack.c.b16 %v2348, %v2340
        %v2781 = vpack.c.b16 %v2349, %v2341
        %v2782 = vpack.c.b16 %v2350, %v2342
        %v2783 = vpack.c.b16 %v2351, %v2343
        %v2784 = vpack.c.b16 %v2360, %v2352
        %v2785 = vpack.c.b16 %v2361, %v2353
        %v2786 = vpack.c.b16 %v2362, %v2354
        %v2787 = vpack.c.b16 %v2363, %v2355
        %v2788 = vpack.c.b16 %v2364, %v2356
        %v2789 = vpack.c.b16 %v2365, %v2357
        %v2790 = vpack.c.b16 %v2366, %v2358
        %v2791 = vpack.c.b16 %v2367, %v2359
        %v2792 = vpack.c.b16 %v2376, %v2368
        %v2793 = vpack.c.b16 %v2377, %v2369
        %v2794 = vpack.c.b16 %v2378, %v2370
        %v2795 = vpack.c.b16 %v2379, %v2371
        %v2796 = vpack.c.b16 %v2380, %v2372
        %v2797 = vpack.c.b16 %v2381, %v2373
        %v2798 = vpack.c.b16 %v2382, %v2374
        %v2799 = vpack.c.b16 %v2383, %v2375
        %v2800 = vpack.c.b16 %v2392, %v2384
        %v2801 = vpack.c.b16 %v2393, %v2385
        %v2802 = vpack.c.b16 %v2394, %v2386
        %v2803 = vpack.c.b16 %v2395, %v2387
        %v2804 = vpack.c.b16 %v2396, %v2388
        %v2805 = vpack.c.b16 %v2397, %v2389
        %v2806 = vpack.c.b16 %v2398, %v2390
        %v2807 = vpack.c.b16 %v2399, %v2391
        %v2808 = vpack.c.b16 %v2408, %v2400
        %v2809 = vpack.c.b16 %v2409, %v2401
        %v2810 = vpack.c.b16 %v2410, %v2402
        %v2811 = vpack.c.b16 %v2411, %v2403
        %v2812 = vpack.c.b16 %v2412, %v2404
        %v2813 = vpack.c.b16 %v2413, %v2405
        %v2814 = vpack.c.b16 %v2414, %v2406
        %v2815 = vpack.c.b16 %v2415, %v2407
        %v2816 = vpack.c.b16 %v2424, %v2416
        %v2817 = vpack.c.b16 %v2425, %v2417
        %v2818 = vpack.c.b16 %v2426, %v2418
        %v2819 = vpack.c.b16 %v2427, %v2419
        %v2820 = vpack.c.b16 %v2428, %v2420
        %v2821 = vpack.c.b16 %v2429, %v2421
        %v2822 = vpack.c.b16 %v2430, %v2422
        %v2823 = vpack.c.b16 %v2431, %v2423
        %v2824 = vpack.c.b16 %v2440, %v2432
        %v2825 = vpack.c.b16 %v2441, %v2433
        %v2826 = vpack.c.b16 %v2442, %v2434
        %v2827 = vpack.c.b16 %v2443, %v2435
        %v2828 = vpack.c.b16 %v2444, %v2436
        %v2829 = vpack.c.b16 %v2445, %v2437
        %v2830 = vpack.c.b16 %v2446, %v2438
        %v2831 = vpack.c.b16 %v2447, %v2439
        %v2832 = vpack.c.b16 %v2456, %v2448
        %v2833 = vpack.c.b16 %v2457, %v2449
        %v2834 = vpack.c.b16 %v2458, %v2450
        %v2835 = vpack.c.b16 %v2459, %v2451
        %v2836 = vpack.c.b16 %v2460, %v2452
        %v2837 = vpack.c.b16 %v2461, %v2453
        %v2838 = vpack.c.b16 %v2462, %v2454
        %v2839 = vpack.c.b16 %v2463, %v2455
        %v2840 = vpack.c.b16 %v2472, %v2464
        %v2841 = vpack.c.b16 %v2473, %v2465
        %v2842 = vpack.c.b16 %v2474, %v2466
        %v2843 = vpack.c.b16 %v2475, %v2467
        %v2844 = vpack.c.b16 %v2476, %v2468
        %v2845 = vpack.c.b16 %v2477, %v2469
        %v2846 = vpack.c.b16 %v2478, %v2470
        %v2847 = vpack.c.b16 %v2479, %v2471
        %v2848 = vpack.c.b16 %v2488, %v2480
        %v2849 = vpack.c.b16 %v2489, %v2481
        %v2850 = vpack.c.b16 %v2490, %v2482
        %v2851 = vpack.c.b16 %v2491, %v2483
        %v2852 = vpack.c.b16 %v2492, %v2484
        %v2853 = vpack.c.b16 %v2493, %v2485
        %v2854 = vpack.c.b16 %v2494, %v2486
        %v2855 = vpack.c.b16 %v2495, %v2487
        %v2856 = vpack.c.b16 %v2504, %v2496
        %v2857 = vpack.c.b16 %v2505, %v2497
        %v2858 = vpack.c.b16 %v2506, %v2498
        %v2859 = vpack.c.b16 %v2507, %v2499
        %v2860 = vpack.c.b16 %v2508, %v2500
        %v2861 = vpack.c.b16 %v2509, %v2501
        %v2862 = vpack.c.b16 %v2510, %v2502
        %v2863 = vpack.c.b16 %v2511, %v2503
        %v2864 = vpack.c.b16 %v2520, %v2512
        %v2865 = vpack.c.b16 %v2521, %v2513
        %v2866 = vpack.c.b16 %v2522, %v2514
        %v2867 = vpack.c.b16 %v2523, %v2515
        %v2868 = vpack.c.b16 %v2524, %v2516
        %v2869 = vpack.c.b16 %v2525, %v2517
        %v2870 = vpack.c.b16 %v2526, %v2518
        %v2871 = vpack.c.b16 %v2527, %v2519
        %v2872 = vpack.c.b16 %v2536, %v2528
        %v2873 = vpack.c.b16 %v2537, %v2529
        %v2874 = vpack.c.b16 %v2538, %v2530
        %v2875 = vpack.c.b16 %v2539, %v2531
        %v2876 = vpack.c.b16 %v2540, %v2532
        %v2877 = vpack.c.b16 %v2541, %v2533
        %v2878 = vpack.c.b16 %v2542, %v2534
        %v2879 = vpack.c.b16 %v2543, %v2535
        %v2880 = vpack.c.b16 %v2552, %v2544
        %v2881 = vpack.c.b16 %v2553, %v2545
        %v2882 = vpack.c.b16 %v2554, %v2546
        %v2883 = vpack.c.b16 %v2555, %v2547
        %v2884 = vpack.c.b16 %v2556, %v2548
        %v2885 = vpack.c.b16 %v2557, %v2549
        %v2886 = vpack.c.b16 %v2558, %v2550
        %v2887 = vpack.c.b16 %v2559, %v2551
        %v2888 = vpack.c.b16 %v2568, %v2560
        %v2889 = vpack.c.b16 %v2569, %v2561
        %v2890 = vpack.c.b16 %v2570, %v2562
        %v2891 = vpack.c.b16 %v2571, %v2563
        %v2892 = vpack.c.b16 %v2572, %v2564
        %v2893 = vpack.c.b16 %v2573, %v2565
        %v2894 = vpack.c.b16 %v2574, %v2566
        %v2895 = vpack.c.b16 %v2575, %v2567
        %v2896 = vpack.c.b16 %v2584, %v2576
        %v2897 = vpack.c.b16 %v2585, %v2577
        %v2898 = vpack.c.b16 %v2586, %v2578
        %v2899 = vpack.c.b16 %v2587, %v2579
        %v2900 = vpack.c.b16 %v2588, %v2580
        %v2901 = vpack.c.b16 %v2589, %v2581
        %v2902 = vpack.c.b16 %v2590, %v2582
        %v2903 = vpack.c.b16 %v2591, %v2583
        %v2904 = vpack.c.b16 %v2600, %v2592
        %v2905 = vpack.c.b16 %v2601, %v2593
        %v2906 = vpack.c.b16 %v2602, %v2594
        %v2907 = vpack.c.b16 %v2603, %v2595
        %v2908 = vpack.c.b16 %v2604, %v2596
        %v2909 = vpack.c.b16 %v2605, %v2597
        %v2910 = vpack.c.b16 %v2606, %v2598
        %v2911 = vpack.c.b16 %v2607, %v2599
        %v2912 = vpack.c.b16 %v2616, %v2608
        %v2913 = vpack.c.b16 %v2617, %v2609
        %v2914 = vpack.c.b16 %v2618, %v2610
        %v2915 = vpack.c.b16 %v2619, %v2611
        %v2916 = vpack.c.b16 %v2620, %v2612
        %v2917 = vpack.c.b16 %v2621, %v2613
        %v2918 = vpack.c.b16 %v2622, %v2614
        %v2919 = vpack.c.b16 %v2623, %v2615
        %v2920 = vpack.c.b16 %v2632, %v2624
        %v2921 = vpack.c.b16 %v2633, %v2625
        %v2922 = vpack.c.b16 %v2634, %v2626
        %v2923 = vpack.c.b16 %v2635, %v2627
        %v2924 = vpack.c.b16 %v2636, %v2628
        %v2925 = vpack.c.b16 %v2637, %v2629
        %v2926 = vpack.c.b16 %v2638, %v2630
        %v2927 = vpack.c.b16 %v2639, %v2631
        %v2928 = vpack.c.b16 %v2648, %v2640
        %v2929 = vpack.c.b16 %v2649, %v2641
        %v2930 = vpack.c.b16 %v2650, %v2642
        %v2931 = vpack.c.b16 %v2651, %v2643
        %v2932 = vpack.c.b16 %v2652, %v2644
        %v2933 = vpack.c.b16 %v2653, %v2645
        %v2934 = vpack.c.b16 %v2654, %v2646
        %v2935 = vpack.c.b16 %v2655, %v2647
        %v2936 = vpack.c.b16 %v2664, %v2656
        %v2937 = vpack.c.b16 %v2665, %v2657
        %v2938 = vpack.c.b16 %v2666, %v2658
        %v2939 = vpack.c.b16 %v2667, %v2659
        %v2940 = vpack.c.b16 %v2668, %v2660
        %v2941 = vpack.c.b16 %v2669, %v2661
        %v2942 = vpack.c.b16 %v2670, %v2662
        %v2943 = vpack.c.b16 %v2671, %v2663
        %v2944 = vpack.c.b16 %v2680, %v2672
        %v2945 = vpack.c.b16 %v2681, %v2673
        %v2946 = vpack.c.b16 %v2682, %v2674
        %v2947 = vpack.c.b16 %v2683, %v2675
        %v2948 = vpack.c.b16 %v2684, %v2676
        %v2949 = vpack.c.b16 %v2685, %v2677
        %v2950 = vpack.c.b16 %v2686, %v2678
        %v2951 = vpack.c.b16 %v2687, %v2679
        %v2952 = vpack.c.b16 %v2696, %v2688
        %v2953 = vpack.c.b16 %v2697, %v2689
        %v2954 = vpack.c.b16 %v2698, %v2690
        %v2955 = vpack.c.b16 %v2699, %v2691
        %v2956 = vpack.c.b16 %v2700, %v2692
        %v2957 = vpack.c.b16 %v2701, %v2693
        %v2958 = vpack.c.b16 %v2702, %v2694
        %v2959 = vpack.c.b16 %v2703, %v2695
        %3216 = vmatprep.subr.bf16.mxu0 %v2705
        %3217 = vmatpush1.bf16.msra.mxu0 %v2704
        %3218 = vmatprep.subr.bf16.mxu0 %v2713
        %3219 = vmatpush1.bf16.msra.mxu0 %v2712
        %3220 = vmatprep.subr.bf16.mxu0 %v2721
        %3221 = vmatpush1.bf16.msra.mxu0 %v2720
        %3222 = vmatprep.subr.bf16.mxu0 %v2729
        %3223 = vmatpush1.bf16.msra.mxu0 %v2728
        %3224 = vmatprep.subr.bf16.mxu0 %v2737
        %3225 = vmatpush1.bf16.msra.mxu0 %v2736
        %3226 = vmatprep.subr.bf16.mxu0 %v2745
        %3227 = vmatpush1.bf16.msra.mxu0 %v2744
        %3228 = vmatprep.subr.bf16.mxu0 %v2753
        %3229 = vmatpush1.bf16.msra.mxu0 %v2752
        %3230 = vmatprep.subr.bf16.mxu0 %v2761
        %3231 = vmatpush1.bf16.msra.mxu0 %v2760
        %3232 = vmatprep.subr.bf16.mxu0 %v2769
        %3233 = vmatpush1.bf16.msra.mxu0 %v2768
        %3234 = vmatprep.subr.bf16.mxu0 %v2777
        %3235 = vmatpush1.bf16.msra.mxu0 %v2776
        %3236 = vmatprep.subr.bf16.mxu0 %v2785
        %3237 = vmatpush1.bf16.msra.mxu0 %v2784
        %3238 = vmatprep.subr.bf16.mxu0 %v2793
        %3239 = vmatpush1.bf16.msra.mxu0 %v2792
        %3240 = vmatprep.subr.bf16.mxu0 %v2801
        %3241 = vmatpush1.bf16.msra.mxu0 %v2800
        %3242 = vmatprep.subr.bf16.mxu0 %v2809
        %3243 = vmatpush1.bf16.msra.mxu0 %v2808
        %3244 = vmatprep.subr.bf16.mxu0 %v2817
        %3245 = vmatpush1.bf16.msra.mxu0 %v2816
        %3246 = vmatprep.subr.bf16.mxu0 %v2825
        %3247 = vmatpush1.bf16.msra.mxu0 %v2824
        %3248 = vmatprep.mubr.bf16.mxu0 %v1607
        %3249 = vmatmul.mubr.bf16.gmra.mrb[0].mxu0 %v1606
        %v3250 = vpop.f32.mrb[0].mxu0
        %v3251 = vadd.f32 %v1899, %v3250
        %v3252 = vpop.f32.mrb[0].mxu0
        %v3253 = vadd.f32 %v1903, %v3252
        %v3254 = vpop.f32.mrb[0].mxu0
        %v3255 = vadd.f32 %v1899, %v3254
        %v3256 = vpop.f32.mrb[0].mxu0
        %v3257 = vadd.f32 %v1903, %v3256
        %3258 = vmatprep.mubr.bf16.mxu0 %v1611
        %3259 = vmatmul.mubr.bf16.gmra.mrb[0].mxu0 %v1610
        %v3260 = vpop.f32.mrb[0].mxu0
        %v3261 = vadd.f32 %v1899, %v3260
        %v3262 = vpop.f32.mrb[0].mxu0
        %v3263 = vadd.f32 %v1903, %v3262
        %v3264 = vpop.f32.mrb[0].mxu0
        %v3265 = vadd.f32 %v1899, %v3264
        %v3266 = vpop.f32.mrb[0].mxu0
        %v3267 = vadd.f32 %v1903, %v3266
        %3268 = vmatprep.mubr.bf16.mxu0 %v1615
        %3269 = vmatmul.mubr.bf16.gmra.mrb[0].mxu0 %v1614
        %v3270 = vpop.f32.mrb[0].mxu0
        %v3271 = vadd.f32 %v1899, %v3270
        %v3272 = vpop.f32.mrb[0].mxu0
        %v3273 = vadd.f32 %v1903, %v3272
        %v3274 = vpop.f32.mrb[0].mxu0
        %v3275 = vadd.f32 %v1899, %v3274
        %v3276 = vpop.f32.mrb[0].mxu0
        %v3277 = vadd.f32 %v1903, %v3276
        %3278 = vmatprep.mubr.bf16.mxu0 %v1619
        %3279 = vmatmul.mubr.bf16.gmra.mrb[0].mxu0 %v1618
        %v3280 = vpop.f32.mrb[0].mxu0
        %v3281 = vadd.f32 %v1899, %v3280
        %v3282 = vpop.f32.mrb[0].mxu0
        %v3283 = vadd.f32 %v1903, %v3282
        %v3284 = vpop.f32.mrb[0].mxu0
        %v3285 = vadd.f32 %v1899, %v3284
        %v3286 = vpop.f32.mrb[0].mxu0
        %v3287 = vadd.f32 %v1903, %v3286
        %3288 = vmatprep.mubr.bf16.mxu0 %v1623
        %3289 = vmatmul.mubr.bf16.gmra.mrb[0].mxu0 %v1622
        %v3290 = vpop.f32.mrb[0].mxu0
        %v3291 = vadd.f32 %v1899, %v3290
        %v3292 = vpop.f32.mrb[0].mxu0
        %v3293 = vadd.f32 %v1903, %v3292
        %v3294 = vpop.f32.mrb[0].mxu0
        %v3295 = vadd.f32 %v1899, %v3294
        %v3296 = vpop.f32.mrb[0].mxu0
        %v3297 = vadd.f32 %v1903, %v3296
        %3298 = vmatprep.mubr.bf16.mxu0 %v1627
        %3299 = vmatmul.mubr.bf16.gmra.mrb[0].mxu0 %v1626
        %v3300 = vpop.f32.mrb[0].mxu0
        %v3301 = vadd.f32 %v1899, %v3300
        %v3302 = vpop.f32.mrb[0].mxu0
        %v3303 = vadd.f32 %v1903, %v3302
        %v3304 = vpop.f32.mrb[0].mxu0
        %v3305 = vadd.f32 %v1899, %v3304
        %v3306 = vpop.f32.mrb[0].mxu0
        %v3307 = vadd.f32 %v1903, %v3306
        %3308 = vmatprep.mubr.bf16.mxu0 %v1631
        %3309 = vmatmul.mubr.bf16.gmra.mrb[0].mxu0 %v1630
        %v3310 = vpop.f32.mrb[0].mxu0
        %v3311 = vadd.f32 %v1899, %v3310
        %v3312 = vpop.f32.mrb[0].mxu0
        %v3313 = vadd.f32 %v1903, %v3312
        %v3314 = vpop.f32.mrb[0].mxu0
        %v3315 = vadd.f32 %v1899, %v3314
        %v3316 = vpop.f32.mrb[0].mxu0
        %v3317 = vadd.f32 %v1903, %v3316
        %3318 = vmatprep.mubr.bf16.mxu0 %v1635
        %3319 = vmatmul.mubr.bf16.gmra.mrb[0].mxu0 %v1634
        %v3320 = vpop.f32.mrb[0].mxu0
        %v3321 = vadd.f32 %v1899, %v3320
        %v3322 = vpop.f32.mrb[0].mxu0
        %v3323 = vadd.f32 %v1903, %v3322
        %v3324 = vpop.f32.mrb[0].mxu0
        %v3325 = vadd.f32 %v1899, %v3324
        %v3326 = vpop.f32.mrb[0].mxu0
        %v3327 = vadd.f32 %v1903, %v3326
        %3328 = vdwg.mxu0
        %3329 = vmatprep.subr.bf16.mxu0 %v2833
        %3330 = vmatpush1.bf16.msra.mxu0 %v2832
        %3331 = vmatprep.subr.bf16.mxu0 %v2841
        %3332 = vmatpush1.bf16.msra.mxu0 %v2840
        %3333 = vmatprep.subr.bf16.mxu0 %v2849
        %3334 = vmatpush1.bf16.msra.mxu0 %v2848
        %3335 = vmatprep.subr.bf16.mxu0 %v2857
        %3336 = vmatpush1.bf16.msra.mxu0 %v2856
        %3337 = vmatprep.subr.bf16.mxu0 %v2865
        %3338 = vmatpush1.bf16.msra.mxu0 %v2864
        %3339 = vmatprep.subr.bf16.mxu0 %v2873
        %3340 = vmatpush1.bf16.msra.mxu0 %v2872
        %3341 = vmatprep.subr.bf16.mxu0 %v2881
        %3342 = vmatpush1.bf16.msra.mxu0 %v2880
        %3343 = vmatprep.subr.bf16.mxu0 %v2889
        %3344 = vmatpush1.bf16.msra.mxu0 %v2888
        %3345 = vmatprep.subr.bf16.mxu0 %v2897
        %3346 = vmatpush1.bf16.msra.mxu0 %v2896
        %3347 = vmatprep.subr.bf16.mxu0 %v2905
        %3348 = vmatpush1.bf16.msra.mxu0 %v2904
        %3349 = vmatprep.subr.bf16.mxu0 %v2913
        %3350 = vmatpush1.bf16.msra.mxu0 %v2912
        %3351 = vmatprep.subr.bf16.mxu0 %v2921
        %3352 = vmatpush1.bf16.msra.mxu0 %v2920
        %3353 = vmatprep.subr.bf16.mxu0 %v2929
        %3354 = vmatpush1.bf16.msra.mxu0 %v2928
        %3355 = vmatprep.subr.bf16.mxu0 %v2937
        %3356 = vmatpush1.bf16.msra.mxu0 %v2936
        %3357 = vmatprep.subr.bf16.mxu0 %v2945
        %3358 = vmatpush1.bf16.msra.mxu0 %v2944
        %3359 = vmatprep.subr.bf16.mxu0 %v2953
        %3360 = vmatpush1.bf16.msra.mxu0 %v2952
        %3361 = vmatprep.mubr.bf16.mxu0 %v1609
        %3362 = vmatmul.mubr.bf16.gmra.mrb[0].mxu0 %v1608
        %v3363 = vpop.f32.mrb[0].mxu0
        %v3364 = vadd.f32 %v3251, %v3363
        %v3365 = vpop.f32.mrb[0].mxu0
        %v3366 = vadd.f32 %v3253, %v3365
        %v3367 = vpop.f32.mrb[0].mxu0
        %v3368 = vadd.f32 %v3255, %v3367
        %v3369 = vpop.f32.mrb[0].mxu0
        %v3370 = vadd.f32 %v3257, %v3369
        %3371 = vmatprep.mubr.bf16.mxu0 %v1613
        %3372 = vmatmul.mubr.bf16.gmra.mrb[0].mxu0 %v1612
        %v3373 = vpop.f32.mrb[0].mxu0
        %v3374 = vadd.f32 %v3261, %v3373
        %v3375 = vpop.f32.mrb[0].mxu0
        %v3376 = vadd.f32 %v3263, %v3375
        %v3377 = vpop.f32.mrb[0].mxu0
        %v3378 = vadd.f32 %v3265, %v3377
        %v3379 = vpop.f32.mrb[0].mxu0
        %v3380 = vadd.f32 %v3267, %v3379
        %3381 = vmatprep.mubr.bf16.mxu0 %v1617
        %3382 = vmatmul.mubr.bf16.gmra.mrb[0].mxu0 %v1616
        %v3383 = vpop.f32.mrb[0].mxu0
        %v3384 = vadd.f32 %v3271, %v3383
        %v3385 = vpop.f32.mrb[0].mxu0
        %v3386 = vadd.f32 %v3273, %v3385
        %v3387 = vpop.f32.mrb[0].mxu0
        %v3388 = vadd.f32 %v3275, %v3387
        %v3389 = vpop.f32.mrb[0].mxu0
        %v3390 = vadd.f32 %v3277, %v3389
        %3391 = vmatprep.mubr.bf16.mxu0 %v1621
        %3392 = vmatmul.mubr.bf16.gmra.mrb[0].mxu0 %v1620
        %v3393 = vpop.f32.mrb[0].mxu0
        %v3394 = vadd.f32 %v3281, %v3393
        %v3395 = vpop.f32.mrb[0].mxu0
        %v3396 = vadd.f32 %v3283, %v3395
        %v3397 = vpop.f32.mrb[0].mxu0
        %v3398 = vadd.f32 %v3285, %v3397
        %v3399 = vpop.f32.mrb[0].mxu0
        %v3400 = vadd.f32 %v3287, %v3399
        %3401 = vmatprep.mubr.bf16.mxu0 %v1625
        %3402 = vmatmul.mubr.bf16.gmra.mrb[0].mxu0 %v1624
        %v3403 = vpop.f32.mrb[0].mxu0
        %v3404 = vadd.f32 %v3291, %v3403
        %v3405 = vpop.f32.mrb[0].mxu0
        %v3406 = vadd.f32 %v3293, %v3405
        %v3407 = vpop.f32.mrb[0].mxu0
        %v3408 = vadd.f32 %v3295, %v3407
        %v3409 = vpop.f32.mrb[0].mxu0
        %v3410 = vadd.f32 %v3297, %v3409
        %3411 = vmatprep.mubr.bf16.mxu0 %v1629
        %3412 = vmatmul.mubr.bf16.gmra.mrb[0].mxu0 %v1628
        %v3413 = vpop.f32.mrb[0].mxu0
        %v3414 = vadd.f32 %v3301, %v3413
        %v3415 = vpop.f32.mrb[0].mxu0
        %v3416 = vadd.f32 %v3303, %v3415
        %v3417 = vpop.f32.mrb[0].mxu0
        %v3418 = vadd.f32 %v3305, %v3417
        %v3419 = vpop.f32.mrb[0].mxu0
        %v3420 = vadd.f32 %v3307, %v3419
        %3421 = vmatprep.mubr.bf16.mxu0 %v1633
        %3422 = vmatmul.mubr.bf16.gmra.mrb[0].mxu0 %v1632
        %v3423 = vpop.f32.mrb[0].mxu0
        %v3424 = vadd.f32 %v3311, %v3423
        %v3425 = vpop.f32.mrb[0].mxu0
        %v3426 = vadd.f32 %v3313, %v3425
        %v3427 = vpop.f32.mrb[0].mxu0
        %v3428 = vadd.f32 %v3315, %v3427
        %v3429 = vpop.f32.mrb[0].mxu0
        %v3430 = vadd.f32 %v3317, %v3429
        %3431 = vmatprep.mubr.bf16.mxu0 %v1637
        %3432 = vmatmul.mubr.bf16.gmra.mrb[0].mxu0 %v1636
        %v3433 = vpop.f32.mrb[0].mxu0
        %v3434 = vadd.f32 %v3321, %v3433
        %v3435 = vpop.f32.mrb[0].mxu0
        %v3436 = vadd.f32 %v3323, %v3435
        %v3437 = vpop.f32.mrb[0].mxu0
        %v3438 = vadd.f32 %v3325, %v3437
        %v3439 = vpop.f32.mrb[0].mxu0
        %v3440 = vadd.f32 %v3327, %v3439
        %3441 = vdwg.mxu0
        %3442 = vmatprep.subr.bf16.mxu0 %v2707
        %3443 = vmatpush1.bf16.msra.mxu0 %v2706
        %3444 = vmatprep.subr.bf16.mxu0 %v2715
        %3445 = vmatpush1.bf16.msra.mxu0 %v2714
        %3446 = vmatprep.subr.bf16.mxu0 %v2723
        %3447 = vmatpush1.bf16.msra.mxu0 %v2722
        %3448 = vmatprep.subr.bf16.mxu0 %v2731
        %3449 = vmatpush1.bf16.msra.mxu0 %v2730
        %3450 = vmatprep.subr.bf16.mxu0 %v2739
        %3451 = vmatpush1.bf16.msra.mxu0 %v2738
        %3452 = vmatprep.subr.bf16.mxu0 %v2747
        %3453 = vmatpush1.bf16.msra.mxu0 %v2746
        %3454 = vmatprep.subr.bf16.mxu0 %v2755
        %3455 = vmatpush1.bf16.msra.mxu0 %v2754
        %3456 = vmatprep.subr.bf16.mxu0 %v2763
        %3457 = vmatpush1.bf16.msra.mxu0 %v2762
        %3458 = vmatprep.subr.bf16.mxu0 %v2771
        %3459 = vmatpush1.bf16.msra.mxu0 %v2770
        %3460 = vmatprep.subr.bf16.mxu0 %v2779
        %3461 = vmatpush1.bf16.msra.mxu0 %v2778
        %3462 = vmatprep.subr.bf16.mxu0 %v2787
        %3463 = vmatpush1.bf16.msra.mxu0 %v2786
        %3464 = vmatprep.subr.bf16.mxu0 %v2795
        %3465 = vmatpush1.bf16.msra.mxu0 %v2794
        %3466 = vmatprep.subr.bf16.mxu0 %v2803
        %3467 = vmatpush1.bf16.msra.mxu0 %v2802
        %3468 = vmatprep.subr.bf16.mxu0 %v2811
        %3469 = vmatpush1.bf16.msra.mxu0 %v2810
        %3470 = vmatprep.subr.bf16.mxu0 %v2819
        %3471 = vmatpush1.bf16.msra.mxu0 %v2818
        %3472 = vmatprep.subr.bf16.mxu0 %v2827
        %3473 = vmatpush1.bf16.msra.mxu0 %v2826
        %3474 = vmatprep.mubr.bf16.mxu0 %v1607
        %3475 = vmatmul.mubr.bf16.gmra.mrb[0].mxu0 %v1606
        %v3476 = vpop.f32.mrb[0].mxu0
        %v3477 = vadd.f32 %v1907, %v3476
        %v3478 = vpop.f32.mrb[0].mxu0
        %v3479 = vadd.f32 %v1911, %v3478
        %v3480 = vpop.f32.mrb[0].mxu0
        %v3481 = vadd.f32 %v1907, %v3480
        %v3482 = vpop.f32.mrb[0].mxu0
        %v3483 = vadd.f32 %v1911, %v3482
        %3484 = vmatprep.mubr.bf16.mxu0 %v1611
        %3485 = vmatmul.mubr.bf16.gmra.mrb[0].mxu0 %v1610
        %v3486 = vpop.f32.mrb[0].mxu0
        %v3487 = vadd.f32 %v1907, %v3486
        %v3488 = vpop.f32.mrb[0].mxu0
        %v3489 = vadd.f32 %v1911, %v3488
        %v3490 = vpop.f32.mrb[0].mxu0
        %v3491 = vadd.f32 %v1907, %v3490
        %v3492 = vpop.f32.mrb[0].mxu0
        %v3493 = vadd.f32 %v1911, %v3492
        %3494 = vmatprep.mubr.bf16.mxu0 %v1615
        %3495 = vmatmul.mubr.bf16.gmra.mrb[0].mxu0 %v1614
        %v3496 = vpop.f32.mrb[0].mxu0
        %v3497 = vadd.f32 %v1907, %v3496
        %v3498 = vpop.f32.mrb[0].mxu0
        %v3499 = vadd.f32 %v1911, %v3498
        %v3500 = vpop.f32.mrb[0].mxu0
        %v3501 = vadd.f32 %v1907, %v3500
        %v3502 = vpop.f32.mrb[0].mxu0
        %v3503 = vadd.f32 %v1911, %v3502
        %3504 = vmatprep.mubr.bf16.mxu0 %v1619
        %3505 = vmatmul.mubr.bf16.gmra.mrb[0].mxu0 %v1618
        %v3506 = vpop.f32.mrb[0].mxu0
        %v3507 = vadd.f32 %v1907, %v3506
        %v3508 = vpop.f32.mrb[0].mxu0
        %v3509 = vadd.f32 %v1911, %v3508
        %v3510 = vpop.f32.mrb[0].mxu0
        %v3511 = vadd.f32 %v1907, %v3510
        %v3512 = vpop.f32.mrb[0].mxu0
        %v3513 = vadd.f32 %v1911, %v3512
        %3514 = vmatprep.mubr.bf16.mxu0 %v1623
        %3515 = vmatmul.mubr.bf16.gmra.mrb[0].mxu0 %v1622
        %v3516 = vpop.f32.mrb[0].mxu0
        %v3517 = vadd.f32 %v1907, %v3516
        %v3518 = vpop.f32.mrb[0].mxu0
        %v3519 = vadd.f32 %v1911, %v3518
        %v3520 = vpop.f32.mrb[0].mxu0
        %v3521 = vadd.f32 %v1907, %v3520
        %v3522 = vpop.f32.mrb[0].mxu0
        %v3523 = vadd.f32 %v1911, %v3522
        %3524 = vmatprep.mubr.bf16.mxu0 %v1627
        %3525 = vmatmul.mubr.bf16.gmra.mrb[0].mxu0 %v1626
        %v3526 = vpop.f32.mrb[0].mxu0
        %v3527 = vadd.f32 %v1907, %v3526
        %v3528 = vpop.f32.mrb[0].mxu0
        %v3529 = vadd.f32 %v1911, %v3528
        %v3530 = vpop.f32.mrb[0].mxu0
        %v3531 = vadd.f32 %v1907, %v3530
        %v3532 = vpop.f32.mrb[0].mxu0
        %v3533 = vadd.f32 %v1911, %v3532
        %3534 = vmatprep.mubr.bf16.mxu0 %v1631
        %3535 = vmatmul.mubr.bf16.gmra.mrb[0].mxu0 %v1630
        %v3536 = vpop.f32.mrb[0].mxu0
        %v3537 = vadd.f32 %v1907, %v3536
        %v3538 = vpop.f32.mrb[0].mxu0
        %v3539 = vadd.f32 %v1911, %v3538
        %v3540 = vpop.f32.mrb[0].mxu0
        %v3541 = vadd.f32 %v1907, %v3540
        %v3542 = vpop.f32.mrb[0].mxu0
        %v3543 = vadd.f32 %v1911, %v3542
        %3544 = vmatprep.mubr.bf16.mxu0 %v1635
        %3545 = vmatmul.mubr.bf16.gmra.mrb[0].mxu0 %v1634
        %v3546 = vpop.f32.mrb[0].mxu0
        %v3547 = vadd.f32 %v1907, %v3546
        %v3548 = vpop.f32.mrb[0].mxu0
        %v3549 = vadd.f32 %v1911, %v3548
        %v3550 = vpop.f32.mrb[0].mxu0
        %v3551 = vadd.f32 %v1907, %v3550
        %v3552 = vpop.f32.mrb[0].mxu0
        %v3553 = vadd.f32 %v1911, %v3552
        %3554 = vdwg.mxu0
        %3555 = vmatprep.subr.bf16.mxu0 %v2835
        %3556 = vmatpush1.bf16.msra.mxu0 %v2834
        %3557 = vmatprep.subr.bf16.mxu0 %v2843
        %3558 = vmatpush1.bf16.msra.mxu0 %v2842
        %3559 = vmatprep.subr.bf16.mxu0 %v2851
        %3560 = vmatpush1.bf16.msra.mxu0 %v2850
        %3561 = vmatprep.subr.bf16.mxu0 %v2859
        %3562 = vmatpush1.bf16.msra.mxu0 %v2858
        %3563 = vmatprep.subr.bf16.mxu0 %v2867
        %3564 = vmatpush1.bf16.msra.mxu0 %v2866
        %3565 = vmatprep.subr.bf16.mxu0 %v2875
        %3566 = vmatpush1.bf16.msra.mxu0 %v2874
        %3567 = vmatprep.subr.bf16.mxu0 %v2883
        %3568 = vmatpush1.bf16.msra.mxu0 %v2882
        %3569 = vmatprep.subr.bf16.mxu0 %v2891
        %3570 = vmatpush1.bf16.msra.mxu0 %v2890
        %3571 = vmatprep.subr.bf16.mxu0 %v2899
        %3572 = vmatpush1.bf16.msra.mxu0 %v2898
        %3573 = vmatprep.subr.bf16.mxu0 %v2907
        %3574 = vmatpush1.bf16.msra.mxu0 %v2906
        %3575 = vmatprep.subr.bf16.mxu0 %v2915
        %3576 = vmatpush1.bf16.msra.mxu0 %v2914
        %3577 = vmatprep.subr.bf16.mxu0 %v2923
        %3578 = vmatpush1.bf16.msra.mxu0 %v2922
        %3579 = vmatprep.subr.bf16.mxu0 %v2931
        %3580 = vmatpush1.bf16.msra.mxu0 %v2930
        %3581 = vmatprep.subr.bf16.mxu0 %v2939
        %3582 = vmatpush1.bf16.msra.mxu0 %v2938
        %3583 = vmatprep.subr.bf16.mxu0 %v2947
        %3584 = vmatpush1.bf16.msra.mxu0 %v2946
        %3585 = vmatprep.subr.bf16.mxu0 %v2955
        %3586 = vmatpush1.bf16.msra.mxu0 %v2954
        %3587 = vmatprep.mubr.bf16.mxu0 %v1609
        %3588 = vmatmul.mubr.bf16.gmra.mrb[0].mxu0 %v1608
        %v3589 = vpop.f32.mrb[0].mxu0
        %v3590 = vadd.f32 %v3477, %v3589
        %v3591 = vpop.f32.mrb[0].mxu0
        %v3592 = vadd.f32 %v3479, %v3591
        %v3593 = vpop.f32.mrb[0].mxu0
        %v3594 = vadd.f32 %v3481, %v3593
        %v3595 = vpop.f32.mrb[0].mxu0
        %v3596 = vadd.f32 %v3483, %v3595
        %3597 = vmatprep.mubr.bf16.mxu0 %v1613
        %3598 = vmatmul.mubr.bf16.gmra.mrb[0].mxu0 %v1612
        %v3599 = vpop.f32.mrb[0].mxu0
        %v3600 = vadd.f32 %v3487, %v3599
        %v3601 = vpop.f32.mrb[0].mxu0
        %v3602 = vadd.f32 %v3489, %v3601
        %v3603 = vpop.f32.mrb[0].mxu0
        %v3604 = vadd.f32 %v3491, %v3603
        %v3605 = vpop.f32.mrb[0].mxu0
        %v3606 = vadd.f32 %v3493, %v3605
        %3607 = vmatprep.mubr.bf16.mxu0 %v1617
        %3608 = vmatmul.mubr.bf16.gmra.mrb[0].mxu0 %v1616
        %v3609 = vpop.f32.mrb[0].mxu0
        %v3610 = vadd.f32 %v3497, %v3609
        %v3611 = vpop.f32.mrb[0].mxu0
        %v3612 = vadd.f32 %v3499, %v3611
        %v3613 = vpop.f32.mrb[0].mxu0
        %v3614 = vadd.f32 %v3501, %v3613
        %v3615 = vpop.f32.mrb[0].mxu0
        %v3616 = vadd.f32 %v3503, %v3615
        %3617 = vmatprep.mubr.bf16.mxu0 %v1621
        %3618 = vmatmul.mubr.bf16.gmra.mrb[0].mxu0 %v1620
        %v3619 = vpop.f32.mrb[0].mxu0
        %v3620 = vadd.f32 %v3507, %v3619
        %v3621 = vpop.f32.mrb[0].mxu0
        %v3622 = vadd.f32 %v3509, %v3621
        %v3623 = vpop.f32.mrb[0].mxu0
        %v3624 = vadd.f32 %v3511, %v3623
        %v3625 = vpop.f32.mrb[0].mxu0
        %v3626 = vadd.f32 %v3513, %v3625
        %3627 = vmatprep.mubr.bf16.mxu0 %v1625
        %3628 = vmatmul.mubr.bf16.gmra.mrb[0].mxu0 %v1624
        %v3629 = vpop.f32.mrb[0].mxu0
        %v3630 = vadd.f32 %v3517, %v3629
        %v3631 = vpop.f32.mrb[0].mxu0
        %v3632 = vadd.f32 %v3519, %v3631
        %v3633 = vpop.f32.mrb[0].mxu0
        %v3634 = vadd.f32 %v3521, %v3633
        %v3635 = vpop.f32.mrb[0].mxu0
        %v3636 = vadd.f32 %v3523, %v3635
        %3637 = vmatprep.mubr.bf16.mxu0 %v1629
        %3638 = vmatmul.mubr.bf16.gmra.mrb[0].mxu0 %v1628
        %v3639 = vpop.f32.mrb[0].mxu0
        %v3640 = vadd.f32 %v3527, %v3639
        %v3641 = vpop.f32.mrb[0].mxu0
        %v3642 = vadd.f32 %v3529, %v3641
        %v3643 = vpop.f32.mrb[0].mxu0
        %v3644 = vadd.f32 %v3531, %v3643
        %v3645 = vpop.f32.mrb[0].mxu0
        %v3646 = vadd.f32 %v3533, %v3645
        %3647 = vmatprep.mubr.bf16.mxu0 %v1633
        %3648 = vmatmul.mubr.bf16.gmra.mrb[0].mxu0 %v1632
        %v3649 = vpop.f32.mrb[0].mxu0
        %v3650 = vadd.f32 %v3537, %v3649
        %v3651 = vpop.f32.mrb[0].mxu0
        %v3652 = vadd.f32 %v3539, %v3651
        %v3653 = vpop.f32.mrb[0].mxu0
        %v3654 = vadd.f32 %v3541, %v3653
        %v3655 = vpop.f32.mrb[0].mxu0
        %v3656 = vadd.f32 %v3543, %v3655
        %3657 = vmatprep.mubr.bf16.mxu0 %v1637
        %3658 = vmatmul.mubr.bf16.gmra.mrb[0].mxu0 %v1636
        %v3659 = vpop.f32.mrb[0].mxu0
        %v3660 = vadd.f32 %v3547, %v3659
        %v3661 = vpop.f32.mrb[0].mxu0
        %v3662 = vadd.f32 %v3549, %v3661
        %v3663 = vpop.f32.mrb[0].mxu0
        %v3664 = vadd.f32 %v3551, %v3663
        %v3665 = vpop.f32.mrb[0].mxu0
        %v3666 = vadd.f32 %v3553, %v3665
        %3667 = vdwg.mxu0
        %3668 = vmatprep.subr.bf16.mxu0 %v2709
        %3669 = vmatpush1.bf16.msra.mxu0 %v2708
        %3670 = vmatprep.subr.bf16.mxu0 %v2717
        %3671 = vmatpush1.bf16.msra.mxu0 %v2716
        %3672 = vmatprep.subr.bf16.mxu0 %v2725
        %3673 = vmatpush1.bf16.msra.mxu0 %v2724
        %3674 = vmatprep.subr.bf16.mxu0 %v2733
        %3675 = vmatpush1.bf16.msra.mxu0 %v2732
        %3676 = vmatprep.subr.bf16.mxu0 %v2741
        %3677 = vmatpush1.bf16.msra.mxu0 %v2740
        %3678 = vmatprep.subr.bf16.mxu0 %v2749
        %3679 = vmatpush1.bf16.msra.mxu0 %v2748
        %3680 = vmatprep.subr.bf16.mxu0 %v2757
        %3681 = vmatpush1.bf16.msra.mxu0 %v2756
        %3682 = vmatprep.subr.bf16.mxu0 %v2765
        %3683 = vmatpush1.bf16.msra.mxu0 %v2764
        %3684 = vmatprep.subr.bf16.mxu0 %v2773
        %3685 = vmatpush1.bf16.msra.mxu0 %v2772
        %3686 = vmatprep.subr.bf16.mxu0 %v2781
        %3687 = vmatpush1.bf16.msra.mxu0 %v2780
        %3688 = vmatprep.subr.bf16.mxu0 %v2789
        %3689 = vmatpush1.bf16.msra.mxu0 %v2788
        %3690 = vmatprep.subr.bf16.mxu0 %v2797
        %3691 = vmatpush1.bf16.msra.mxu0 %v2796
        %3692 = vmatprep.subr.bf16.mxu0 %v2805
        %3693 = vmatpush1.bf16.msra.mxu0 %v2804
        %3694 = vmatprep.subr.bf16.mxu0 %v2813
        %3695 = vmatpush1.bf16.msra.mxu0 %v2812
        %3696 = vmatprep.subr.bf16.mxu0 %v2821
        %3697 = vmatpush1.bf16.msra.mxu0 %v2820
        %3698 = vmatprep.subr.bf16.mxu0 %v2829
        %3699 = vmatpush1.bf16.msra.mxu0 %v2828
        %3700 = vmatprep.mubr.bf16.mxu0 %v1607
        %3701 = vmatmul.mubr.bf16.gmra.mrb[0].mxu0 %v1606
        %v3702 = vpop.f32.mrb[0].mxu0
        %v3703 = vadd.f32 %v1915, %v3702
        %v3704 = vpop.f32.mrb[0].mxu0
        %v3705 = vadd.f32 %v1919, %v3704
        %v3706 = vpop.f32.mrb[0].mxu0
        %v3707 = vadd.f32 %v1915, %v3706
        %v3708 = vpop.f32.mrb[0].mxu0
        %v3709 = vadd.f32 %v1919, %v3708
        %3710 = vmatprep.mubr.bf16.mxu0 %v1611
        %3711 = vmatmul.mubr.bf16.gmra.mrb[0].mxu0 %v1610
        %v3712 = vpop.f32.mrb[0].mxu0
        %v3713 = vadd.f32 %v1915, %v3712
        %v3714 = vpop.f32.mrb[0].mxu0
        %v3715 = vadd.f32 %v1919, %v3714
        %v3716 = vpop.f32.mrb[0].mxu0
        %v3717 = vadd.f32 %v1915, %v3716
        %v3718 = vpop.f32.mrb[0].mxu0
        %v3719 = vadd.f32 %v1919, %v3718
        %3720 = vmatprep.mubr.bf16.mxu0 %v1615
        %3721 = vmatmul.mubr.bf16.gmra.mrb[0].mxu0 %v1614
        %v3722 = vpop.f32.mrb[0].mxu0
        %v3723 = vadd.f32 %v1915, %v3722
        %v3724 = vpop.f32.mrb[0].mxu0
        %v3725 = vadd.f32 %v1919, %v3724
        %v3726 = vpop.f32.mrb[0].mxu0
        %v3727 = vadd.f32 %v1915, %v3726
        %v3728 = vpop.f32.mrb[0].mxu0
        %v3729 = vadd.f32 %v1919, %v3728
        %3730 = vmatprep.mubr.bf16.mxu0 %v1619
        %3731 = vmatmul.mubr.bf16.gmra.mrb[0].mxu0 %v1618
        %v3732 = vpop.f32.mrb[0].mxu0
        %v3733 = vadd.f32 %v1915, %v3732
        %v3734 = vpop.f32.mrb[0].mxu0
        %v3735 = vadd.f32 %v1919, %v3734
        %v3736 = vpop.f32.mrb[0].mxu0
        %v3737 = vadd.f32 %v1915, %v3736
        %v3738 = vpop.f32.mrb[0].mxu0
        %v3739 = vadd.f32 %v1919, %v3738
        %3740 = vmatprep.mubr.bf16.mxu0 %v1623
        %3741 = vmatmul.mubr.bf16.gmra.mrb[0].mxu0 %v1622
        %v3742 = vpop.f32.mrb[0].mxu0
        %v3743 = vadd.f32 %v1915, %v3742
        %v3744 = vpop.f32.mrb[0].mxu0
        %v3745 = vadd.f32 %v1919, %v3744
        %v3746 = vpop.f32.mrb[0].mxu0
        %v3747 = vadd.f32 %v1915, %v3746
        %v3748 = vpop.f32.mrb[0].mxu0
        %v3749 = vadd.f32 %v1919, %v3748
        %3750 = vmatprep.mubr.bf16.mxu0 %v1627
        %3751 = vmatmul.mubr.bf16.gmra.mrb[0].mxu0 %v1626
        %v3752 = vpop.f32.mrb[0].mxu0
        %v3753 = vadd.f32 %v1915, %v3752
        %v3754 = vpop.f32.mrb[0].mxu0
        %v3755 = vadd.f32 %v1919, %v3754
        %v3756 = vpop.f32.mrb[0].mxu0
        %v3757 = vadd.f32 %v1915, %v3756
        %v3758 = vpop.f32.mrb[0].mxu0
        %v3759 = vadd.f32 %v1919, %v3758
        %3760 = vmatprep.mubr.bf16.mxu0 %v1631
        %3761 = vmatmul.mubr.bf16.gmra.mrb[0].mxu0 %v1630
        %v3762 = vpop.f32.mrb[0].mxu0
        %v3763 = vadd.f32 %v1915, %v3762
        %v3764 = vpop.f32.mrb[0].mxu0
        %v3765 = vadd.f32 %v1919, %v3764
        %v3766 = vpop.f32.mrb[0].mxu0
        %v3767 = vadd.f32 %v1915, %v3766
        %v3768 = vpop.f32.mrb[0].mxu0
        %v3769 = vadd.f32 %v1919, %v3768
        %3770 = vmatprep.mubr.bf16.mxu0 %v1635
        %3771 = vmatmul.mubr.bf16.gmra.mrb[0].mxu0 %v1634
        %v3772 = vpop.f32.mrb[0].mxu0
        %v3773 = vadd.f32 %v1915, %v3772
        %v3774 = vpop.f32.mrb[0].mxu0
        %v3775 = vadd.f32 %v1919, %v3774
        %v3776 = vpop.f32.mrb[0].mxu0
        %v3777 = vadd.f32 %v1915, %v3776
        %v3778 = vpop.f32.mrb[0].mxu0
        %v3779 = vadd.f32 %v1919, %v3778
        %3780 = vdwg.mxu0
        %3781 = vmatprep.subr.bf16.mxu0 %v2837
        %3782 = vmatpush1.bf16.msra.mxu0 %v2836
        %3783 = vmatprep.subr.bf16.mxu0 %v2845
        %3784 = vmatpush1.bf16.msra.mxu0 %v2844
        %3785 = vmatprep.subr.bf16.mxu0 %v2853
        %3786 = vmatpush1.bf16.msra.mxu0 %v2852
        %3787 = vmatprep.subr.bf16.mxu0 %v2861
        %3788 = vmatpush1.bf16.msra.mxu0 %v2860
        %3789 = vmatprep.subr.bf16.mxu0 %v2869
        %3790 = vmatpush1.bf16.msra.mxu0 %v2868
        %3791 = vmatprep.subr.bf16.mxu0 %v2877
        %3792 = vmatpush1.bf16.msra.mxu0 %v2876
        %3793 = vmatprep.subr.bf16.mxu0 %v2885
        %3794 = vmatpush1.bf16.msra.mxu0 %v2884
        %3795 = vmatprep.subr.bf16.mxu0 %v2893
        %3796 = vmatpush1.bf16.msra.mxu0 %v2892
        %3797 = vmatprep.subr.bf16.mxu0 %v2901
        %3798 = vmatpush1.bf16.msra.mxu0 %v2900
        %3799 = vmatprep.subr.bf16.mxu0 %v2909
        %3800 = vmatpush1.bf16.msra.mxu0 %v2908
        %3801 = vmatprep.subr.bf16.mxu0 %v2917
        %3802 = vmatpush1.bf16.msra.mxu0 %v2916
        %3803 = vmatprep.subr.bf16.mxu0 %v2925
        %3804 = vmatpush1.bf16.msra.mxu0 %v2924
        %3805 = vmatprep.subr.bf16.mxu0 %v2933
        %3806 = vmatpush1.bf16.msra.mxu0 %v2932
        %3807 = vmatprep.subr.bf16.mxu0 %v2941
        %3808 = vmatpush1.bf16.msra.mxu0 %v2940
        %3809 = vmatprep.subr.bf16.mxu0 %v2949
        %3810 = vmatpush1.bf16.msra.mxu0 %v2948
        %3811 = vmatprep.subr.bf16.mxu0 %v2957
        %3812 = vmatpush1.bf16.msra.mxu0 %v2956
        %3813 = vmatprep.mubr.bf16.mxu0 %v1609
        %3814 = vmatmul.mubr.bf16.gmra.mrb[0].mxu0 %v1608
        %v3815 = vpop.f32.mrb[0].mxu0
        %v3816 = vadd.f32 %v3703, %v3815
        %v3817 = vpop.f32.mrb[0].mxu0
        %v3818 = vadd.f32 %v3705, %v3817
        %v3819 = vpop.f32.mrb[0].mxu0
        %v3820 = vadd.f32 %v3707, %v3819
        %v3821 = vpop.f32.mrb[0].mxu0
        %v3822 = vadd.f32 %v3709, %v3821
        %3823 = vmatprep.mubr.bf16.mxu0 %v1613
        %3824 = vmatmul.mubr.bf16.gmra.mrb[0].mxu0 %v1612
        %v3825 = vpop.f32.mrb[0].mxu0
        %v3826 = vadd.f32 %v3713, %v3825
        %v3827 = vpop.f32.mrb[0].mxu0
        %v3828 = vadd.f32 %v3715, %v3827
        %v3829 = vpop.f32.mrb[0].mxu0
        %v3830 = vadd.f32 %v3717, %v3829
        %v3831 = vpop.f32.mrb[0].mxu0
        %v3832 = vadd.f32 %v3719, %v3831
        %3833 = vmatprep.mubr.bf16.mxu0 %v1617
        %3834 = vmatmul.mubr.bf16.gmra.mrb[0].mxu0 %v1616
        %v3835 = vpop.f32.mrb[0].mxu0
        %v3836 = vadd.f32 %v3723, %v3835
        %v3837 = vpop.f32.mrb[0].mxu0
        %v3838 = vadd.f32 %v3725, %v3837
        %v3839 = vpop.f32.mrb[0].mxu0
        %v3840 = vadd.f32 %v3727, %v3839
        %v3841 = vpop.f32.mrb[0].mxu0
        %v3842 = vadd.f32 %v3729, %v3841
        %3843 = vmatprep.mubr.bf16.mxu0 %v1621
        %3844 = vmatmul.mubr.bf16.gmra.mrb[0].mxu0 %v1620
        %v3845 = vpop.f32.mrb[0].mxu0
        %v3846 = vadd.f32 %v3733, %v3845
        %v3847 = vpop.f32.mrb[0].mxu0
        %v3848 = vadd.f32 %v3735, %v3847
        %v3849 = vpop.f32.mrb[0].mxu0
        %v3850 = vadd.f32 %v3737, %v3849
        %v3851 = vpop.f32.mrb[0].mxu0
        %v3852 = vadd.f32 %v3739, %v3851
        %3853 = vmatprep.mubr.bf16.mxu0 %v1625
        %3854 = vmatmul.mubr.bf16.gmra.mrb[0].mxu0 %v1624
        %v3855 = vpop.f32.mrb[0].mxu0
        %v3856 = vadd.f32 %v3743, %v3855
        %v3857 = vpop.f32.mrb[0].mxu0
        %v3858 = vadd.f32 %v3745, %v3857
        %v3859 = vpop.f32.mrb[0].mxu0
        %v3860 = vadd.f32 %v3747, %v3859
        %v3861 = vpop.f32.mrb[0].mxu0
        %v3862 = vadd.f32 %v3749, %v3861
        %3863 = vmatprep.mubr.bf16.mxu0 %v1629
        %3864 = vmatmul.mubr.bf16.gmra.mrb[0].mxu0 %v1628
        %v3865 = vpop.f32.mrb[0].mxu0
        %v3866 = vadd.f32 %v3753, %v3865
        %v3867 = vpop.f32.mrb[0].mxu0
        %v3868 = vadd.f32 %v3755, %v3867
        %v3869 = vpop.f32.mrb[0].mxu0
        %v3870 = vadd.f32 %v3757, %v3869
        %v3871 = vpop.f32.mrb[0].mxu0
        %v3872 = vadd.f32 %v3759, %v3871
        %3873 = vmatprep.mubr.bf16.mxu0 %v1633
        %3874 = vmatmul.mubr.bf16.gmra.mrb[0].mxu0 %v1632
        %v3875 = vpop.f32.mrb[0].mxu0
        %v3876 = vadd.f32 %v3763, %v3875
        %v3877 = vpop.f32.mrb[0].mxu0
        %v3878 = vadd.f32 %v3765, %v3877
        %v3879 = vpop.f32.mrb[0].mxu0
        %v3880 = vadd.f32 %v3767, %v3879
        %v3881 = vpop.f32.mrb[0].mxu0
        %v3882 = vadd.f32 %v3769, %v3881
        %3883 = vmatprep.mubr.bf16.mxu0 %v1637
        %3884 = vmatmul.mubr.bf16.gmra.mrb[0].mxu0 %v1636
        %v3885 = vpop.f32.mrb[0].mxu0
        %v3886 = vadd.f32 %v3773, %v3885
        %v3887 = vpop.f32.mrb[0].mxu0
        %v3888 = vadd.f32 %v3775, %v3887
        %v3889 = vpop.f32.mrb[0].mxu0
        %v3890 = vadd.f32 %v3777, %v3889
        %v3891 = vpop.f32.mrb[0].mxu0
        %v3892 = vadd.f32 %v3779, %v3891
        %3893 = vdwg.mxu0
        %3894 = vmatprep.subr.bf16.mxu0 %v2711
        %3895 = vmatpush1.bf16.msra.mxu0 %v2710
        %3896 = vmatprep.subr.bf16.mxu0 %v2719
        %3897 = vmatpush1.bf16.msra.mxu0 %v2718
        %3898 = vmatprep.subr.bf16.mxu0 %v2727
        %3899 = vmatpush1.bf16.msra.mxu0 %v2726
        %3900 = vmatprep.subr.bf16.mxu0 %v2735
        %3901 = vmatpush1.bf16.msra.mxu0 %v2734
        %3902 = vmatprep.subr.bf16.mxu0 %v2743
        %3903 = vmatpush1.bf16.msra.mxu0 %v2742
        %3904 = vmatprep.subr.bf16.mxu0 %v2751
        %3905 = vmatpush1.bf16.msra.mxu0 %v2750
        %3906 = vmatprep.subr.bf16.mxu0 %v2759
        %3907 = vmatpush1.bf16.msra.mxu0 %v2758
        %3908 = vmatprep.subr.bf16.mxu0 %v2767
        %3909 = vmatpush1.bf16.msra.mxu0 %v2766
        %3910 = vmatprep.subr.bf16.mxu0 %v2775
        %3911 = vmatpush1.bf16.msra.mxu0 %v2774
        %3912 = vmatprep.subr.bf16.mxu0 %v2783
        %3913 = vmatpush1.bf16.msra.mxu0 %v2782
        %3914 = vmatprep.subr.bf16.mxu0 %v2791
        %3915 = vmatpush1.bf16.msra.mxu0 %v2790
        %3916 = vmatprep.subr.bf16.mxu0 %v2799
        %3917 = vmatpush1.bf16.msra.mxu0 %v2798
        %3918 = vmatprep.subr.bf16.mxu0 %v2807
        %3919 = vmatpush1.bf16.msra.mxu0 %v2806
        %3920 = vmatprep.subr.bf16.mxu0 %v2815
        %3921 = vmatpush1.bf16.msra.mxu0 %v2814
        %3922 = vmatprep.subr.bf16.mxu0 %v2823
        %3923 = vmatpush1.bf16.msra.mxu0 %v2822
        %3924 = vmatprep.subr.bf16.mxu0 %v2831
        %3925 = vmatpush1.bf16.msra.mxu0 %v2830
        %3926 = vmatprep.mubr.bf16.mxu0 %v1607
        %3927 = vmatmul.mubr.bf16.gmra.mrb[0].mxu0 %v1606
        %v3928 = vpop.f32.mrb[0].mxu0
        %v3929 = vadd.f32 %v1923, %v3928
        %v3930 = vpop.f32.mrb[0].mxu0
        %v3931 = vadd.f32 %v1927, %v3930
        %v3932 = vpop.f32.mrb[0].mxu0
        %v3933 = vadd.f32 %v1923, %v3932
        %v3934 = vpop.f32.mrb[0].mxu0
        %v3935 = vadd.f32 %v1927, %v3934
        %3936 = vmatprep.mubr.bf16.mxu0 %v1611
        %3937 = vmatmul.mubr.bf16.gmra.mrb[0].mxu0 %v1610
        %v3938 = vpop.f32.mrb[0].mxu0
        %v3939 = vadd.f32 %v1923, %v3938
        %v3940 = vpop.f32.mrb[0].mxu0
        %v3941 = vadd.f32 %v1927, %v3940
        %v3942 = vpop.f32.mrb[0].mxu0
        %v3943 = vadd.f32 %v1923, %v3942
        %v3944 = vpop.f32.mrb[0].mxu0
        %v3945 = vadd.f32 %v1927, %v3944
        %3946 = vmatprep.mubr.bf16.mxu0 %v1615
        %3947 = vmatmul.mubr.bf16.gmra.mrb[0].mxu0 %v1614
        %v3948 = vpop.f32.mrb[0].mxu0
        %v3949 = vadd.f32 %v1923, %v3948
        %v3950 = vpop.f32.mrb[0].mxu0
        %v3951 = vadd.f32 %v1927, %v3950
        %v3952 = vpop.f32.mrb[0].mxu0
        %v3953 = vadd.f32 %v1923, %v3952
        %v3954 = vpop.f32.mrb[0].mxu0
        %v3955 = vadd.f32 %v1927, %v3954
        %3956 = vmatprep.mubr.bf16.mxu0 %v1619
        %3957 = vmatmul.mubr.bf16.gmra.mrb[0].mxu0 %v1618
        %v3958 = vpop.f32.mrb[0].mxu0
        %v3959 = vadd.f32 %v1923, %v3958
        %v3960 = vpop.f32.mrb[0].mxu0
        %v3961 = vadd.f32 %v1927, %v3960
        %v3962 = vpop.f32.mrb[0].mxu0
        %v3963 = vadd.f32 %v1923, %v3962
        %v3964 = vpop.f32.mrb[0].mxu0
        %v3965 = vadd.f32 %v1927, %v3964
        %3966 = vmatprep.mubr.bf16.mxu0 %v1623
        %3967 = vmatmul.mubr.bf16.gmra.mrb[0].mxu0 %v1622
        %v3968 = vpop.f32.mrb[0].mxu0
        %v3969 = vadd.f32 %v1923, %v3968
        %v3970 = vpop.f32.mrb[0].mxu0
        %v3971 = vadd.f32 %v1927, %v3970
        %v3972 = vpop.f32.mrb[0].mxu0
        %v3973 = vadd.f32 %v1923, %v3972
        %v3974 = vpop.f32.mrb[0].mxu0
        %v3975 = vadd.f32 %v1927, %v3974
        %3976 = vmatprep.mubr.bf16.mxu0 %v1627
        %3977 = vmatmul.mubr.bf16.gmra.mrb[0].mxu0 %v1626
        %v3978 = vpop.f32.mrb[0].mxu0
        %v3979 = vadd.f32 %v1923, %v3978
        %v3980 = vpop.f32.mrb[0].mxu0
        %v3981 = vadd.f32 %v1927, %v3980
        %v3982 = vpop.f32.mrb[0].mxu0
        %v3983 = vadd.f32 %v1923, %v3982
        %v3984 = vpop.f32.mrb[0].mxu0
        %v3985 = vadd.f32 %v1927, %v3984
        %3986 = vmatprep.mubr.bf16.mxu0 %v1631
        %3987 = vmatmul.mubr.bf16.gmra.mrb[0].mxu0 %v1630
        %v3988 = vpop.f32.mrb[0].mxu0
        %v3989 = vadd.f32 %v1923, %v3988
        %v3990 = vpop.f32.mrb[0].mxu0
        %v3991 = vadd.f32 %v1927, %v3990
        %v3992 = vpop.f32.mrb[0].mxu0
        %v3993 = vadd.f32 %v1923, %v3992
        %v3994 = vpop.f32.mrb[0].mxu0
        %v3995 = vadd.f32 %v1927, %v3994
        %3996 = vmatprep.mubr.bf16.mxu0 %v1635
        %3997 = vmatmul.mubr.bf16.gmra.mrb[0].mxu0 %v1634
        %v3998 = vpop.f32.mrb[0].mxu0
        %v3999 = vadd.f32 %v1923, %v3998
        %v4000 = vpop.f32.mrb[0].mxu0
        %v4001 = vadd.f32 %v1927, %v4000
        %v4002 = vpop.f32.mrb[0].mxu0
        %v4003 = vadd.f32 %v1923, %v4002
        %v4004 = vpop.f32.mrb[0].mxu0
        %v4005 = vadd.f32 %v1927, %v4004
        %4006 = vdwg.mxu0
        %4007 = vmatprep.subr.bf16.mxu0 %v2839
        %4008 = vmatpush1.bf16.msra.mxu0 %v2838
        %4009 = vmatprep.subr.bf16.mxu0 %v2847
        %4010 = vmatpush1.bf16.msra.mxu0 %v2846
        %4011 = vmatprep.subr.bf16.mxu0 %v2855
        %4012 = vmatpush1.bf16.msra.mxu0 %v2854
        %4013 = vmatprep.subr.bf16.mxu0 %v2863
        %4014 = vmatpush1.bf16.msra.mxu0 %v2862
        %4015 = vmatprep.subr.bf16.mxu0 %v2871
        %4016 = vmatpush1.bf16.msra.mxu0 %v2870
        %4017 = vmatprep.subr.bf16.mxu0 %v2879
        %4018 = vmatpush1.bf16.msra.mxu0 %v2878
        %4019 = vmatprep.subr.bf16.mxu0 %v2887
        %4020 = vmatpush1.bf16.msra.mxu0 %v2886
        %4021 = vmatprep.subr.bf16.mxu0 %v2895
        %4022 = vmatpush1.bf16.msra.mxu0 %v2894
        %4023 = vmatprep.subr.bf16.mxu0 %v2903
        %4024 = vmatpush1.bf16.msra.mxu0 %v2902
        %4025 = vmatprep.subr.bf16.mxu0 %v2911
        %4026 = vmatpush1.bf16.msra.mxu0 %v2910
        %4027 = vmatprep.subr.bf16.mxu0 %v2919
        %4028 = vmatpush1.bf16.msra.mxu0 %v2918
        %4029 = vmatprep.subr.bf16.mxu0 %v2927
        %4030 = vmatpush1.bf16.msra.mxu0 %v2926
        %4031 = vmatprep.subr.bf16.mxu0 %v2935
        %4032 = vmatpush1.bf16.msra.mxu0 %v2934
        %4033 = vmatprep.subr.bf16.mxu0 %v2943
        %4034 = vmatpush1.bf16.msra.mxu0 %v2942
        %4035 = vmatprep.subr.bf16.mxu0 %v2951
        %4036 = vmatpush1.bf16.msra.mxu0 %v2950
        %4037 = vmatprep.subr.bf16.mxu0 %v2959
        %4038 = vmatpush1.bf16.msra.mxu0 %v2958
        %4039 = vmatprep.mubr.bf16.mxu0 %v1609
        %4040 = vmatmul.mubr.bf16.gmra.mrb[0].mxu0 %v1608
        %v4041 = vpop.f32.mrb[0].mxu0
        %v4042 = vadd.f32 %v3929, %v4041
        %v4043 = vpop.f32.mrb[0].mxu0
        %v4044 = vadd.f32 %v3931, %v4043
        %v4045 = vpop.f32.mrb[0].mxu0
        %v4046 = vadd.f32 %v3933, %v4045
        %v4047 = vpop.f32.mrb[0].mxu0
        %v4048 = vadd.f32 %v3935, %v4047
        %4049 = vmatprep.mubr.bf16.mxu0 %v1613
        %4050 = vmatmul.mubr.bf16.gmra.mrb[0].mxu0 %v1612
        %v4051 = vpop.f32.mrb[0].mxu0
        %v4052 = vadd.f32 %v3939, %v4051
        %v4053 = vpop.f32.mrb[0].mxu0
        %v4054 = vadd.f32 %v3941, %v4053
        %v4055 = vpop.f32.mrb[0].mxu0
        %v4056 = vadd.f32 %v3943, %v4055
        %v4057 = vpop.f32.mrb[0].mxu0
        %v4058 = vadd.f32 %v3945, %v4057
        %4059 = vmatprep.mubr.bf16.mxu0 %v1617
        %4060 = vmatmul.mubr.bf16.gmra.mrb[0].mxu0 %v1616
        %v4061 = vpop.f32.mrb[0].mxu0
        %v4062 = vadd.f32 %v3949, %v4061
        %v4063 = vpop.f32.mrb[0].mxu0
        %v4064 = vadd.f32 %v3951, %v4063
        %v4065 = vpop.f32.mrb[0].mxu0
        %v4066 = vadd.f32 %v3953, %v4065
        %v4067 = vpop.f32.mrb[0].mxu0
        %v4068 = vadd.f32 %v3955, %v4067
        %4069 = vmatprep.mubr.bf16.mxu0 %v1621
        %4070 = vmatmul.mubr.bf16.gmra.mrb[0].mxu0 %v1620
        %v4071 = vpop.f32.mrb[0].mxu0
        %v4072 = vadd.f32 %v3959, %v4071
        %v4073 = vpop.f32.mrb[0].mxu0
        %v4074 = vadd.f32 %v3961, %v4073
        %v4075 = vpop.f32.mrb[0].mxu0
        %v4076 = vadd.f32 %v3963, %v4075
        %v4077 = vpop.f32.mrb[0].mxu0
        %v4078 = vadd.f32 %v3965, %v4077
        %4079 = vmatprep.mubr.bf16.mxu0 %v1625
        %4080 = vmatmul.mubr.bf16.gmra.mrb[0].mxu0 %v1624
        %v4081 = vpop.f32.mrb[0].mxu0
        %v4082 = vadd.f32 %v3969, %v4081
        %v4083 = vpop.f32.mrb[0].mxu0
        %v4084 = vadd.f32 %v3971, %v4083
        %v4085 = vpop.f32.mrb[0].mxu0
        %v4086 = vadd.f32 %v3973, %v4085
        %v4087 = vpop.f32.mrb[0].mxu0
        %v4088 = vadd.f32 %v3975, %v4087
        %4089 = vmatprep.mubr.bf16.mxu0 %v1629
        %4090 = vmatmul.mubr.bf16.gmra.mrb[0].mxu0 %v1628
        %v4091 = vpop.f32.mrb[0].mxu0
        %v4092 = vadd.f32 %v3979, %v4091
        %v4093 = vpop.f32.mrb[0].mxu0
        %v4094 = vadd.f32 %v3981, %v4093
        %v4095 = vpop.f32.mrb[0].mxu0
        %v4096 = vadd.f32 %v3983, %v4095
        %v4097 = vpop.f32.mrb[0].mxu0
        %v4098 = vadd.f32 %v3985, %v4097
        %4099 = vmatprep.mubr.bf16.mxu0 %v1633
        %4100 = vmatmul.mubr.bf16.gmra.mrb[0].mxu0 %v1632
        %v4101 = vpop.f32.mrb[0].mxu0
        %v4102 = vadd.f32 %v3989, %v4101
        %v4103 = vpop.f32.mrb[0].mxu0
        %v4104 = vadd.f32 %v3991, %v4103
        %v4105 = vpop.f32.mrb[0].mxu0
        %v4106 = vadd.f32 %v3993, %v4105
        %v4107 = vpop.f32.mrb[0].mxu0
        %v4108 = vadd.f32 %v3995, %v4107
        %4109 = vmatprep.mubr.bf16.mxu0 %v1637
        %4110 = vmatmul.mubr.bf16.gmra.mrb[0].mxu0 %v1636
        %v4111 = vpop.f32.mrb[0].mxu0
        %v4112 = vadd.f32 %v3999, %v4111
        %v4113 = vpop.f32.mrb[0].mxu0
        %v4114 = vadd.f32 %v4001, %v4113
        %v4115 = vpop.f32.mrb[0].mxu0
        %v4116 = vadd.f32 %v4003, %v4115
        %v4117 = vpop.f32.mrb[0].mxu0
        %v4118 = vadd.f32 %v4005, %v4117
        %4119 = vdwg.mxu0
        %vm4120 = vcmp.gt.f32.partialorder %v3364, 0.0
        %vm4121 = vcmp.gt.f32.partialorder %v3366, 0.0
        %vm4122 = vcmp.gt.f32.partialorder %v3590, 0.0
        %vm4123 = vcmp.gt.f32.partialorder %v3592, 0.0
        %vm4124 = vcmp.gt.f32.partialorder %v3816, 0.0
        %vm4125 = vcmp.gt.f32.partialorder %v3818, 0.0
        %vm4126 = vcmp.gt.f32.partialorder %v4042, 0.0
        %vm4127 = vcmp.gt.f32.partialorder %v4044, 0.0
        %vm4128 = vcmp.gt.f32.partialorder %v3368, 0.0
        %vm4129 = vcmp.gt.f32.partialorder %v3370, 0.0
        %vm4130 = vcmp.gt.f32.partialorder %v3594, 0.0
        %vm4131 = vcmp.gt.f32.partialorder %v3596, 0.0
        %vm4132 = vcmp.gt.f32.partialorder %v3820, 0.0
        %vm4133 = vcmp.gt.f32.partialorder %v3822, 0.0
        %vm4134 = vcmp.gt.f32.partialorder %v4046, 0.0
        %vm4135 = vcmp.gt.f32.partialorder %v4048, 0.0
        %vm4136 = vcmp.gt.f32.partialorder %v3374, 0.0
        %vm4137 = vcmp.gt.f32.partialorder %v3376, 0.0
        %vm4138 = vcmp.gt.f32.partialorder %v3600, 0.0
        %vm4139 = vcmp.gt.f32.partialorder %v3602, 0.0
        %vm4140 = vcmp.gt.f32.partialorder %v3826, 0.0
        %vm4141 = vcmp.gt.f32.partialorder %v3828, 0.0
        %vm4142 = vcmp.gt.f32.partialorder %v4052, 0.0
        %vm4143 = vcmp.gt.f32.partialorder %v4054, 0.0
        %vm4144 = vcmp.gt.f32.partialorder %v3378, 0.0
        %vm4145 = vcmp.gt.f32.partialorder %v3380, 0.0
        %vm4146 = vcmp.gt.f32.partialorder %v3604, 0.0
        %vm4147 = vcmp.gt.f32.partialorder %v3606, 0.0
        %vm4148 = vcmp.gt.f32.partialorder %v3830, 0.0
        %vm4149 = vcmp.gt.f32.partialorder %v3832, 0.0
        %vm4150 = vcmp.gt.f32.partialorder %v4056, 0.0
        %vm4151 = vcmp.gt.f32.partialorder %v4058, 0.0
        %vm4152 = vcmp.gt.f32.partialorder %v3384, 0.0
        %vm4153 = vcmp.gt.f32.partialorder %v3386, 0.0
        %vm4154 = vcmp.gt.f32.partialorder %v3610, 0.0
        %vm4155 = vcmp.gt.f32.partialorder %v3612, 0.0
        %vm4156 = vcmp.gt.f32.partialorder %v3836, 0.0
        %vm4157 = vcmp.gt.f32.partialorder %v3838, 0.0
        %vm4158 = vcmp.gt.f32.partialorder %v4062, 0.0
        %vm4159 = vcmp.gt.f32.partialorder %v4064, 0.0
        %vm4160 = vcmp.gt.f32.partialorder %v3388, 0.0
        %vm4161 = vcmp.gt.f32.partialorder %v3390, 0.0
        %vm4162 = vcmp.gt.f32.partialorder %v3614, 0.0
        %vm4163 = vcmp.gt.f32.partialorder %v3616, 0.0
        %vm4164 = vcmp.gt.f32.partialorder %v3840, 0.0
        %vm4165 = vcmp.gt.f32.partialorder %v3842, 0.0
        %vm4166 = vcmp.gt.f32.partialorder %v4066, 0.0
        %vm4167 = vcmp.gt.f32.partialorder %v4068, 0.0
        %vm4168 = vcmp.gt.f32.partialorder %v3394, 0.0
        %vm4169 = vcmp.gt.f32.partialorder %v3396, 0.0
        %vm4170 = vcmp.gt.f32.partialorder %v3620, 0.0
        %vm4171 = vcmp.gt.f32.partialorder %v3622, 0.0
        %vm4172 = vcmp.gt.f32.partialorder %v3846, 0.0
        %vm4173 = vcmp.gt.f32.partialorder %v3848, 0.0
        %vm4174 = vcmp.gt.f32.partialorder %v4072, 0.0
        %vm4175 = vcmp.gt.f32.partialorder %v4074, 0.0
        %vm4176 = vcmp.gt.f32.partialorder %v3398, 0.0
        %vm4177 = vcmp.gt.f32.partialorder %v3400, 0.0
        %vm4178 = vcmp.gt.f32.partialorder %v3624, 0.0
        %vm4179 = vcmp.gt.f32.partialorder %v3626, 0.0
        %vm4180 = vcmp.gt.f32.partialorder %v3850, 0.0
        %vm4181 = vcmp.gt.f32.partialorder %v3852, 0.0
        %vm4182 = vcmp.gt.f32.partialorder %v4076, 0.0
        %vm4183 = vcmp.gt.f32.partialorder %v4078, 0.0
        %vm4184 = vcmp.gt.f32.partialorder %v3404, 0.0
        %vm4185 = vcmp.gt.f32.partialorder %v3406, 0.0
        %vm4186 = vcmp.gt.f32.partialorder %v3630, 0.0
        %vm4187 = vcmp.gt.f32.partialorder %v3632, 0.0
        %vm4188 = vcmp.gt.f32.partialorder %v3856, 0.0
        %vm4189 = vcmp.gt.f32.partialorder %v3858, 0.0
        %vm4190 = vcmp.gt.f32.partialorder %v4082, 0.0
        %vm4191 = vcmp.gt.f32.partialorder %v4084, 0.0
        %vm4192 = vcmp.gt.f32.partialorder %v3408, 0.0
        %vm4193 = vcmp.gt.f32.partialorder %v3410, 0.0
        %vm4194 = vcmp.gt.f32.partialorder %v3634, 0.0
        %vm4195 = vcmp.gt.f32.partialorder %v3636, 0.0
        %vm4196 = vcmp.gt.f32.partialorder %v3860, 0.0
        %vm4197 = vcmp.gt.f32.partialorder %v3862, 0.0
        %vm4198 = vcmp.gt.f32.partialorder %v4086, 0.0
        %vm4199 = vcmp.gt.f32.partialorder %v4088, 0.0
        %vm4200 = vcmp.gt.f32.partialorder %v3414, 0.0
        %vm4201 = vcmp.gt.f32.partialorder %v3416, 0.0
        %vm4202 = vcmp.gt.f32.partialorder %v3640, 0.0
        %vm4203 = vcmp.gt.f32.partialorder %v3642, 0.0
        %vm4204 = vcmp.gt.f32.partialorder %v3866, 0.0
        %vm4205 = vcmp.gt.f32.partialorder %v3868, 0.0
        %vm4206 = vcmp.gt.f32.partialorder %v4092, 0.0
        %vm4207 = vcmp.gt.f32.partialorder %v4094, 0.0
        %vm4208 = vcmp.gt.f32.partialorder %v3418, 0.0
        %vm4209 = vcmp.gt.f32.partialorder %v3420, 0.0
        %vm4210 = vcmp.gt.f32.partialorder %v3644, 0.0
        %vm4211 = vcmp.gt.f32.partialorder %v3646, 0.0
        %vm4212 = vcmp.gt.f32.partialorder %v3870, 0.0
        %vm4213 = vcmp.gt.f32.partialorder %v3872, 0.0
        %vm4214 = vcmp.gt.f32.partialorder %v4096, 0.0
        %vm4215 = vcmp.gt.f32.partialorder %v4098, 0.0
        %vm4216 = vcmp.gt.f32.partialorder %v3424, 0.0
        %vm4217 = vcmp.gt.f32.partialorder %v3426, 0.0
        %vm4218 = vcmp.gt.f32.partialorder %v3650, 0.0
        %vm4219 = vcmp.gt.f32.partialorder %v3652, 0.0
        %vm4220 = vcmp.gt.f32.partialorder %v3876, 0.0
        %vm4221 = vcmp.gt.f32.partialorder %v3878, 0.0
        %vm4222 = vcmp.gt.f32.partialorder %v4102, 0.0
        %vm4223 = vcmp.gt.f32.partialorder %v4104, 0.0
        %vm4224 = vcmp.gt.f32.partialorder %v3428, 0.0
        %vm4225 = vcmp.gt.f32.partialorder %v3430, 0.0
        %vm4226 = vcmp.gt.f32.partialorder %v3654, 0.0
        %vm4227 = vcmp.gt.f32.partialorder %v3656, 0.0
        %vm4228 = vcmp.gt.f32.partialorder %v3880, 0.0
        %vm4229 = vcmp.gt.f32.partialorder %v3882, 0.0
        %vm4230 = vcmp.gt.f32.partialorder %v4106, 0.0
        %vm4231 = vcmp.gt.f32.partialorder %v4108, 0.0
        %vm4232 = vcmp.gt.f32.partialorder %v3434, 0.0
        %vm4233 = vcmp.gt.f32.partialorder %v3436, 0.0
        %vm4234 = vcmp.gt.f32.partialorder %v3660, 0.0
        %vm4235 = vcmp.gt.f32.partialorder %v3662, 0.0
        %vm4236 = vcmp.gt.f32.partialorder %v3886, 0.0
        %vm4237 = vcmp.gt.f32.partialorder %v3888, 0.0
        %vm4238 = vcmp.gt.f32.partialorder %v4112, 0.0
        %vm4239 = vcmp.gt.f32.partialorder %v4114, 0.0
        %vm4240 = vcmp.gt.f32.partialorder %v3438, 0.0
        %vm4241 = vcmp.gt.f32.partialorder %v3440, 0.0
        %vm4242 = vcmp.gt.f32.partialorder %v3664, 0.0
        %vm4243 = vcmp.gt.f32.partialorder %v3666, 0.0
        %vm4244 = vcmp.gt.f32.partialorder %v3890, 0.0
        %vm4245 = vcmp.gt.f32.partialorder %v3892, 0.0
        %vm4246 = vcmp.gt.f32.partialorder %v4116, 0.0
        %vm4247 = vcmp.gt.f32.partialorder %v4118, 0.0
        %v4248 = vmul.f32 %v3364, 0.2
        %v4249 = vmul.f32 %v3366, 0.2
        %v4250 = vmul.f32 %v3590, 0.2
        %v4251 = vmul.f32 %v3592, 0.2
        %v4252 = vmul.f32 %v3816, 0.2
        %v4253 = vmul.f32 %v3818, 0.2
        %v4254 = vmul.f32 %v4042, 0.2
        %v4255 = vmul.f32 %v4044, 0.2
        %v4256 = vmul.f32 %v3368, 0.2
        %v4257 = vmul.f32 %v3370, 0.2
        %v4258 = vmul.f32 %v3594, 0.2
        %v4259 = vmul.f32 %v3596, 0.2
        %v4260 = vmul.f32 %v3820, 0.2
        %v4261 = vmul.f32 %v3822, 0.2
        %v4262 = vmul.f32 %v4046, 0.2
        %v4263 = vmul.f32 %v4048, 0.2
        %v4264 = vmul.f32 %v3374, 0.2
        %v4265 = vmul.f32 %v3376, 0.2
        %v4266 = vmul.f32 %v3600, 0.2
        %v4267 = vmul.f32 %v3602, 0.2
        %v4268 = vmul.f32 %v3826, 0.2
        %v4269 = vmul.f32 %v3828, 0.2
        %v4270 = vmul.f32 %v4052, 0.2
        %v4271 = vmul.f32 %v4054, 0.2
        %v4272 = vmul.f32 %v3378, 0.2
        %v4273 = vmul.f32 %v3380, 0.2
        %v4274 = vmul.f32 %v3604, 0.2
        %v4275 = vmul.f32 %v3606, 0.2
        %v4276 = vmul.f32 %v3830, 0.2
        %v4277 = vmul.f32 %v3832, 0.2
        %v4278 = vmul.f32 %v4056, 0.2
        %v4279 = vmul.f32 %v4058, 0.2
        %v4280 = vmul.f32 %v3384, 0.2
        %v4281 = vmul.f32 %v3386, 0.2
        %v4282 = vmul.f32 %v3610, 0.2
        %v4283 = vmul.f32 %v3612, 0.2
        %v4284 = vmul.f32 %v3836, 0.2
        %v4285 = vmul.f32 %v3838, 0.2
        %v4286 = vmul.f32 %v4062, 0.2
        %v4287 = vmul.f32 %v4064, 0.2
        %v4288 = vmul.f32 %v3388, 0.2
        %v4289 = vmul.f32 %v3390, 0.2
        %v4290 = vmul.f32 %v3614, 0.2
        %v4291 = vmul.f32 %v3616, 0.2
        %v4292 = vmul.f32 %v3840, 0.2
        %v4293 = vmul.f32 %v3842, 0.2
        %v4294 = vmul.f32 %v4066, 0.2
        %v4295 = vmul.f32 %v4068, 0.2
        %v4296 = vmul.f32 %v3394, 0.2
        %v4297 = vmul.f32 %v3396, 0.2
        %v4298 = vmul.f32 %v3620, 0.2
        %v4299 = vmul.f32 %v3622, 0.2
        %v4300 = vmul.f32 %v3846, 0.2
        %v4301 = vmul.f32 %v3848, 0.2
        %v4302 = vmul.f32 %v4072, 0.2
        %v4303 = vmul.f32 %v4074, 0.2
        %v4304 = vmul.f32 %v3398, 0.2
        %v4305 = vmul.f32 %v3400, 0.2
        %v4306 = vmul.f32 %v3624, 0.2
        %v4307 = vmul.f32 %v3626, 0.2
        %v4308 = vmul.f32 %v3850, 0.2
        %v4309 = vmul.f32 %v3852, 0.2
        %v4310 = vmul.f32 %v4076, 0.2
        %v4311 = vmul.f32 %v4078, 0.2
        %v4312 = vmul.f32 %v3404, 0.2
        %v4313 = vmul.f32 %v3406, 0.2
        %v4314 = vmul.f32 %v3630, 0.2
        %v4315 = vmul.f32 %v3632, 0.2
        %v4316 = vmul.f32 %v3856, 0.2
        %v4317 = vmul.f32 %v3858, 0.2
        %v4318 = vmul.f32 %v4082, 0.2
        %v4319 = vmul.f32 %v4084, 0.2
        %v4320 = vmul.f32 %v3408, 0.2
        %v4321 = vmul.f32 %v3410, 0.2
        %v4322 = vmul.f32 %v3634, 0.2
        %v4323 = vmul.f32 %v3636, 0.2
        %v4324 = vmul.f32 %v3860, 0.2
        %v4325 = vmul.f32 %v3862, 0.2
        %v4326 = vmul.f32 %v4086, 0.2
        %v4327 = vmul.f32 %v4088, 0.2
        %v4328 = vmul.f32 %v3414, 0.2
        %v4329 = vmul.f32 %v3416, 0.2
        %v4330 = vmul.f32 %v3640, 0.2
        %v4331 = vmul.f32 %v3642, 0.2
        %v4332 = vmul.f32 %v3866, 0.2
        %v4333 = vmul.f32 %v3868, 0.2
        %v4334 = vmul.f32 %v4092, 0.2
        %v4335 = vmul.f32 %v4094, 0.2
        %v4336 = vmul.f32 %v3418, 0.2
        %v4337 = vmul.f32 %v3420, 0.2
        %v4338 = vmul.f32 %v3644, 0.2
        %v4339 = vmul.f32 %v3646, 0.2
        %v4340 = vmul.f32 %v3870, 0.2
        %v4341 = vmul.f32 %v3872, 0.2
        %v4342 = vmul.f32 %v4096, 0.2
        %v4343 = vmul.f32 %v4098, 0.2
        %v4344 = vmul.f32 %v3424, 0.2
        %v4345 = vmul.f32 %v3426, 0.2
        %v4346 = vmul.f32 %v3650, 0.2
        %v4347 = vmul.f32 %v3652, 0.2
        %v4348 = vmul.f32 %v3876, 0.2
        %v4349 = vmul.f32 %v3878, 0.2
        %v4350 = vmul.f32 %v4102, 0.2
        %v4351 = vmul.f32 %v4104, 0.2
        %v4352 = vmul.f32 %v3428, 0.2
        %v4353 = vmul.f32 %v3430, 0.2
        %v4354 = vmul.f32 %v3654, 0.2
        %v4355 = vmul.f32 %v3656, 0.2
        %v4356 = vmul.f32 %v3880, 0.2
        %v4357 = vmul.f32 %v3882, 0.2
        %v4358 = vmul.f32 %v4106, 0.2
        %v4359 = vmul.f32 %v4108, 0.2
        %v4360 = vmul.f32 %v3434, 0.2
        %v4361 = vmul.f32 %v3436, 0.2
        %v4362 = vmul.f32 %v3660, 0.2
        %v4363 = vmul.f32 %v3662, 0.2
        %v4364 = vmul.f32 %v3886, 0.2
        %v4365 = vmul.f32 %v3888, 0.2
        %v4366 = vmul.f32 %v4112, 0.2
        %v4367 = vmul.f32 %v4114, 0.2
        %v4368 = vmul.f32 %v3438, 0.2
        %v4369 = vmul.f32 %v3440, 0.2
        %v4370 = vmul.f32 %v3664, 0.2
        %v4371 = vmul.f32 %v3666, 0.2
        %v4372 = vmul.f32 %v3890, 0.2
        %v4373 = vmul.f32 %v3892, 0.2
        %v4374 = vmul.f32 %v4116, 0.2
        %v4375 = vmul.f32 %v4118, 0.2
        %v4376 = vsel %vm4120, %v3364, %v4248
        %v4377 = vsel %vm4121, %v3366, %v4249
        %v4378 = vsel %vm4122, %v3590, %v4250
        %v4379 = vsel %vm4123, %v3592, %v4251
        %v4380 = vsel %vm4124, %v3816, %v4252
        %v4381 = vsel %vm4125, %v3818, %v4253
        %v4382 = vsel %vm4126, %v4042, %v4254
        %v4383 = vsel %vm4127, %v4044, %v4255
        %v4384 = vsel %vm4128, %v3368, %v4256
        %v4385 = vsel %vm4129, %v3370, %v4257
        %v4386 = vsel %vm4130, %v3594, %v4258
        %v4387 = vsel %vm4131, %v3596, %v4259
        %v4388 = vsel %vm4132, %v3820, %v4260
        %v4389 = vsel %vm4133, %v3822, %v4261
        %v4390 = vsel %vm4134, %v4046, %v4262
        %v4391 = vsel %vm4135, %v4048, %v4263
        %v4392 = vsel %vm4136, %v3374, %v4264
        %v4393 = vsel %vm4137, %v3376, %v4265
        %v4394 = vsel %vm4138, %v3600, %v4266
        %v4395 = vsel %vm4139, %v3602, %v4267
        %v4396 = vsel %vm4140, %v3826, %v4268
        %v4397 = vsel %vm4141, %v3828, %v4269
        %v4398 = vsel %vm4142, %v4052, %v4270
        %v4399 = vsel %vm4143, %v4054, %v4271
        %v4400 = vsel %vm4144, %v3378, %v4272
        %v4401 = vsel %vm4145, %v3380, %v4273
        %v4402 = vsel %vm4146, %v3604, %v4274
        %v4403 = vsel %vm4147, %v3606, %v4275
        %v4404 = vsel %vm4148, %v3830, %v4276
        %v4405 = vsel %vm4149, %v3832, %v4277
        %v4406 = vsel %vm4150, %v4056, %v4278
        %v4407 = vsel %vm4151, %v4058, %v4279
        %v4408 = vsel %vm4152, %v3384, %v4280
        %v4409 = vsel %vm4153, %v3386, %v4281
        %v4410 = vsel %vm4154, %v3610, %v4282
        %v4411 = vsel %vm4155, %v3612, %v4283
        %v4412 = vsel %vm4156, %v3836, %v4284
        %v4413 = vsel %vm4157, %v3838, %v4285
        %v4414 = vsel %vm4158, %v4062, %v4286
        %v4415 = vsel %vm4159, %v4064, %v4287
        %v4416 = vsel %vm4160, %v3388, %v4288
        %v4417 = vsel %vm4161, %v3390, %v4289
        %v4418 = vsel %vm4162, %v3614, %v4290
        %v4419 = vsel %vm4163, %v3616, %v4291
        %v4420 = vsel %vm4164, %v3840, %v4292
        %v4421 = vsel %vm4165, %v3842, %v4293
        %v4422 = vsel %vm4166, %v4066, %v4294
        %v4423 = vsel %vm4167, %v4068, %v4295
        %v4424 = vsel %vm4168, %v3394, %v4296
        %v4425 = vsel %vm4169, %v3396, %v4297
        %v4426 = vsel %vm4170, %v3620, %v4298
        %v4427 = vsel %vm4171, %v3622, %v4299
        %v4428 = vsel %vm4172, %v3846, %v4300
        %v4429 = vsel %vm4173, %v3848, %v4301
        %v4430 = vsel %vm4174, %v4072, %v4302
        %v4431 = vsel %vm4175, %v4074, %v4303
        %v4432 = vsel %vm4176, %v3398, %v4304
        %v4433 = vsel %vm4177, %v3400, %v4305
        %v4434 = vsel %vm4178, %v3624, %v4306
        %v4435 = vsel %vm4179, %v3626, %v4307
        %v4436 = vsel %vm4180, %v3850, %v4308
        %v4437 = vsel %vm4181, %v3852, %v4309
        %v4438 = vsel %vm4182, %v4076, %v4310
        %v4439 = vsel %vm4183, %v4078, %v4311
        %v4440 = vsel %vm4184, %v3404, %v4312
        %v4441 = vsel %vm4185, %v3406, %v4313
        %v4442 = vsel %vm4186, %v3630, %v4314
        %v4443 = vsel %vm4187, %v3632, %v4315
        %v4444 = vsel %vm4188, %v3856, %v4316
        %v4445 = vsel %vm4189, %v3858, %v4317
        %v4446 = vsel %vm4190, %v4082, %v4318
        %v4447 = vsel %vm4191, %v4084, %v4319
        %v4448 = vsel %vm4192, %v3408, %v4320
        %v4449 = vsel %vm4193, %v3410, %v4321
        %v4450 = vsel %vm4194, %v3634, %v4322
        %v4451 = vsel %vm4195, %v3636, %v4323
        %v4452 = vsel %vm4196, %v3860, %v4324
        %v4453 = vsel %vm4197, %v3862, %v4325
        %v4454 = vsel %vm4198, %v4086, %v4326
        %v4455 = vsel %vm4199, %v4088, %v4327
        %v4456 = vsel %vm4200, %v3414, %v4328
        %v4457 = vsel %vm4201, %v3416, %v4329
        %v4458 = vsel %vm4202, %v3640, %v4330
        %v4459 = vsel %vm4203, %v3642, %v4331
        %v4460 = vsel %vm4204, %v3866, %v4332
        %v4461 = vsel %vm4205, %v3868, %v4333
        %v4462 = vsel %vm4206, %v4092, %v4334
        %v4463 = vsel %vm4207, %v4094, %v4335
        %v4464 = vsel %vm4208, %v3418, %v4336
        %v4465 = vsel %vm4209, %v3420, %v4337
        %v4466 = vsel %vm4210, %v3644, %v4338
        %v4467 = vsel %vm4211, %v3646, %v4339
        %v4468 = vsel %vm4212, %v3870, %v4340
        %v4469 = vsel %vm4213, %v3872, %v4341
        %v4470 = vsel %vm4214, %v4096, %v4342
        %v4471 = vsel %vm4215, %v4098, %v4343
        %v4472 = vsel %vm4216, %v3424, %v4344
        %v4473 = vsel %vm4217, %v3426, %v4345
        %v4474 = vsel %vm4218, %v3650, %v4346
        %v4475 = vsel %vm4219, %v3652, %v4347
        %v4476 = vsel %vm4220, %v3876, %v4348
        %v4477 = vsel %vm4221, %v3878, %v4349
        %v4478 = vsel %vm4222, %v4102, %v4350
        %v4479 = vsel %vm4223, %v4104, %v4351
        %v4480 = vsel %vm4224, %v3428, %v4352
        %v4481 = vsel %vm4225, %v3430, %v4353
        %v4482 = vsel %vm4226, %v3654, %v4354
        %v4483 = vsel %vm4227, %v3656, %v4355
        %v4484 = vsel %vm4228, %v3880, %v4356
        %v4485 = vsel %vm4229, %v3882, %v4357
        %v4486 = vsel %vm4230, %v4106, %v4358
        %v4487 = vsel %vm4231, %v4108, %v4359
        %v4488 = vsel %vm4232, %v3434, %v4360
        %v4489 = vsel %vm4233, %v3436, %v4361
        %v4490 = vsel %vm4234, %v3660, %v4362
        %v4491 = vsel %vm4235, %v3662, %v4363
        %v4492 = vsel %vm4236, %v3886, %v4364
        %v4493 = vsel %vm4237, %v3888, %v4365
        %v4494 = vsel %vm4238, %v4112, %v4366
        %v4495 = vsel %vm4239, %v4114, %v4367
        %v4496 = vsel %vm4240, %v3438, %v4368
        %v4497 = vsel %vm4241, %v3440, %v4369
        %v4498 = vsel %vm4242, %v3664, %v4370
        %v4499 = vsel %vm4243, %v3666, %v4371
        %v4500 = vsel %vm4244, %v3890, %v4372
        %v4501 = vsel %vm4245, %v3892, %v4373
        %v4502 = vsel %vm4246, %v4116, %v4374
        %v4503 = vsel %vm4247, %v4118, %v4375
        %v4504 = vpack.c.bf16 %v4384, %v4376
        %v4505 = vpack.c.bf16 %v4385, %v4377
        %v4506 = vpack.c.bf16 %v4386, %v4378
        %v4507 = vpack.c.bf16 %v4387, %v4379
        %v4508 = vpack.c.bf16 %v4388, %v4380
        %v4509 = vpack.c.bf16 %v4389, %v4381
        %v4510 = vpack.c.bf16 %v4390, %v4382
        %v4511 = vpack.c.bf16 %v4391, %v4383
        %v4512 = vpack.c.bf16 %v4400, %v4392
        %v4513 = vpack.c.bf16 %v4401, %v4393
        %v4514 = vpack.c.bf16 %v4402, %v4394
        %v4515 = vpack.c.bf16 %v4403, %v4395
        %v4516 = vpack.c.bf16 %v4404, %v4396
        %v4517 = vpack.c.bf16 %v4405, %v4397
        %v4518 = vpack.c.bf16 %v4406, %v4398
        %v4519 = vpack.c.bf16 %v4407, %v4399
        %v4520 = vpack.c.bf16 %v4416, %v4408
        %v4521 = vpack.c.bf16 %v4417, %v4409
        %v4522 = vpack.c.bf16 %v4418, %v4410
        %v4523 = vpack.c.bf16 %v4419, %v4411
        %v4524 = vpack.c.bf16 %v4420, %v4412
        %v4525 = vpack.c.bf16 %v4421, %v4413
        %v4526 = vpack.c.bf16 %v4422, %v4414
        %v4527 = vpack.c.bf16 %v4423, %v4415
        %v4528 = vpack.c.bf16 %v4432, %v4424
        %v4529 = vpack.c.bf16 %v4433, %v4425
        %v4530 = vpack.c.bf16 %v4434, %v4426
        %v4531 = vpack.c.bf16 %v4435, %v4427
        %v4532 = vpack.c.bf16 %v4436, %v4428
        %v4533 = vpack.c.bf16 %v4437, %v4429
        %v4534 = vpack.c.bf16 %v4438, %v4430
        %v4535 = vpack.c.bf16 %v4439, %v4431
        %v4536 = vpack.c.bf16 %v4448, %v4440
        %v4537 = vpack.c.bf16 %v4449, %v4441
        %v4538 = vpack.c.bf16 %v4450, %v4442
        %v4539 = vpack.c.bf16 %v4451, %v4443
        %v4540 = vpack.c.bf16 %v4452, %v4444
        %v4541 = vpack.c.bf16 %v4453, %v4445
        %v4542 = vpack.c.bf16 %v4454, %v4446
        %v4543 = vpack.c.bf16 %v4455, %v4447
        %v4544 = vpack.c.bf16 %v4464, %v4456
        %v4545 = vpack.c.bf16 %v4465, %v4457
        %v4546 = vpack.c.bf16 %v4466, %v4458
        %v4547 = vpack.c.bf16 %v4467, %v4459
        %v4548 = vpack.c.bf16 %v4468, %v4460
        %v4549 = vpack.c.bf16 %v4469, %v4461
        %v4550 = vpack.c.bf16 %v4470, %v4462
        %v4551 = vpack.c.bf16 %v4471, %v4463
        %v4552 = vpack.c.bf16 %v4480, %v4472
        %v4553 = vpack.c.bf16 %v4481, %v4473
        %v4554 = vpack.c.bf16 %v4482, %v4474
        %v4555 = vpack.c.bf16 %v4483, %v4475
        %v4556 = vpack.c.bf16 %v4484, %v4476
        %v4557 = vpack.c.bf16 %v4485, %v4477
        %v4558 = vpack.c.bf16 %v4486, %v4478
        %v4559 = vpack.c.bf16 %v4487, %v4479
        %v4560 = vpack.c.bf16 %v4496, %v4488
        %v4561 = vpack.c.bf16 %v4497, %v4489
        %v4562 = vpack.c.bf16 %v4498, %v4490
        %v4563 = vpack.c.bf16 %v4499, %v4491
        %v4564 = vpack.c.bf16 %v4500, %v4492
        %v4565 = vpack.c.bf16 %v4501, %v4493
        %v4566 = vpack.c.bf16 %v4502, %v4494
        %v4567 = vpack.c.bf16 %v4503, %v4495
        %v4568 = vld [vmem:[#allocation11] sm:$0xff]
        %v4569 = vld [vmem:[#allocation11 + $0x8] sm:$0xff]
        %v4570 = vld [vmem:[#allocation11 + $0x10] sm:$0xff]
        %v4571 = vld [vmem:[#allocation11 + $0x18] sm:$0xff]
        %v4572 = vld [vmem:[#allocation11 + $0x20] sm:$0xff]
        %v4573 = vld [vmem:[#allocation11 + $0x28] sm:$0xff]
        %v4574 = vld [vmem:[#allocation11 + $0x30] sm:$0xff]
        %v4575 = vld [vmem:[#allocation11 + $0x38] sm:$0xff]
        %v4576 = vld [vmem:[#allocation11 + $0x40] sm:$0xff]
        %v4577 = vld [vmem:[#allocation11 + $0x48] sm:$0xff]
        %v4578 = vld [vmem:[#allocation11 + $0x50] sm:$0xff]
        %v4579 = vld [vmem:[#allocation11 + $0x58] sm:$0xff]
        %v4580 = vld [vmem:[#allocation11 + $0x60] sm:$0xff]
        %v4581 = vld [vmem:[#allocation11 + $0x68] sm:$0xff]
        %v4582 = vld [vmem:[#allocation11 + $0x70] sm:$0xff]
        %v4583 = vld [vmem:[#allocation11 + $0x78] sm:$0xff]
        %v4584 = vld [vmem:[#allocation11 + $0x80] sm:$0xff]
        %v4585 = vld [vmem:[#allocation11 + $0x88] sm:$0xff]
        %v4586 = vld [vmem:[#allocation11 + $0x90] sm:$0xff]
        %v4587 = vld [vmem:[#allocation11 + $0x98] sm:$0xff]
        %v4588 = vld [vmem:[#allocation11 + $0xa0] sm:$0xff]
        %v4589 = vld [vmem:[#allocation11 + $0xa8] sm:$0xff]
        %v4590 = vld [vmem:[#allocation11 + $0xb0] sm:$0xff]
        %v4591 = vld [vmem:[#allocation11 + $0xb8] sm:$0xff]
        %v4592 = vld [vmem:[#allocation11 + $0xc0] sm:$0xff]
        %v4593 = vld [vmem:[#allocation11 + $0xc8] sm:$0xff]
        %v4594 = vld [vmem:[#allocation11 + $0xd0] sm:$0xff]
        %v4595 = vld [vmem:[#allocation11 + $0xd8] sm:$0xff]
        %v4596 = vld [vmem:[#allocation11 + $0xe0] sm:$0xff]
        %v4597 = vld [vmem:[#allocation11 + $0xe8] sm:$0xff]
        %v4598 = vld [vmem:[#allocation11 + $0xf0] sm:$0xff]
        %v4599 = vld [vmem:[#allocation11 + $0xf8] sm:$0xff]
        %v4600 = vld [vmem:[#allocation11 + $0x100] sm:$0xff]
        %v4601 = vld [vmem:[#allocation11 + $0x108] sm:$0xff]
        %v4602 = vld [vmem:[#allocation11 + $0x110] sm:$0xff]
        %v4603 = vld [vmem:[#allocation11 + $0x118] sm:$0xff]
        %v4604 = vld [vmem:[#allocation11 + $0x120] sm:$0xff]
        %v4605 = vld [vmem:[#allocation11 + $0x128] sm:$0xff]
        %v4606 = vld [vmem:[#allocation11 + $0x130] sm:$0xff]
        %v4607 = vld [vmem:[#allocation11 + $0x138] sm:$0xff]
        %v4608 = vld [vmem:[#allocation11 + $0x140] sm:$0xff]
        %v4609 = vld [vmem:[#allocation11 + $0x148] sm:$0xff]
        %v4610 = vld [vmem:[#allocation11 + $0x150] sm:$0xff]
        %v4611 = vld [vmem:[#allocation11 + $0x158] sm:$0xff]
        %v4612 = vld [vmem:[#allocation11 + $0x160] sm:$0xff]
        %v4613 = vld [vmem:[#allocation11 + $0x168] sm:$0xff]
        %v4614 = vld [vmem:[#allocation11 + $0x170] sm:$0xff]
        %v4615 = vld [vmem:[#allocation11 + $0x178] sm:$0xff]
        %v4616 = vld [vmem:[#allocation11 + $0x180] sm:$0xff]
        %v4617 = vld [vmem:[#allocation11 + $0x188] sm:$0xff]
        %v4618 = vld [vmem:[#allocation11 + $0x190] sm:$0xff]
        %v4619 = vld [vmem:[#allocation11 + $0x198] sm:$0xff]
        %v4620 = vld [vmem:[#allocation11 + $0x1a0] sm:$0xff]
        %v4621 = vld [vmem:[#allocation11 + $0x1a8] sm:$0xff]
        %v4622 = vld [vmem:[#allocation11 + $0x1b0] sm:$0xff]
        %v4623 = vld [vmem:[#allocation11 + $0x1b8] sm:$0xff]
        %v4624 = vld [vmem:[#allocation11 + $0x1c0] sm:$0xff]
        %v4625 = vld [vmem:[#allocation11 + $0x1c8] sm:$0xff]
        %v4626 = vld [vmem:[#allocation11 + $0x1d0] sm:$0xff]
        %v4627 = vld [vmem:[#allocation11 + $0x1d8] sm:$0xff]
        %v4628 = vld [vmem:[#allocation11 + $0x1e0] sm:$0xff]
        %v4629 = vld [vmem:[#allocation11 + $0x1e8] sm:$0xff]
        %v4630 = vld [vmem:[#allocation11 + $0x1f0] sm:$0xff]
        %v4631 = vld [vmem:[#allocation11 + $0x1f8] sm:$0xff]
        %v4632 = vld [vmem:[#allocation11 + $0x200] sm:$0xff]
        %v4633 = vld [vmem:[#allocation11 + $0x208] sm:$0xff]
        %v4634 = vld [vmem:[#allocation11 + $0x210] sm:$0xff]
        %v4635 = vld [vmem:[#allocation11 + $0x218] sm:$0xff]
        %v4636 = vld [vmem:[#allocation11 + $0x220] sm:$0xff]
        %v4637 = vld [vmem:[#allocation11 + $0x228] sm:$0xff]
        %v4638 = vld [vmem:[#allocation11 + $0x230] sm:$0xff]
        %v4639 = vld [vmem:[#allocation11 + $0x238] sm:$0xff]
        %v4640 = vld [vmem:[#allocation11 + $0x240] sm:$0xff]
        %v4641 = vld [vmem:[#allocation11 + $0x248] sm:$0xff]
        %v4642 = vld [vmem:[#allocation11 + $0x250] sm:$0xff]
        %v4643 = vld [vmem:[#allocation11 + $0x258] sm:$0xff]
        %v4644 = vld [vmem:[#allocation11 + $0x260] sm:$0xff]
        %v4645 = vld [vmem:[#allocation11 + $0x268] sm:$0xff]
        %v4646 = vld [vmem:[#allocation11 + $0x270] sm:$0xff]
        %v4647 = vld [vmem:[#allocation11 + $0x278] sm:$0xff]
        %v4648 = vld [vmem:[#allocation11 + $0x280] sm:$0xff]
        %v4649 = vld [vmem:[#allocation11 + $0x288] sm:$0xff]
        %v4650 = vld [vmem:[#allocation11 + $0x290] sm:$0xff]
        %v4651 = vld [vmem:[#allocation11 + $0x298] sm:$0xff]
        %v4652 = vld [vmem:[#allocation11 + $0x2a0] sm:$0xff]
        %v4653 = vld [vmem:[#allocation11 + $0x2a8] sm:$0xff]
        %v4654 = vld [vmem:[#allocation11 + $0x2b0] sm:$0xff]
        %v4655 = vld [vmem:[#allocation11 + $0x2b8] sm:$0xff]
        %v4656 = vld [vmem:[#allocation11 + $0x2c0] sm:$0xff]
        %v4657 = vld [vmem:[#allocation11 + $0x2c8] sm:$0xff]
        %v4658 = vld [vmem:[#allocation11 + $0x2d0] sm:$0xff]
        %v4659 = vld [vmem:[#allocation11 + $0x2d8] sm:$0xff]
        %v4660 = vld [vmem:[#allocation11 + $0x2e0] sm:$0xff]
        %v4661 = vld [vmem:[#allocation11 + $0x2e8] sm:$0xff]
        %v4662 = vld [vmem:[#allocation11 + $0x2f0] sm:$0xff]
        %v4663 = vld [vmem:[#allocation11 + $0x2f8] sm:$0xff]
        %v4664 = vld [vmem:[#allocation11 + $0x300] sm:$0xff]
        %v4665 = vld [vmem:[#allocation11 + $0x308] sm:$0xff]
        %v4666 = vld [vmem:[#allocation11 + $0x310] sm:$0xff]
        %v4667 = vld [vmem:[#allocation11 + $0x318] sm:$0xff]
        %v4668 = vld [vmem:[#allocation11 + $0x320] sm:$0xff]
        %v4669 = vld [vmem:[#allocation11 + $0x328] sm:$0xff]
        %v4670 = vld [vmem:[#allocation11 + $0x330] sm:$0xff]
        %v4671 = vld [vmem:[#allocation11 + $0x338] sm:$0xff]
        %v4672 = vld [vmem:[#allocation11 + $0x340] sm:$0xff]
        %v4673 = vld [vmem:[#allocation11 + $0x348] sm:$0xff]
        %v4674 = vld [vmem:[#allocation11 + $0x350] sm:$0xff]
        %v4675 = vld [vmem:[#allocation11 + $0x358] sm:$0xff]
        %v4676 = vld [vmem:[#allocation11 + $0x360] sm:$0xff]
        %v4677 = vld [vmem:[#allocation11 + $0x368] sm:$0xff]
        %v4678 = vld [vmem:[#allocation11 + $0x370] sm:$0xff]
        %v4679 = vld [vmem:[#allocation11 + $0x378] sm:$0xff]
        %v4680 = vld [vmem:[#allocation11 + $0x380] sm:$0xff]
        %v4681 = vld [vmem:[#allocation11 + $0x388] sm:$0xff]
        %v4682 = vld [vmem:[#allocation11 + $0x390] sm:$0xff]
        %v4683 = vld [vmem:[#allocation11 + $0x398] sm:$0xff]
        %v4684 = vld [vmem:[#allocation11 + $0x3a0] sm:$0xff]
        %v4685 = vld [vmem:[#allocation11 + $0x3a8] sm:$0xff]
        %v4686 = vld [vmem:[#allocation11 + $0x3b0] sm:$0xff]
        %v4687 = vld [vmem:[#allocation11 + $0x3b8] sm:$0xff]
        %v4688 = vld [vmem:[#allocation11 + $0x3c0] sm:$0xff]
        %v4689 = vld [vmem:[#allocation11 + $0x3c8] sm:$0xff]
        %v4690 = vld [vmem:[#allocation11 + $0x3d0] sm:$0xff]
        %v4691 = vld [vmem:[#allocation11 + $0x3d8] sm:$0xff]
        %v4692 = vld [vmem:[#allocation11 + $0x3e0] sm:$0xff]
        %v4693 = vld [vmem:[#allocation11 + $0x3e8] sm:$0xff]
        %v4694 = vld [vmem:[#allocation11 + $0x3f0] sm:$0xff]
        %v4695 = vld [vmem:[#allocation11 + $0x3f8] sm:$0xff]
        %v4696 = vld [vmem:[%s8] sm:$0x3]
        %v4698 = vlaneseq
        %v4699 = vshrl.u32 %v4698, 7
        %v4700 = vsub.s32 0, %v4699
        %v4701 = vrot.slane %v4696, %v4700
        %v4702 = vlaneseq
        %v4703 = vshrl.u32 %v4702, 7
        %v4704 = vsub.s32 1, %v4703
        %v4705 = vrot.slane %v4696, %v4704
        %v4836 = vunpack.c.l.b16 %v4568
        %v4837 = vunpack.c.h.b16 %v4568
        %v4838 = vunpack.c.l.b16 %v4569
        %v4839 = vunpack.c.h.b16 %v4569
        %v4840 = vunpack.c.l.b16 %v4570
        %v4841 = vunpack.c.h.b16 %v4570
        %v4842 = vunpack.c.l.b16 %v4571
        %v4843 = vunpack.c.h.b16 %v4571
        %v4844 = vunpack.c.l.b16 %v4572
        %v4845 = vunpack.c.h.b16 %v4572
        %v4846 = vunpack.c.l.b16 %v4573
        %v4847 = vunpack.c.h.b16 %v4573
        %v4848 = vunpack.c.l.b16 %v4574
        %v4849 = vunpack.c.h.b16 %v4574
        %v4850 = vunpack.c.l.b16 %v4575
        %v4851 = vunpack.c.h.b16 %v4575
        %v4852 = vunpack.c.l.b16 %v4576
        %v4853 = vunpack.c.h.b16 %v4576
        %v4854 = vunpack.c.l.b16 %v4577
        %v4855 = vunpack.c.h.b16 %v4577
        %v4856 = vunpack.c.l.b16 %v4578
        %v4857 = vunpack.c.h.b16 %v4578
        %v4858 = vunpack.c.l.b16 %v4579
        %v4859 = vunpack.c.h.b16 %v4579
        %v4860 = vunpack.c.l.b16 %v4580
        %v4861 = vunpack.c.h.b16 %v4580
        %v4862 = vunpack.c.l.b16 %v4581
        %v4863 = vunpack.c.h.b16 %v4581
        %v4864 = vunpack.c.l.b16 %v4582
        %v4865 = vunpack.c.h.b16 %v4582
        %v4866 = vunpack.c.l.b16 %v4583
        %v4867 = vunpack.c.h.b16 %v4583
        %v4868 = vunpack.c.l.b16 %v4584
        %v4869 = vunpack.c.h.b16 %v4584
        %v4870 = vunpack.c.l.b16 %v4585
        %v4871 = vunpack.c.h.b16 %v4585
        %v4872 = vunpack.c.l.b16 %v4586
        %v4873 = vunpack.c.h.b16 %v4586
        %v4874 = vunpack.c.l.b16 %v4587
        %v4875 = vunpack.c.h.b16 %v4587
        %v4876 = vunpack.c.l.b16 %v4588
        %v4877 = vunpack.c.h.b16 %v4588
        %v4878 = vunpack.c.l.b16 %v4589
        %v4879 = vunpack.c.h.b16 %v4589
        %v4880 = vunpack.c.l.b16 %v4590
        %v4881 = vunpack.c.h.b16 %v4590
        %v4882 = vunpack.c.l.b16 %v4591
        %v4883 = vunpack.c.h.b16 %v4591
        %v4884 = vunpack.c.l.b16 %v4592
        %v4885 = vunpack.c.h.b16 %v4592
        %v4886 = vunpack.c.l.b16 %v4593
        %v4887 = vunpack.c.h.b16 %v4593
        %v4888 = vunpack.c.l.b16 %v4594
        %v4889 = vunpack.c.h.b16 %v4594
        %v4890 = vunpack.c.l.b16 %v4595
        %v4891 = vunpack.c.h.b16 %v4595
        %v4892 = vunpack.c.l.b16 %v4596
        %v4893 = vunpack.c.h.b16 %v4596
        %v4894 = vunpack.c.l.b16 %v4597
        %v4895 = vunpack.c.h.b16 %v4597
        %v4896 = vunpack.c.l.b16 %v4598
        %v4897 = vunpack.c.h.b16 %v4598
        %v4898 = vunpack.c.l.b16 %v4599
        %v4899 = vunpack.c.h.b16 %v4599
        %v4900 = vunpack.c.l.b16 %v4600
        %v4901 = vunpack.c.h.b16 %v4600
        %v4902 = vunpack.c.l.b16 %v4601
        %v4903 = vunpack.c.h.b16 %v4601
        %v4904 = vunpack.c.l.b16 %v4602
        %v4905 = vunpack.c.h.b16 %v4602
        %v4906 = vunpack.c.l.b16 %v4603
        %v4907 = vunpack.c.h.b16 %v4603
        %v4908 = vunpack.c.l.b16 %v4604
        %v4909 = vunpack.c.h.b16 %v4604
        %v4910 = vunpack.c.l.b16 %v4605
        %v4911 = vunpack.c.h.b16 %v4605
        %v4912 = vunpack.c.l.b16 %v4606
        %v4913 = vunpack.c.h.b16 %v4606
        %v4914 = vunpack.c.l.b16 %v4607
        %v4915 = vunpack.c.h.b16 %v4607
        %v4916 = vunpack.c.l.b16 %v4608
        %v4917 = vunpack.c.h.b16 %v4608
        %v4918 = vunpack.c.l.b16 %v4609
        %v4919 = vunpack.c.h.b16 %v4609
        %v4920 = vunpack.c.l.b16 %v4610
        %v4921 = vunpack.c.h.b16 %v4610
        %v4922 = vunpack.c.l.b16 %v4611
        %v4923 = vunpack.c.h.b16 %v4611
        %v4924 = vunpack.c.l.b16 %v4612
        %v4925 = vunpack.c.h.b16 %v4612
        %v4926 = vunpack.c.l.b16 %v4613
        %v4927 = vunpack.c.h.b16 %v4613
        %v4928 = vunpack.c.l.b16 %v4614
        %v4929 = vunpack.c.h.b16 %v4614
        %v4930 = vunpack.c.l.b16 %v4615
        %v4931 = vunpack.c.h.b16 %v4615
        %v4932 = vunpack.c.l.b16 %v4616
        %v4933 = vunpack.c.h.b16 %v4616
        %v4934 = vunpack.c.l.b16 %v4617
        %v4935 = vunpack.c.h.b16 %v4617
        %v4936 = vunpack.c.l.b16 %v4618
        %v4937 = vunpack.c.h.b16 %v4618
        %v4938 = vunpack.c.l.b16 %v4619
        %v4939 = vunpack.c.h.b16 %v4619
        %v4940 = vunpack.c.l.b16 %v4620
        %v4941 = vunpack.c.h.b16 %v4620
        %v4942 = vunpack.c.l.b16 %v4621
        %v4943 = vunpack.c.h.b16 %v4621
        %v4944 = vunpack.c.l.b16 %v4622
        %v4945 = vunpack.c.h.b16 %v4622
        %v4946 = vunpack.c.l.b16 %v4623
        %v4947 = vunpack.c.h.b16 %v4623
        %v4948 = vunpack.c.l.b16 %v4624
        %v4949 = vunpack.c.h.b16 %v4624
        %v4950 = vunpack.c.l.b16 %v4625
        %v4951 = vunpack.c.h.b16 %v4625
        %v4952 = vunpack.c.l.b16 %v4626
        %v4953 = vunpack.c.h.b16 %v4626
        %v4954 = vunpack.c.l.b16 %v4627
        %v4955 = vunpack.c.h.b16 %v4627
        %v4956 = vunpack.c.l.b16 %v4628
        %v4957 = vunpack.c.h.b16 %v4628
        %v4958 = vunpack.c.l.b16 %v4629
        %v4959 = vunpack.c.h.b16 %v4629
        %v4960 = vunpack.c.l.b16 %v4630
        %v4961 = vunpack.c.h.b16 %v4630
        %v4962 = vunpack.c.l.b16 %v4631
        %v4963 = vunpack.c.h.b16 %v4631
        %v4964 = vunpack.c.l.b16 %v4632
        %v4965 = vunpack.c.h.b16 %v4632
        %v4966 = vunpack.c.l.b16 %v4633
        %v4967 = vunpack.c.h.b16 %v4633
        %v4968 = vunpack.c.l.b16 %v4634
        %v4969 = vunpack.c.h.b16 %v4634
        %v4970 = vunpack.c.l.b16 %v4635
        %v4971 = vunpack.c.h.b16 %v4635
        %v4972 = vunpack.c.l.b16 %v4636
        %v4973 = vunpack.c.h.b16 %v4636
        %v4974 = vunpack.c.l.b16 %v4637
        %v4975 = vunpack.c.h.b16 %v4637
        %v4976 = vunpack.c.l.b16 %v4638
        %v4977 = vunpack.c.h.b16 %v4638
        %v4978 = vunpack.c.l.b16 %v4639
        %v4979 = vunpack.c.h.b16 %v4639
        %v4980 = vunpack.c.l.b16 %v4640
        %v4981 = vunpack.c.h.b16 %v4640
        %v4982 = vunpack.c.l.b16 %v4641
        %v4983 = vunpack.c.h.b16 %v4641
        %v4984 = vunpack.c.l.b16 %v4642
        %v4985 = vunpack.c.h.b16 %v4642
        %v4986 = vunpack.c.l.b16 %v4643
        %v4987 = vunpack.c.h.b16 %v4643
        %v4988 = vunpack.c.l.b16 %v4644
        %v4989 = vunpack.c.h.b16 %v4644
        %v4990 = vunpack.c.l.b16 %v4645
        %v4991 = vunpack.c.h.b16 %v4645
        %v4992 = vunpack.c.l.b16 %v4646
        %v4993 = vunpack.c.h.b16 %v4646
        %v4994 = vunpack.c.l.b16 %v4647
        %v4995 = vunpack.c.h.b16 %v4647
        %v4996 = vunpack.c.l.b16 %v4648
        %v4997 = vunpack.c.h.b16 %v4648
        %v4998 = vunpack.c.l.b16 %v4649
        %v4999 = vunpack.c.h.b16 %v4649
        %v5000 = vunpack.c.l.b16 %v4650
        %v5001 = vunpack.c.h.b16 %v4650
        %v5002 = vunpack.c.l.b16 %v4651
        %v5003 = vunpack.c.h.b16 %v4651
        %v5004 = vunpack.c.l.b16 %v4652
        %v5005 = vunpack.c.h.b16 %v4652
        %v5006 = vunpack.c.l.b16 %v4653
        %v5007 = vunpack.c.h.b16 %v4653
        %v5008 = vunpack.c.l.b16 %v4654
        %v5009 = vunpack.c.h.b16 %v4654
        %v5010 = vunpack.c.l.b16 %v4655
        %v5011 = vunpack.c.h.b16 %v4655
        %v5012 = vunpack.c.l.b16 %v4656
        %v5013 = vunpack.c.h.b16 %v4656
        %v5014 = vunpack.c.l.b16 %v4657
        %v5015 = vunpack.c.h.b16 %v4657
        %v5016 = vunpack.c.l.b16 %v4658
        %v5017 = vunpack.c.h.b16 %v4658
        %v5018 = vunpack.c.l.b16 %v4659
        %v5019 = vunpack.c.h.b16 %v4659
        %v5020 = vunpack.c.l.b16 %v4660
        %v5021 = vunpack.c.h.b16 %v4660
        %v5022 = vunpack.c.l.b16 %v4661
        %v5023 = vunpack.c.h.b16 %v4661
        %v5024 = vunpack.c.l.b16 %v4662
        %v5025 = vunpack.c.h.b16 %v4662
        %v5026 = vunpack.c.l.b16 %v4663
        %v5027 = vunpack.c.h.b16 %v4663
        %v5028 = vunpack.c.l.b16 %v4664
        %v5029 = vunpack.c.h.b16 %v4664
        %v5030 = vunpack.c.l.b16 %v4665
        %v5031 = vunpack.c.h.b16 %v4665
        %v5032 = vunpack.c.l.b16 %v4666
        %v5033 = vunpack.c.h.b16 %v4666
        %v5034 = vunpack.c.l.b16 %v4667
        %v5035 = vunpack.c.h.b16 %v4667
        %v5036 = vunpack.c.l.b16 %v4668
        %v5037 = vunpack.c.h.b16 %v4668
        %v5038 = vunpack.c.l.b16 %v4669
        %v5039 = vunpack.c.h.b16 %v4669
        %v5040 = vunpack.c.l.b16 %v4670
        %v5041 = vunpack.c.h.b16 %v4670
        %v5042 = vunpack.c.l.b16 %v4671
        %v5043 = vunpack.c.h.b16 %v4671
        %v5044 = vunpack.c.l.b16 %v4672
        %v5045 = vunpack.c.h.b16 %v4672
        %v5046 = vunpack.c.l.b16 %v4673
        %v5047 = vunpack.c.h.b16 %v4673
        %v5048 = vunpack.c.l.b16 %v4674
        %v5049 = vunpack.c.h.b16 %v4674
        %v5050 = vunpack.c.l.b16 %v4675
        %v5051 = vunpack.c.h.b16 %v4675
        %v5052 = vunpack.c.l.b16 %v4676
        %v5053 = vunpack.c.h.b16 %v4676
        %v5054 = vunpack.c.l.b16 %v4677
        %v5055 = vunpack.c.h.b16 %v4677
        %v5056 = vunpack.c.l.b16 %v4678
        %v5057 = vunpack.c.h.b16 %v4678
        %v5058 = vunpack.c.l.b16 %v4679
        %v5059 = vunpack.c.h.b16 %v4679
        %v5060 = vunpack.c.l.b16 %v4680
        %v5061 = vunpack.c.h.b16 %v4680
        %v5062 = vunpack.c.l.b16 %v4681
        %v5063 = vunpack.c.h.b16 %v4681
        %v5064 = vunpack.c.l.b16 %v4682
        %v5065 = vunpack.c.h.b16 %v4682
        %v5066 = vunpack.c.l.b16 %v4683
        %v5067 = vunpack.c.h.b16 %v4683
        %v5068 = vunpack.c.l.b16 %v4684
        %v5069 = vunpack.c.h.b16 %v4684
        %v5070 = vunpack.c.l.b16 %v4685
        %v5071 = vunpack.c.h.b16 %v4685
        %v5072 = vunpack.c.l.b16 %v4686
        %v5073 = vunpack.c.h.b16 %v4686
        %v5074 = vunpack.c.l.b16 %v4687
        %v5075 = vunpack.c.h.b16 %v4687
        %v5076 = vunpack.c.l.b16 %v4688
        %v5077 = vunpack.c.h.b16 %v4688
        %v5078 = vunpack.c.l.b16 %v4689
        %v5079 = vunpack.c.h.b16 %v4689
        %v5080 = vunpack.c.l.b16 %v4690
        %v5081 = vunpack.c.h.b16 %v4690
        %v5082 = vunpack.c.l.b16 %v4691
        %v5083 = vunpack.c.h.b16 %v4691
        %v5084 = vunpack.c.l.b16 %v4692
        %v5085 = vunpack.c.h.b16 %v4692
        %v5086 = vunpack.c.l.b16 %v4693
        %v5087 = vunpack.c.h.b16 %v4693
        %v5088 = vunpack.c.l.b16 %v4694
        %v5089 = vunpack.c.h.b16 %v4694
        %v5090 = vunpack.c.l.b16 %v4695
        %v5091 = vunpack.c.h.b16 %v4695
        %v5092 = vpack.c.b16 %v4838, %v4836
        %v5093 = vpack.c.b16 %v4839, %v4837
        %v5094 = vpack.c.b16 %v4842, %v4840
        %v5095 = vpack.c.b16 %v4843, %v4841
        %v5096 = vpack.c.b16 %v4846, %v4844
        %v5097 = vpack.c.b16 %v4847, %v4845
        %v5098 = vpack.c.b16 %v4850, %v4848
        %v5099 = vpack.c.b16 %v4851, %v4849
        %v5100 = vpack.c.b16 %v4854, %v4852
        %v5101 = vpack.c.b16 %v4855, %v4853
        %v5102 = vpack.c.b16 %v4858, %v4856
        %v5103 = vpack.c.b16 %v4859, %v4857
        %v5104 = vpack.c.b16 %v4862, %v4860
        %v5105 = vpack.c.b16 %v4863, %v4861
        %v5106 = vpack.c.b16 %v4866, %v4864
        %v5107 = vpack.c.b16 %v4867, %v4865
        %v5108 = vpack.c.b16 %v4870, %v4868
        %v5109 = vpack.c.b16 %v4871, %v4869
        %v5110 = vpack.c.b16 %v4874, %v4872
        %v5111 = vpack.c.b16 %v4875, %v4873
        %v5112 = vpack.c.b16 %v4878, %v4876
        %v5113 = vpack.c.b16 %v4879, %v4877
        %v5114 = vpack.c.b16 %v4882, %v4880
        %v5115 = vpack.c.b16 %v4883, %v4881
        %v5116 = vpack.c.b16 %v4886, %v4884
        %v5117 = vpack.c.b16 %v4887, %v4885
        %v5118 = vpack.c.b16 %v4890, %v4888
        %v5119 = vpack.c.b16 %v4891, %v4889
        %v5120 = vpack.c.b16 %v4894, %v4892
        %v5121 = vpack.c.b16 %v4895, %v4893
        %v5122 = vpack.c.b16 %v4898, %v4896
        %v5123 = vpack.c.b16 %v4899, %v4897
        %v5124 = vpack.c.b16 %v4902, %v4900
        %v5125 = vpack.c.b16 %v4903, %v4901
        %v5126 = vpack.c.b16 %v4906, %v4904
        %v5127 = vpack.c.b16 %v4907, %v4905
        %v5128 = vpack.c.b16 %v4910, %v4908
        %v5129 = vpack.c.b16 %v4911, %v4909
        %v5130 = vpack.c.b16 %v4914, %v4912
        %v5131 = vpack.c.b16 %v4915, %v4913
        %v5132 = vpack.c.b16 %v4918, %v4916
        %v5133 = vpack.c.b16 %v4919, %v4917
        %v5134 = vpack.c.b16 %v4922, %v4920
        %v5135 = vpack.c.b16 %v4923, %v4921
        %v5136 = vpack.c.b16 %v4926, %v4924
        %v5137 = vpack.c.b16 %v4927, %v4925
        %v5138 = vpack.c.b16 %v4930, %v4928
        %v5139 = vpack.c.b16 %v4931, %v4929
        %v5140 = vpack.c.b16 %v4934, %v4932
        %v5141 = vpack.c.b16 %v4935, %v4933
        %v5142 = vpack.c.b16 %v4938, %v4936
        %v5143 = vpack.c.b16 %v4939, %v4937
        %v5144 = vpack.c.b16 %v4942, %v4940
        %v5145 = vpack.c.b16 %v4943, %v4941
        %v5146 = vpack.c.b16 %v4946, %v4944
        %v5147 = vpack.c.b16 %v4947, %v4945
        %v5148 = vpack.c.b16 %v4950, %v4948
        %v5149 = vpack.c.b16 %v4951, %v4949
        %v5150 = vpack.c.b16 %v4954, %v4952
        %v5151 = vpack.c.b16 %v4955, %v4953
        %v5152 = vpack.c.b16 %v4958, %v4956
        %v5153 = vpack.c.b16 %v4959, %v4957
        %v5154 = vpack.c.b16 %v4962, %v4960
        %v5155 = vpack.c.b16 %v4963, %v4961
        %v5156 = vpack.c.b16 %v4966, %v4964
        %v5157 = vpack.c.b16 %v4967, %v4965
        %v5158 = vpack.c.b16 %v4970, %v4968
        %v5159 = vpack.c.b16 %v4971, %v4969
        %v5160 = vpack.c.b16 %v4974, %v4972
        %v5161 = vpack.c.b16 %v4975, %v4973
        %v5162 = vpack.c.b16 %v4978, %v4976
        %v5163 = vpack.c.b16 %v4979, %v4977
        %v5164 = vpack.c.b16 %v4982, %v4980
        %v5165 = vpack.c.b16 %v4983, %v4981
        %v5166 = vpack.c.b16 %v4986, %v4984
        %v5167 = vpack.c.b16 %v4987, %v4985
        %v5168 = vpack.c.b16 %v4990, %v4988
        %v5169 = vpack.c.b16 %v4991, %v4989
        %v5170 = vpack.c.b16 %v4994, %v4992
        %v5171 = vpack.c.b16 %v4995, %v4993
        %v5172 = vpack.c.b16 %v4998, %v4996
        %v5173 = vpack.c.b16 %v4999, %v4997
        %v5174 = vpack.c.b16 %v5002, %v5000
        %v5175 = vpack.c.b16 %v5003, %v5001
        %v5176 = vpack.c.b16 %v5006, %v5004
        %v5177 = vpack.c.b16 %v5007, %v5005
        %v5178 = vpack.c.b16 %v5010, %v5008
        %v5179 = vpack.c.b16 %v5011, %v5009
        %v5180 = vpack.c.b16 %v5014, %v5012
        %v5181 = vpack.c.b16 %v5015, %v5013
        %v5182 = vpack.c.b16 %v5018, %v5016
        %v5183 = vpack.c.b16 %v5019, %v5017
        %v5184 = vpack.c.b16 %v5022, %v5020
        %v5185 = vpack.c.b16 %v5023, %v5021
        %v5186 = vpack.c.b16 %v5026, %v5024
        %v5187 = vpack.c.b16 %v5027, %v5025
        %v5188 = vpack.c.b16 %v5030, %v5028
        %v5189 = vpack.c.b16 %v5031, %v5029
        %v5190 = vpack.c.b16 %v5034, %v5032
        %v5191 = vpack.c.b16 %v5035, %v5033
        %v5192 = vpack.c.b16 %v5038, %v5036
        %v5193 = vpack.c.b16 %v5039, %v5037
        %v5194 = vpack.c.b16 %v5042, %v5040
        %v5195 = vpack.c.b16 %v5043, %v5041
        %v5196 = vpack.c.b16 %v5046, %v5044
        %v5197 = vpack.c.b16 %v5047, %v5045
        %v5198 = vpack.c.b16 %v5050, %v5048
        %v5199 = vpack.c.b16 %v5051, %v5049
        %v5200 = vpack.c.b16 %v5054, %v5052
        %v5201 = vpack.c.b16 %v5055, %v5053
        %v5202 = vpack.c.b16 %v5058, %v5056
        %v5203 = vpack.c.b16 %v5059, %v5057
        %v5204 = vpack.c.b16 %v5062, %v5060
        %v5205 = vpack.c.b16 %v5063, %v5061
        %v5206 = vpack.c.b16 %v5066, %v5064
        %v5207 = vpack.c.b16 %v5067, %v5065
        %v5208 = vpack.c.b16 %v5070, %v5068
        %v5209 = vpack.c.b16 %v5071, %v5069
        %v5210 = vpack.c.b16 %v5074, %v5072
        %v5211 = vpack.c.b16 %v5075, %v5073
        %v5212 = vpack.c.b16 %v5078, %v5076
        %v5213 = vpack.c.b16 %v5079, %v5077
        %v5214 = vpack.c.b16 %v5082, %v5080
        %v5215 = vpack.c.b16 %v5083, %v5081
        %v5216 = vpack.c.b16 %v5086, %v5084
        %v5217 = vpack.c.b16 %v5087, %v5085
        %v5218 = vpack.c.b16 %v5090, %v5088
        %v5219 = vpack.c.b16 %v5091, %v5089
        %5348 = vmatprep.subr.bf16.mxu0 %v5093
        %5349 = vmatpush1.bf16.msra.mxu0 %v5092
        %5350 = vmatprep.subr.bf16.mxu0 %v5095
        %5351 = vmatpush1.bf16.msra.mxu0 %v5094
        %5352 = vmatprep.subr.bf16.mxu0 %v5097
        %5353 = vmatpush1.bf16.msra.mxu0 %v5096
        %5354 = vmatprep.subr.bf16.mxu0 %v5099
        %5355 = vmatpush1.bf16.msra.mxu0 %v5098
        %5356 = vmatprep.subr.bf16.mxu0 %v5101
        %5357 = vmatpush1.bf16.msra.mxu0 %v5100
        %5358 = vmatprep.subr.bf16.mxu0 %v5103
        %5359 = vmatpush1.bf16.msra.mxu0 %v5102
        %5360 = vmatprep.subr.bf16.mxu0 %v5105
        %5361 = vmatpush1.bf16.msra.mxu0 %v5104
        %5362 = vmatprep.subr.bf16.mxu0 %v5107
        %5363 = vmatpush1.bf16.msra.mxu0 %v5106
        %5364 = vmatprep.subr.bf16.mxu0 %v5109
        %5365 = vmatpush1.bf16.msra.mxu0 %v5108
        %5366 = vmatprep.subr.bf16.mxu0 %v5111
        %5367 = vmatpush1.bf16.msra.mxu0 %v5110
        %5368 = vmatprep.subr.bf16.mxu0 %v5113
        %5369 = vmatpush1.bf16.msra.mxu0 %v5112
        %5370 = vmatprep.subr.bf16.mxu0 %v5115
        %5371 = vmatpush1.bf16.msra.mxu0 %v5114
        %5372 = vmatprep.subr.bf16.mxu0 %v5117
        %5373 = vmatpush1.bf16.msra.mxu0 %v5116
        %5374 = vmatprep.subr.bf16.mxu0 %v5119
        %5375 = vmatpush1.bf16.msra.mxu0 %v5118
        %5376 = vmatprep.subr.bf16.mxu0 %v5121
        %5377 = vmatpush1.bf16.msra.mxu0 %v5120
        %5378 = vmatprep.subr.bf16.mxu0 %v5123
        %5379 = vmatpush1.bf16.msra.mxu0 %v5122
        %5380 = vmatprep.mubr.bf16.mxu0 %v4505
        %5381 = vmatmul.mubr.bf16.gmra.mrb[0].mxu0 %v4504
        %v5382 = vpop.f32.mrb[0].mxu0
        %v5383 = vadd.f32 %v4701, %v5382
        %v5384 = vpop.f32.mrb[0].mxu0
        %v5385 = vadd.f32 %v4705, %v5384
        %v5386 = vpop.f32.mrb[0].mxu0
        %v5387 = vadd.f32 %v4701, %v5386
        %v5388 = vpop.f32.mrb[0].mxu0
        %v5389 = vadd.f32 %v4705, %v5388
        %5390 = vmatprep.mubr.bf16.mxu0 %v4513
        %5391 = vmatmul.mubr.bf16.gmra.mrb[0].mxu0 %v4512
        %v5392 = vpop.f32.mrb[0].mxu0
        %v5393 = vadd.f32 %v4701, %v5392
        %v5394 = vpop.f32.mrb[0].mxu0
        %v5395 = vadd.f32 %v4705, %v5394
        %v5396 = vpop.f32.mrb[0].mxu0
        %v5397 = vadd.f32 %v4701, %v5396
        %v5398 = vpop.f32.mrb[0].mxu0
        %v5399 = vadd.f32 %v4705, %v5398
        %5400 = vmatprep.mubr.bf16.mxu0 %v4521
        %5401 = vmatmul.mubr.bf16.gmra.mrb[0].mxu0 %v4520
        %v5402 = vpop.f32.mrb[0].mxu0
        %v5403 = vadd.f32 %v4701, %v5402
        %v5404 = vpop.f32.mrb[0].mxu0
        %v5405 = vadd.f32 %v4705, %v5404
        %v5406 = vpop.f32.mrb[0].mxu0
        %v5407 = vadd.f32 %v4701, %v5406
        %v5408 = vpop.f32.mrb[0].mxu0
        %v5409 = vadd.f32 %v4705, %v5408
        %5410 = vmatprep.mubr.bf16.mxu0 %v4529
        %5411 = vmatmul.mubr.bf16.gmra.mrb[0].mxu0 %v4528
        %v5412 = vpop.f32.mrb[0].mxu0
        %v5413 = vadd.f32 %v4701, %v5412
        %v5414 = vpop.f32.mrb[0].mxu0
        %v5415 = vadd.f32 %v4705, %v5414
        %v5416 = vpop.f32.mrb[0].mxu0
        %v5417 = vadd.f32 %v4701, %v5416
        %v5418 = vpop.f32.mrb[0].mxu0
        %v5419 = vadd.f32 %v4705, %v5418
        %5420 = vmatprep.mubr.bf16.mxu0 %v4537
        %5421 = vmatmul.mubr.bf16.gmra.mrb[0].mxu0 %v4536
        %v5422 = vpop.f32.mrb[0].mxu0
        %v5423 = vadd.f32 %v4701, %v5422
        %v5424 = vpop.f32.mrb[0].mxu0
        %v5425 = vadd.f32 %v4705, %v5424
        %v5426 = vpop.f32.mrb[0].mxu0
        %v5427 = vadd.f32 %v4701, %v5426
        %v5428 = vpop.f32.mrb[0].mxu0
        %v5429 = vadd.f32 %v4705, %v5428
        %5430 = vmatprep.mubr.bf16.mxu0 %v4545
        %5431 = vmatmul.mubr.bf16.gmra.mrb[0].mxu0 %v4544
        %v5432 = vpop.f32.mrb[0].mxu0
        %v5433 = vadd.f32 %v4701, %v5432
        %v5434 = vpop.f32.mrb[0].mxu0
        %v5435 = vadd.f32 %v4705, %v5434
        %v5436 = vpop.f32.mrb[0].mxu0
        %v5437 = vadd.f32 %v4701, %v5436
        %v5438 = vpop.f32.mrb[0].mxu0
        %v5439 = vadd.f32 %v4705, %v5438
        %5440 = vmatprep.mubr.bf16.mxu0 %v4553
        %5441 = vmatmul.mubr.bf16.gmra.mrb[0].mxu0 %v4552
        %v5442 = vpop.f32.mrb[0].mxu0
        %v5443 = vadd.f32 %v4701, %v5442
        %v5444 = vpop.f32.mrb[0].mxu0
        %v5445 = vadd.f32 %v4705, %v5444
        %v5446 = vpop.f32.mrb[0].mxu0
        %v5447 = vadd.f32 %v4701, %v5446
        %v5448 = vpop.f32.mrb[0].mxu0
        %v5449 = vadd.f32 %v4705, %v5448
        %5450 = vmatprep.mubr.bf16.mxu0 %v4561
        %5451 = vmatmul.mubr.bf16.gmra.mrb[0].mxu0 %v4560
        %v5452 = vpop.f32.mrb[0].mxu0
        %v5453 = vadd.f32 %v4701, %v5452
        %v5454 = vpop.f32.mrb[0].mxu0
        %v5455 = vadd.f32 %v4705, %v5454
        %v5456 = vpop.f32.mrb[0].mxu0
        %v5457 = vadd.f32 %v4701, %v5456
        %v5458 = vpop.f32.mrb[0].mxu0
        %v5459 = vadd.f32 %v4705, %v5458
        %5460 = vdwg.mxu0
        %5461 = vmatprep.subr.bf16.mxu0 %v5125
        %5462 = vmatpush1.bf16.msra.mxu0 %v5124
        %5463 = vmatprep.subr.bf16.mxu0 %v5127
        %5464 = vmatpush1.bf16.msra.mxu0 %v5126
        %5465 = vmatprep.subr.bf16.mxu0 %v5129
        %5466 = vmatpush1.bf16.msra.mxu0 %v5128
        %5467 = vmatprep.subr.bf16.mxu0 %v5131
        %5468 = vmatpush1.bf16.msra.mxu0 %v5130
        %5469 = vmatprep.subr.bf16.mxu0 %v5133
        %5470 = vmatpush1.bf16.msra.mxu0 %v5132
        %5471 = vmatprep.subr.bf16.mxu0 %v5135
        %5472 = vmatpush1.bf16.msra.mxu0 %v5134
        %5473 = vmatprep.subr.bf16.mxu0 %v5137
        %5474 = vmatpush1.bf16.msra.mxu0 %v5136
        %5475 = vmatprep.subr.bf16.mxu0 %v5139
        %5476 = vmatpush1.bf16.msra.mxu0 %v5138
        %5477 = vmatprep.subr.bf16.mxu0 %v5141
        %5478 = vmatpush1.bf16.msra.mxu0 %v5140
        %5479 = vmatprep.subr.bf16.mxu0 %v5143
        %5480 = vmatpush1.bf16.msra.mxu0 %v5142
        %5481 = vmatprep.subr.bf16.mxu0 %v5145
        %5482 = vmatpush1.bf16.msra.mxu0 %v5144
        %5483 = vmatprep.subr.bf16.mxu0 %v5147
        %5484 = vmatpush1.bf16.msra.mxu0 %v5146
        %5485 = vmatprep.subr.bf16.mxu0 %v5149
        %5486 = vmatpush1.bf16.msra.mxu0 %v5148
        %5487 = vmatprep.subr.bf16.mxu0 %v5151
        %5488 = vmatpush1.bf16.msra.mxu0 %v5150
        %5489 = vmatprep.subr.bf16.mxu0 %v5153
        %5490 = vmatpush1.bf16.msra.mxu0 %v5152
        %5491 = vmatprep.subr.bf16.mxu0 %v5155
        %5492 = vmatpush1.bf16.msra.mxu0 %v5154
        %5493 = vmatprep.mubr.bf16.mxu0 %v4507
        %5494 = vmatmul.mubr.bf16.gmra.mrb[0].mxu0 %v4506
        %v5495 = vpop.f32.mrb[0].mxu0
        %v5496 = vadd.f32 %v5383, %v5495
        %v5497 = vpop.f32.mrb[0].mxu0
        %v5498 = vadd.f32 %v5385, %v5497
        %v5499 = vpop.f32.mrb[0].mxu0
        %v5500 = vadd.f32 %v5387, %v5499
        %v5501 = vpop.f32.mrb[0].mxu0
        %v5502 = vadd.f32 %v5389, %v5501
        %5503 = vmatprep.mubr.bf16.mxu0 %v4515
        %5504 = vmatmul.mubr.bf16.gmra.mrb[0].mxu0 %v4514
        %v5505 = vpop.f32.mrb[0].mxu0
        %v5506 = vadd.f32 %v5393, %v5505
        %v5507 = vpop.f32.mrb[0].mxu0
        %v5508 = vadd.f32 %v5395, %v5507
        %v5509 = vpop.f32.mrb[0].mxu0
        %v5510 = vadd.f32 %v5397, %v5509
        %v5511 = vpop.f32.mrb[0].mxu0
        %v5512 = vadd.f32 %v5399, %v5511
        %5513 = vmatprep.mubr.bf16.mxu0 %v4523
        %5514 = vmatmul.mubr.bf16.gmra.mrb[0].mxu0 %v4522
        %v5515 = vpop.f32.mrb[0].mxu0
        %v5516 = vadd.f32 %v5403, %v5515
        %v5517 = vpop.f32.mrb[0].mxu0
        %v5518 = vadd.f32 %v5405, %v5517
        %v5519 = vpop.f32.mrb[0].mxu0
        %v5520 = vadd.f32 %v5407, %v5519
        %v5521 = vpop.f32.mrb[0].mxu0
        %v5522 = vadd.f32 %v5409, %v5521
        %5523 = vmatprep.mubr.bf16.mxu0 %v4531
        %5524 = vmatmul.mubr.bf16.gmra.mrb[0].mxu0 %v4530
        %v5525 = vpop.f32.mrb[0].mxu0
        %v5526 = vadd.f32 %v5413, %v5525
        %v5527 = vpop.f32.mrb[0].mxu0
        %v5528 = vadd.f32 %v5415, %v5527
        %v5529 = vpop.f32.mrb[0].mxu0
        %v5530 = vadd.f32 %v5417, %v5529
        %v5531 = vpop.f32.mrb[0].mxu0
        %v5532 = vadd.f32 %v5419, %v5531
        %5533 = vmatprep.mubr.bf16.mxu0 %v4539
        %5534 = vmatmul.mubr.bf16.gmra.mrb[0].mxu0 %v4538
        %v5535 = vpop.f32.mrb[0].mxu0
        %v5536 = vadd.f32 %v5423, %v5535
        %v5537 = vpop.f32.mrb[0].mxu0
        %v5538 = vadd.f32 %v5425, %v5537
        %v5539 = vpop.f32.mrb[0].mxu0
        %v5540 = vadd.f32 %v5427, %v5539
        %v5541 = vpop.f32.mrb[0].mxu0
        %v5542 = vadd.f32 %v5429, %v5541
        %5543 = vmatprep.mubr.bf16.mxu0 %v4547
        %5544 = vmatmul.mubr.bf16.gmra.mrb[0].mxu0 %v4546
        %v5545 = vpop.f32.mrb[0].mxu0
        %v5546 = vadd.f32 %v5433, %v5545
        %v5547 = vpop.f32.mrb[0].mxu0
        %v5548 = vadd.f32 %v5435, %v5547
        %v5549 = vpop.f32.mrb[0].mxu0
        %v5550 = vadd.f32 %v5437, %v5549
        %v5551 = vpop.f32.mrb[0].mxu0
        %v5552 = vadd.f32 %v5439, %v5551
        %5553 = vmatprep.mubr.bf16.mxu0 %v4555
        %5554 = vmatmul.mubr.bf16.gmra.mrb[0].mxu0 %v4554
        %v5555 = vpop.f32.mrb[0].mxu0
        %v5556 = vadd.f32 %v5443, %v5555
        %v5557 = vpop.f32.mrb[0].mxu0
        %v5558 = vadd.f32 %v5445, %v5557
        %v5559 = vpop.f32.mrb[0].mxu0
        %v5560 = vadd.f32 %v5447, %v5559
        %v5561 = vpop.f32.mrb[0].mxu0
        %v5562 = vadd.f32 %v5449, %v5561
        %5563 = vmatprep.mubr.bf16.mxu0 %v4563
        %5564 = vmatmul.mubr.bf16.gmra.mrb[0].mxu0 %v4562
        %v5565 = vpop.f32.mrb[0].mxu0
        %v5566 = vadd.f32 %v5453, %v5565
        %v5567 = vpop.f32.mrb[0].mxu0
        %v5568 = vadd.f32 %v5455, %v5567
        %v5569 = vpop.f32.mrb[0].mxu0
        %v5570 = vadd.f32 %v5457, %v5569
        %v5571 = vpop.f32.mrb[0].mxu0
        %v5572 = vadd.f32 %v5459, %v5571
        %5573 = vdwg.mxu0
        %5574 = vmatprep.subr.bf16.mxu0 %v5157
        %5575 = vmatpush1.bf16.msra.mxu0 %v5156
        %5576 = vmatprep.subr.bf16.mxu0 %v5159
        %5577 = vmatpush1.bf16.msra.mxu0 %v5158
        %5578 = vmatprep.subr.bf16.mxu0 %v5161
        %5579 = vmatpush1.bf16.msra.mxu0 %v5160
        %5580 = vmatprep.subr.bf16.mxu0 %v5163
        %5581 = vmatpush1.bf16.msra.mxu0 %v5162
        %5582 = vmatprep.subr.bf16.mxu0 %v5165
        %5583 = vmatpush1.bf16.msra.mxu0 %v5164
        %5584 = vmatprep.subr.bf16.mxu0 %v5167
        %5585 = vmatpush1.bf16.msra.mxu0 %v5166
        %5586 = vmatprep.subr.bf16.mxu0 %v5169
        %5587 = vmatpush1.bf16.msra.mxu0 %v5168
        %5588 = vmatprep.subr.bf16.mxu0 %v5171
        %5589 = vmatpush1.bf16.msra.mxu0 %v5170
        %5590 = vmatprep.subr.bf16.mxu0 %v5173
        %5591 = vmatpush1.bf16.msra.mxu0 %v5172
        %5592 = vmatprep.subr.bf16.mxu0 %v5175
        %5593 = vmatpush1.bf16.msra.mxu0 %v5174
        %5594 = vmatprep.subr.bf16.mxu0 %v5177
        %5595 = vmatpush1.bf16.msra.mxu0 %v5176
        %5596 = vmatprep.subr.bf16.mxu0 %v5179
        %5597 = vmatpush1.bf16.msra.mxu0 %v5178
        %5598 = vmatprep.subr.bf16.mxu0 %v5181
        %5599 = vmatpush1.bf16.msra.mxu0 %v5180
        %5600 = vmatprep.subr.bf16.mxu0 %v5183
        %5601 = vmatpush1.bf16.msra.mxu0 %v5182
        %5602 = vmatprep.subr.bf16.mxu0 %v5185
        %5603 = vmatpush1.bf16.msra.mxu0 %v5184
        %5604 = vmatprep.subr.bf16.mxu0 %v5187
        %5605 = vmatpush1.bf16.msra.mxu0 %v5186
        %5606 = vmatprep.mubr.bf16.mxu0 %v4509
        %5607 = vmatmul.mubr.bf16.gmra.mrb[0].mxu0 %v4508
        %v5608 = vpop.f32.mrb[0].mxu0
        %v5609 = vadd.f32 %v5496, %v5608
        %v5610 = vpop.f32.mrb[0].mxu0
        %v5611 = vadd.f32 %v5498, %v5610
        %v5612 = vpop.f32.mrb[0].mxu0
        %v5613 = vadd.f32 %v5500, %v5612
        %v5614 = vpop.f32.mrb[0].mxu0
        %v5615 = vadd.f32 %v5502, %v5614
        %5616 = vmatprep.mubr.bf16.mxu0 %v4517
        %5617 = vmatmul.mubr.bf16.gmra.mrb[0].mxu0 %v4516
        %v5618 = vpop.f32.mrb[0].mxu0
        %v5619 = vadd.f32 %v5506, %v5618
        %v5620 = vpop.f32.mrb[0].mxu0
        %v5621 = vadd.f32 %v5508, %v5620
        %v5622 = vpop.f32.mrb[0].mxu0
        %v5623 = vadd.f32 %v5510, %v5622
        %v5624 = vpop.f32.mrb[0].mxu0
        %v5625 = vadd.f32 %v5512, %v5624
        %5626 = vmatprep.mubr.bf16.mxu0 %v4525
        %5627 = vmatmul.mubr.bf16.gmra.mrb[0].mxu0 %v4524
        %v5628 = vpop.f32.mrb[0].mxu0
        %v5629 = vadd.f32 %v5516, %v5628
        %v5630 = vpop.f32.mrb[0].mxu0
        %v5631 = vadd.f32 %v5518, %v5630
        %v5632 = vpop.f32.mrb[0].mxu0
        %v5633 = vadd.f32 %v5520, %v5632
        %v5634 = vpop.f32.mrb[0].mxu0
        %v5635 = vadd.f32 %v5522, %v5634
        %5636 = vmatprep.mubr.bf16.mxu0 %v4533
        %5637 = vmatmul.mubr.bf16.gmra.mrb[0].mxu0 %v4532
        %v5638 = vpop.f32.mrb[0].mxu0
        %v5639 = vadd.f32 %v5526, %v5638
        %v5640 = vpop.f32.mrb[0].mxu0
        %v5641 = vadd.f32 %v5528, %v5640
        %v5642 = vpop.f32.mrb[0].mxu0
        %v5643 = vadd.f32 %v5530, %v5642
        %v5644 = vpop.f32.mrb[0].mxu0
        %v5645 = vadd.f32 %v5532, %v5644
        %5646 = vmatprep.mubr.bf16.mxu0 %v4541
        %5647 = vmatmul.mubr.bf16.gmra.mrb[0].mxu0 %v4540
        %v5648 = vpop.f32.mrb[0].mxu0
        %v5649 = vadd.f32 %v5536, %v5648
        %v5650 = vpop.f32.mrb[0].mxu0
        %v5651 = vadd.f32 %v5538, %v5650
        %v5652 = vpop.f32.mrb[0].mxu0
        %v5653 = vadd.f32 %v5540, %v5652
        %v5654 = vpop.f32.mrb[0].mxu0
        %v5655 = vadd.f32 %v5542, %v5654
        %5656 = vmatprep.mubr.bf16.mxu0 %v4549
        %5657 = vmatmul.mubr.bf16.gmra.mrb[0].mxu0 %v4548
        %v5658 = vpop.f32.mrb[0].mxu0
        %v5659 = vadd.f32 %v5546, %v5658
        %v5660 = vpop.f32.mrb[0].mxu0
        %v5661 = vadd.f32 %v5548, %v5660
        %v5662 = vpop.f32.mrb[0].mxu0
        %v5663 = vadd.f32 %v5550, %v5662
        %v5664 = vpop.f32.mrb[0].mxu0
        %v5665 = vadd.f32 %v5552, %v5664
        %5666 = vmatprep.mubr.bf16.mxu0 %v4557
        %5667 = vmatmul.mubr.bf16.gmra.mrb[0].mxu0 %v4556
        %v5668 = vpop.f32.mrb[0].mxu0
        %v5669 = vadd.f32 %v5556, %v5668
        %v5670 = vpop.f32.mrb[0].mxu0
        %v5671 = vadd.f32 %v5558, %v5670
        %v5672 = vpop.f32.mrb[0].mxu0
        %v5673 = vadd.f32 %v5560, %v5672
        %v5674 = vpop.f32.mrb[0].mxu0
        %v5675 = vadd.f32 %v5562, %v5674
        %5676 = vmatprep.mubr.bf16.mxu0 %v4565
        %5677 = vmatmul.mubr.bf16.gmra.mrb[0].mxu0 %v4564
        %v5678 = vpop.f32.mrb[0].mxu0
        %v5679 = vadd.f32 %v5566, %v5678
        %v5680 = vpop.f32.mrb[0].mxu0
        %v5681 = vadd.f32 %v5568, %v5680
        %v5682 = vpop.f32.mrb[0].mxu0
        %v5683 = vadd.f32 %v5570, %v5682
        %v5684 = vpop.f32.mrb[0].mxu0
        %v5685 = vadd.f32 %v5572, %v5684
        %5686 = vdwg.mxu0
        %5687 = vmatprep.subr.bf16.mxu0 %v5189
        %5688 = vmatpush1.bf16.msra.mxu0 %v5188
        %5689 = vmatprep.subr.bf16.mxu0 %v5191
        %5690 = vmatpush1.bf16.msra.mxu0 %v5190
        %5691 = vmatprep.subr.bf16.mxu0 %v5193
        %5692 = vmatpush1.bf16.msra.mxu0 %v5192
        %5693 = vmatprep.subr.bf16.mxu0 %v5195
        %5694 = vmatpush1.bf16.msra.mxu0 %v5194
        %5695 = vmatprep.subr.bf16.mxu0 %v5197
        %5696 = vmatpush1.bf16.msra.mxu0 %v5196
        %5697 = vmatprep.subr.bf16.mxu0 %v5199
        %5698 = vmatpush1.bf16.msra.mxu0 %v5198
        %5699 = vmatprep.subr.bf16.mxu0 %v5201
        %5700 = vmatpush1.bf16.msra.mxu0 %v5200
        %5701 = vmatprep.subr.bf16.mxu0 %v5203
        %5702 = vmatpush1.bf16.msra.mxu0 %v5202
        %5703 = vmatprep.subr.bf16.mxu0 %v5205
        %5704 = vmatpush1.bf16.msra.mxu0 %v5204
        %5705 = vmatprep.subr.bf16.mxu0 %v5207
        %5706 = vmatpush1.bf16.msra.mxu0 %v5206
        %5707 = vmatprep.subr.bf16.mxu0 %v5209
        %5708 = vmatpush1.bf16.msra.mxu0 %v5208
        %5709 = vmatprep.subr.bf16.mxu0 %v5211
        %5710 = vmatpush1.bf16.msra.mxu0 %v5210
        %5711 = vmatprep.subr.bf16.mxu0 %v5213
        %5712 = vmatpush1.bf16.msra.mxu0 %v5212
        %5713 = vmatprep.subr.bf16.mxu0 %v5215
        %5714 = vmatpush1.bf16.msra.mxu0 %v5214
        %5715 = vmatprep.subr.bf16.mxu0 %v5217
        %5716 = vmatpush1.bf16.msra.mxu0 %v5216
        %5717 = vmatprep.subr.bf16.mxu0 %v5219
        %5718 = vmatpush1.bf16.msra.mxu0 %v5218
        %5719 = vmatprep.mubr.bf16.mxu0 %v4511
        %5720 = vmatmul.mubr.bf16.gmra.mrb[0].mxu0 %v4510
        %v5721 = vpop.f32.mrb[0].mxu0
        %v5722 = vadd.f32 %v5609, %v5721
        %v5723 = vpop.f32.mrb[0].mxu0
        %v5724 = vadd.f32 %v5611, %v5723
        %v5725 = vpop.f32.mrb[0].mxu0
        %v5726 = vadd.f32 %v5613, %v5725
        %v5727 = vpop.f32.mrb[0].mxu0
        %v5728 = vadd.f32 %v5615, %v5727
        %5729 = vmatprep.mubr.bf16.mxu0 %v4519
        %5730 = vmatmul.mubr.bf16.gmra.mrb[0].mxu0 %v4518
        %v5731 = vpop.f32.mrb[0].mxu0
        %v5732 = vadd.f32 %v5619, %v5731
        %v5733 = vpop.f32.mrb[0].mxu0
        %v5734 = vadd.f32 %v5621, %v5733
        %v5735 = vpop.f32.mrb[0].mxu0
        %v5736 = vadd.f32 %v5623, %v5735
        %v5737 = vpop.f32.mrb[0].mxu0
        %v5738 = vadd.f32 %v5625, %v5737
        %5739 = vmatprep.mubr.bf16.mxu0 %v4527
        %5740 = vmatmul.mubr.bf16.gmra.mrb[0].mxu0 %v4526
        %v5741 = vpop.f32.mrb[0].mxu0
        %v5742 = vadd.f32 %v5629, %v5741
        %v5743 = vpop.f32.mrb[0].mxu0
        %v5744 = vadd.f32 %v5631, %v5743
        %v5745 = vpop.f32.mrb[0].mxu0
        %v5746 = vadd.f32 %v5633, %v5745
        %v5747 = vpop.f32.mrb[0].mxu0
        %v5748 = vadd.f32 %v5635, %v5747
        %5749 = vmatprep.mubr.bf16.mxu0 %v4535
        %5750 = vmatmul.mubr.bf16.gmra.mrb[0].mxu0 %v4534
        %v5751 = vpop.f32.mrb[0].mxu0
        %v5752 = vadd.f32 %v5639, %v5751
        %v5753 = vpop.f32.mrb[0].mxu0
        %v5754 = vadd.f32 %v5641, %v5753
        %v5755 = vpop.f32.mrb[0].mxu0
        %v5756 = vadd.f32 %v5643, %v5755
        %v5757 = vpop.f32.mrb[0].mxu0
        %v5758 = vadd.f32 %v5645, %v5757
        %5759 = vmatprep.mubr.bf16.mxu0 %v4543
        %5760 = vmatmul.mubr.bf16.gmra.mrb[0].mxu0 %v4542
        %v5761 = vpop.f32.mrb[0].mxu0
        %v5762 = vadd.f32 %v5649, %v5761
        %v5763 = vpop.f32.mrb[0].mxu0
        %v5764 = vadd.f32 %v5651, %v5763
        %v5765 = vpop.f32.mrb[0].mxu0
        %v5766 = vadd.f32 %v5653, %v5765
        %v5767 = vpop.f32.mrb[0].mxu0
        %v5768 = vadd.f32 %v5655, %v5767
        %5769 = vmatprep.mubr.bf16.mxu0 %v4551
        %5770 = vmatmul.mubr.bf16.gmra.mrb[0].mxu0 %v4550
        %v5771 = vpop.f32.mrb[0].mxu0
        %v5772 = vadd.f32 %v5659, %v5771
        %v5773 = vpop.f32.mrb[0].mxu0
        %v5774 = vadd.f32 %v5661, %v5773
        %v5775 = vpop.f32.mrb[0].mxu0
        %v5776 = vadd.f32 %v5663, %v5775
        %v5777 = vpop.f32.mrb[0].mxu0
        %v5778 = vadd.f32 %v5665, %v5777
        %5779 = vmatprep.mubr.bf16.mxu0 %v4559
        %5780 = vmatmul.mubr.bf16.gmra.mrb[0].mxu0 %v4558
        %v5781 = vpop.f32.mrb[0].mxu0
        %v5782 = vadd.f32 %v5669, %v5781
        %v5783 = vpop.f32.mrb[0].mxu0
        %v5784 = vadd.f32 %v5671, %v5783
        %v5785 = vpop.f32.mrb[0].mxu0
        %v5786 = vadd.f32 %v5673, %v5785
        %v5787 = vpop.f32.mrb[0].mxu0
        %v5788 = vadd.f32 %v5675, %v5787
        %5789 = vmatprep.mubr.bf16.mxu0 %v4567
        %5790 = vmatmul.mubr.bf16.gmra.mrb[0].mxu0 %v4566
        %v5791 = vpop.f32.mrb[0].mxu0
        %v5792 = vadd.f32 %v5679, %v5791
        %v5793 = vpop.f32.mrb[0].mxu0
        %v5794 = vadd.f32 %v5681, %v5793
        %v5795 = vpop.f32.mrb[0].mxu0
        %v5796 = vadd.f32 %v5683, %v5795
        %v5797 = vpop.f32.mrb[0].mxu0
        %v5798 = vadd.f32 %v5685, %v5797
        %5799 = vdwg.mxu0
        %vm5800 = vcmp.gt.f32.partialorder %v5722, 0.0
        %vm5801 = vcmp.gt.f32.partialorder %v5724, 0.0
        %vm5802 = vcmp.gt.f32.partialorder %v5726, 0.0
        %vm5803 = vcmp.gt.f32.partialorder %v5728, 0.0
        %vm5804 = vcmp.gt.f32.partialorder %v5732, 0.0
        %vm5805 = vcmp.gt.f32.partialorder %v5734, 0.0
        %vm5806 = vcmp.gt.f32.partialorder %v5736, 0.0
        %vm5807 = vcmp.gt.f32.partialorder %v5738, 0.0
        %vm5808 = vcmp.gt.f32.partialorder %v5742, 0.0
        %vm5809 = vcmp.gt.f32.partialorder %v5744, 0.0
        %vm5810 = vcmp.gt.f32.partialorder %v5746, 0.0
        %vm5811 = vcmp.gt.f32.partialorder %v5748, 0.0
        %vm5812 = vcmp.gt.f32.partialorder %v5752, 0.0
        %vm5813 = vcmp.gt.f32.partialorder %v5754, 0.0
        %vm5814 = vcmp.gt.f32.partialorder %v5756, 0.0
        %vm5815 = vcmp.gt.f32.partialorder %v5758, 0.0
        %vm5816 = vcmp.gt.f32.partialorder %v5762, 0.0
        %vm5817 = vcmp.gt.f32.partialorder %v5764, 0.0
        %vm5818 = vcmp.gt.f32.partialorder %v5766, 0.0
        %vm5819 = vcmp.gt.f32.partialorder %v5768, 0.0
        %vm5820 = vcmp.gt.f32.partialorder %v5772, 0.0
        %vm5821 = vcmp.gt.f32.partialorder %v5774, 0.0
        %vm5822 = vcmp.gt.f32.partialorder %v5776, 0.0
        %vm5823 = vcmp.gt.f32.partialorder %v5778, 0.0
        %vm5824 = vcmp.gt.f32.partialorder %v5782, 0.0
        %vm5825 = vcmp.gt.f32.partialorder %v5784, 0.0
        %vm5826 = vcmp.gt.f32.partialorder %v5786, 0.0
        %vm5827 = vcmp.gt.f32.partialorder %v5788, 0.0
        %vm5828 = vcmp.gt.f32.partialorder %v5792, 0.0
        %vm5829 = vcmp.gt.f32.partialorder %v5794, 0.0
        %vm5830 = vcmp.gt.f32.partialorder %v5796, 0.0
        %vm5831 = vcmp.gt.f32.partialorder %v5798, 0.0
        %v5832 = vmul.f32 %v5722, 0.2
        %v5833 = vmul.f32 %v5724, 0.2
        %v5834 = vmul.f32 %v5726, 0.2
        %v5835 = vmul.f32 %v5728, 0.2
        %v5836 = vmul.f32 %v5732, 0.2
        %v5837 = vmul.f32 %v5734, 0.2
        %v5838 = vmul.f32 %v5736, 0.2
        %v5839 = vmul.f32 %v5738, 0.2
        %v5840 = vmul.f32 %v5742, 0.2
        %v5841 = vmul.f32 %v5744, 0.2
        %v5842 = vmul.f32 %v5746, 0.2
        %v5843 = vmul.f32 %v5748, 0.2
        %v5844 = vmul.f32 %v5752, 0.2
        %v5845 = vmul.f32 %v5754, 0.2
        %v5846 = vmul.f32 %v5756, 0.2
        %v5847 = vmul.f32 %v5758, 0.2
        %v5848 = vmul.f32 %v5762, 0.2
        %v5849 = vmul.f32 %v5764, 0.2
        %v5850 = vmul.f32 %v5766, 0.2
        %v5851 = vmul.f32 %v5768, 0.2
        %v5852 = vmul.f32 %v5772, 0.2
        %v5853 = vmul.f32 %v5774, 0.2
        %v5854 = vmul.f32 %v5776, 0.2
        %v5855 = vmul.f32 %v5778, 0.2
        %v5856 = vmul.f32 %v5782, 0.2
        %v5857 = vmul.f32 %v5784, 0.2
        %v5858 = vmul.f32 %v5786, 0.2
        %v5859 = vmul.f32 %v5788, 0.2
        %v5860 = vmul.f32 %v5792, 0.2
        %v5861 = vmul.f32 %v5794, 0.2
        %v5862 = vmul.f32 %v5796, 0.2
        %v5863 = vmul.f32 %v5798, 0.2
        %v5864 = vsel %vm5800, %v5722, %v5832
        %v5865 = vsel %vm5801, %v5724, %v5833
        %v5866 = vsel %vm5802, %v5726, %v5834
        %v5867 = vsel %vm5803, %v5728, %v5835
        %v5868 = vsel %vm5804, %v5732, %v5836
        %v5869 = vsel %vm5805, %v5734, %v5837
        %v5870 = vsel %vm5806, %v5736, %v5838
        %v5871 = vsel %vm5807, %v5738, %v5839
        %v5872 = vsel %vm5808, %v5742, %v5840
        %v5873 = vsel %vm5809, %v5744, %v5841
        %v5874 = vsel %vm5810, %v5746, %v5842
        %v5875 = vsel %vm5811, %v5748, %v5843
        %v5876 = vsel %vm5812, %v5752, %v5844
        %v5877 = vsel %vm5813, %v5754, %v5845
        %v5878 = vsel %vm5814, %v5756, %v5846
        %v5879 = vsel %vm5815, %v5758, %v5847
        %v5880 = vsel %vm5816, %v5762, %v5848
        %v5881 = vsel %vm5817, %v5764, %v5849
        %v5882 = vsel %vm5818, %v5766, %v5850
        %v5883 = vsel %vm5819, %v5768, %v5851
        %v5884 = vsel %vm5820, %v5772, %v5852
        %v5885 = vsel %vm5821, %v5774, %v5853
        %v5886 = vsel %vm5822, %v5776, %v5854
        %v5887 = vsel %vm5823, %v5778, %v5855
        %v5888 = vsel %vm5824, %v5782, %v5856
        %v5889 = vsel %vm5825, %v5784, %v5857
        %v5890 = vsel %vm5826, %v5786, %v5858
        %v5891 = vsel %vm5827, %v5788, %v5859
        %v5892 = vsel %vm5828, %v5792, %v5860
        %v5893 = vsel %vm5829, %v5794, %v5861
        %v5894 = vsel %vm5830, %v5796, %v5862
        %v5895 = vsel %vm5831, %v5798, %v5863
        %5896 = vst [vmem:[%s421] sm:$0xff] %v5864
        %5897 = vst [vmem:[%s421 + $0x8] sm:$0xff] %v5865
        %5898 = vst [vmem:[%s421 + $0x10] sm:$0xff] %v5866
        %5899 = vst [vmem:[%s421 + $0x18] sm:$0xff] %v5867
        %5900 = vst [vmem:[%s421 + $0x20] sm:$0xff] %v5868
        %5901 = vst [vmem:[%s421 + $0x28] sm:$0xff] %v5869
        %5902 = vst [vmem:[%s421 + $0x30] sm:$0xff] %v5870
        %5903 = vst [vmem:[%s421 + $0x38] sm:$0xff] %v5871
        %5904 = vst [vmem:[%s421 + $0x40] sm:$0xff] %v5872
        %5905 = vst [vmem:[%s421 + $0x48] sm:$0xff] %v5873
        %5906 = vst [vmem:[%s421 + $0x50] sm:$0xff] %v5874
        %5907 = vst [vmem:[%s421 + $0x58] sm:$0xff] %v5875
        %5908 = vst [vmem:[%s421 + $0x60] sm:$0xff] %v5876
        %5909 = vst [vmem:[%s421 + $0x68] sm:$0xff] %v5877
        %5910 = vst [vmem:[%s421 + $0x70] sm:$0xff] %v5878
        %5911 = vst [vmem:[%s421 + $0x78] sm:$0xff] %v5879
        %5912 = vst [vmem:[%s421 + $0x80] sm:$0xff] %v5880
        %5913 = vst [vmem:[%s421 + $0x88] sm:$0xff] %v5881
        %5914 = vst [vmem:[%s421 + $0x90] sm:$0xff] %v5882
        %5915 = vst [vmem:[%s421 + $0x98] sm:$0xff] %v5883
        %5916 = vst [vmem:[%s421 + $0xa0] sm:$0xff] %v5884
        %5917 = vst [vmem:[%s421 + $0xa8] sm:$0xff] %v5885
        %5918 = vst [vmem:[%s421 + $0xb0] sm:$0xff] %v5886
        %5919 = vst [vmem:[%s421 + $0xb8] sm:$0xff] %v5887
        %5920 = vst [vmem:[%s421 + $0xc0] sm:$0xff] %v5888
        %5921 = vst [vmem:[%s421 + $0xc8] sm:$0xff] %v5889
        %5922 = vst [vmem:[%s421 + $0xd0] sm:$0xff] %v5890
        %5923 = vst [vmem:[%s421 + $0xd8] sm:$0xff] %v5891
        %5924 = vst [vmem:[%s421 + $0xe0] sm:$0xff] %v5892
        %5925 = vst [vmem:[%s421 + $0xe8] sm:$0xff] %v5893
        %5926 = vst [vmem:[%s421 + $0xf0] sm:$0xff] %v5894
        %5927 = vst [vmem:[%s421 + $0xf8] sm:$0xff] %v5895
        %s5928 = sand.u32 %s231, 1
        %s5929 = scalar_lea.sflag [#allocation4], %s5928
        %s5930 = sand.u32 %s231, 1
        %s5931 = smul.addr %s5930, 256
        %s5932 = scalar_lea.vmem [#allocation13], %s5931
        // Predicated region
        $region81: #{generator_forward.1} parent=55 // pred_check
          %p5933 = pneg %p241
        $region82: #{generator_forward.1} parent=55 // pred_check_branch
          %5935 = sbr.rel (%p5933) target = $region84
        $region83: #{generator_forward.1} parent=55 // pred_region
          %s5936 = smul.u32 16, %s29
          %s5938 = ssub.s32 4096, 4096
          %5939 = vsyncadd %s5929, %s5938
          %s5940 = smul.addr %s5936, 2
          %s5941 = smul.addr %s5940, 128
          %s5942 = scalar_lea.hbm %s9, %s5941
          %s5943 = sshll.u32 %s5932, 4
          %s5944 = int_to_ptr.vmem [resolvable:$true] %s5943
          %5949 = dma.vmem_to_hbm [thread:$0]  %s5944, 4096, %s5942, %s5929, 256, 256, 16
        $region84: #{generator_forward.1} parent=55 // pred_fallthru
          _
      $region56: #{generator_forward.1} parent=5 // pred_fallthru
        _
      %p5950 = scmp.le.s32.totalorder 2, %s24
      // Predicated region
      $region85: #{generator_forward.1} parent=5 // pred_check
        %p5951 = pneg %p5950
      $region86: #{generator_forward.1} parent=5 // pred_check_branch
        %5953 = sbr.rel (%p5951) target = $region88
      $region87: #{generator_forward.1} parent=5 // pred_region
        %s5954 = ssub.s32 %s24, 2
        // Predicated region
        $region89: #{generator_forward.1} parent=87 // pred_check
          %p5955 = pneg %p247
        $region90: #{generator_forward.1} parent=87 // pred_check_branch
          %5957 = sbr.rel (%p5955) target = $region92
        $region91: #{generator_forward.1} parent=87 // pred_region
          %s5958 = sand.u32 %s232, 1
          %s5959 = scalar_lea.sflag [#allocation4], %s5958
          %s5960 = sand.u32 %s232, 1
          %s5961 = smul.addr %s5960, 256
          %s5962 = scalar_lea.vmem [#allocation13], %s5961
          %5963 = dma.done %s5959, 4096
        $region92: #{generator_forward.1} parent=87 // pred_fallthru
          _
      $region88: #{generator_forward.1} parent=5 // pred_fallthru
        _
    $region6: #{generator_forward.1} parent=1 // loop_footer
      %s28 = sadd.s32 1, %s24
    $region7: #{generator_forward.1} parent=1 // loop_footer_branch
      %23 = sbr.rel target = $region3
    $region8: #{generator_forward.1} parent=1 // loop_exit
      _
    %5964 = vsyncpa [#allocation3], 1
    %s5965 = scalar_lea.sflag [#allocation3], 1
    %5966 = vsyncpa %s5965, 1
    %5967 = vsyncpa [#allocation6], 1
    %5968 = vsyncpa [#allocation9], 1
    %5969 = vsyncpa [#allocation12], 1
    %5970 = vsyncpa [#allocation4], 1
    %s5971 = scalar_lea.sflag [#allocation4], 1
    %5972 = vsyncpa %s5971, 1

</llo_original>
